<compile_context>
chip_gen: v6e
topology: v6e:2x2x1
jax: 0.10.0
libtpu: 0.0.40
codegen_flags: <defaults>
</compile_context>

<pallas_src>
import math
import numpy as np
import jax
import jax.numpy as jnp
from jax import lax
from jax.experimental import pallas as pl
from jax.experimental.pallas import tpu as pltpu

EPS_LN = 1e-5


def _layernorm(h, gamma, beta):
    mu = jnp.mean(h, axis=-1, keepdims=True)
    var = jnp.mean((h - mu) ** 2, axis=-1, keepdims=True)
    return (h - mu) * lax.rsqrt(var + EPS_LN) * gamma + beta


# ---------------------------------------------------------------------------
# Fused kernel: one grid step == one batch element.
#   embed -> (+CLS,+pos) -> L x (per-channel attention block + channel conv)
#   -> CLS rows -> channel mean -> MLP head
# ---------------------------------------------------------------------------
def make_fused_forward_kernel(L, C, S, P, D, F, KP):
    CS = C * S
    scale = 1.0 / math.sqrt(D)
    bf16, f32 = jnp.bfloat16, jnp.float32

    # per-layer packed-vector lane offsets (all multiples of 128)
    OFF_BQKV = 0
    OFF_BO = OFF_BQKV + 3 * D
    OFF_L1G = OFF_BO + D
    OFF_L1B = OFF_L1G + D
    OFF_B1 = OFF_L1B + D
    OFF_B2 = OFF_B1 + F
    OFF_L2G = OFF_B2 + D
    OFF_L2B = OFF_L2G + D

    # global packed-vector lane offsets
    G_EB, G_PG, G_PB, G_HB1, G_HB2 = 0, D, 2 * D, 3 * D, 4 * D

    CONV_STRIDE = C * C + C  # per layer: conv_w (C*C) then conv_b (C) in SMEM

    def kernel(xp_ref, const_ref, ew_ref, gv_ref, wqov1_ref, w2_ref,
               lv_ref, headw_ref, conv_ref, cls_ref, pred_ref):
        # --- patch embedding: Linear -> ReLU -> LayerNorm over all C*S rows ---
        e = jnp.dot(xp_ref[...].astype(bf16), ew_ref[...],
                    preferred_element_type=f32) + gv_ref[:, G_EB:G_EB + D]
        e = jnp.maximum(e, 0.0)
        e = _layernorm(e, gv_ref[:, G_PG:G_PG + D], gv_ref[:, G_PB:G_PB + D])

        # --- CLS token + sinusoidal pos-embedding via precomputed constants ---
        # keep == 0 on the reserved CLS rows; addend already holds cls + pos.
        tok = const_ref[:, :D] + e * const_ref[:, D:2 * D]        # (CS, D) f32

        for l in range(L):
            # fused QKV projection for all channel sequences at once
            qkv = (jnp.dot(tok.astype(bf16), wqov1_ref[l, :, 0:3 * D],
                           preferred_element_type=f32)
                   + lv_ref[l, :, OFF_BQKV:OFF_BQKV + 3 * D])
            q = qkv[:, 0:D].reshape(C, S, D)
            k = qkv[:, D:2 * D].reshape(C, S, D)
            v = qkv[:, 2 * D:3 * D].reshape(C, S, D)

            # per-sequence attention, batched over the C channel sequences
            s = jnp.einsum('cqd,ckd->cqk', q.astype(bf16), k.astype(bf16),
                           preferred_element_type=f32) * scale
            s = s - jnp.max(s, axis=-1, keepdims=True)
            p = jnp.exp(s)
            p = p * pl.reciprocal(jnp.sum(p, axis=-1, keepdims=True), approx=True)
            attn = jnp.einsum('cqk,ckd->cqd', p.astype(bf16), v.astype(bf16),
                              preferred_element_type=f32).reshape(CS, D)
            attn = (jnp.dot(attn.astype(bf16), wqov1_ref[l, :, 3 * D:4 * D],
                            preferred_element_type=f32)
                    + lv_ref[l, :, OFF_BO:OFF_BO + D])

            h = _layernorm(tok + attn,
                           lv_ref[l, :, OFF_L1G:OFF_L1G + D],
                           lv_ref[l, :, OFF_L1B:OFF_L1B + D])
            f = jnp.maximum(
                jnp.dot(h.astype(bf16), wqov1_ref[l, :, 4 * D:4 * D + F],
                        preferred_element_type=f32)
                + lv_ref[l, :, OFF_B1:OFF_B1 + F], 0.0)
            f = (jnp.dot(f.astype(bf16), w2_ref[l], preferred_element_type=f32)
                 + lv_ref[l, :, OFF_B2:OFF_B2 + D])
            y = _layernorm(h + f,
                           lv_ref[l, :, OFF_L2G:OFF_L2G + D],
                           lv_ref[l, :, OFF_L2B:OFF_L2B + D])

            # residual 1x1 channel-mixing conv (C -> C): direct (C,C) contraction
            # unrolled on the VPU with scalar weights from SMEM (no M x M matrix)
            base = l * CONV_STRIDE
            y_c = [y[c * S:(c + 1) * S, :] for c in range(C)]      # aligned views
            rows = []
            for o in range(C):
                m = conv_ref[base + o * C] * y_c[0]
                for c in range(1, C):
                    m = m + conv_ref[base + o * C + c] * y_c[c]
                m = jnp.maximum(m + conv_ref[base + C * C + o], 0.0) + y_c[o]
                rows.append(m)
            tok = jnp.concatenate(rows, axis=0)

        # --- CLS rows (one per channel) -> mean over channels -> MLP head ---
        cls = jnp.concatenate([tok[c * S:c * S + 1, :] for c in range(C)], axis=0)
        cls_ref[...] = cls                                          # (C, D)
        avg = jnp.mean(cls, axis=0, keepdims=True)                  # (1, D)
        hh = jnp.maximum(
            jnp.dot(avg.astype(bf16), headw_ref[:, 0:D], preferred_element_type=f32)
            + gv_ref[:, G_HB1:G_HB1 + D], 0.0)
        pred_ref[...] = (jnp.dot(hh.astype(bf16), headw_ref[:, D:D + KP],
                                 preferred_element_type=f32)
                         + gv_ref[:, G_HB2:G_HB2 + KP])             # (1, KP)

    return kernel


# ---------------------------------------------------------------------------
# Parameters (deterministic, synthetic) and operand packing
# ---------------------------------------------------------------------------
def sinusoidal_pe(max_len, d_model):
    pe = np.zeros((max_len, d_model), dtype=np.float32)
    pos = np.arange(max_len, dtype=np.float32)[:, None]
    div = np.exp(np.arange(0, d_model, 2, dtype=np.float32)
                 * -(math.log(10000.0) / d_model))
    pe[:, 0::2] = np.sin(pos * div)
    pe[:, 1::2] = np.cos(pos * div)
    return jnp.asarray(pe)[None]                       # (1, max_len, d_model)


def init_params(key, cfg):
    P, D, F = cfg["patch_len"], cfg["d_model"], cfg["hidden_channels"]
    C, K, L = cfg["in_channels"], cfg["num_class"], cfg["num_layers"]
    keys = iter(jax.random.split(key, 16))

    def nrm(shape, scl):
        return (scl * jax.random.normal(next(keys), shape)).astype(jnp.float32)

    return {
        "embed_w": nrm((P, D), 1.0 / math.sqrt(P)),
        "embed_b": jnp.zeros((1, D), jnp.float32),
        "pn_g": jnp.ones((1, D), jnp.float32),
        "pn_b": jnp.zeros((1, D), jnp.float32),
        "cls_token": nrm((1, 1, 1, D), 0.02),
        "pos_embed": sinusoidal_pe(100, D),
        "wqkv": nrm((L, D, 3 * D), 1.0 / math.sqrt(D)),
        "bqkv": jnp.zeros((L, 1, 3 * D), jnp.float32),
        "wo": nrm((L, D, D), 1.0 / math.sqrt(D)),
        "bo": jnp.zeros((L, 1, D), jnp.float32),
        "ln1_g": jnp.ones((L, 1, D), jnp.float32),
        "ln1_b": jnp.zeros((L, 1, D), jnp.float32),
        "w1": nrm((L, D, F), 1.0 / math.sqrt(D)),
        "b1": jnp.zeros((L, 1, F), jnp.float32),
        "w2": nrm((L, F, D), 1.0 / math.sqrt(F)),
        "b2": jnp.zeros((L, 1, D), jnp.float32),
        "ln2_g": jnp.ones((L, 1, D), jnp.float32),
        "ln2_b": jnp.zeros((L, 1, D), jnp.float32),
        "conv_w": nrm((L, C, C), 1.0 / math.sqrt(C)),
        "conv_b": jnp.zeros((L, C), jnp.float32),
        "head_w1": nrm((D, D), 1.0 / math.sqrt(D)),
        "head_b1": jnp.zeros((1, D), jnp.float32),
        "head_w2": nrm((D, K), 1.0 / math.sqrt(D)),
        "head_b2": jnp.zeros((1, K), jnp.float32),
        "awl": jnp.ones((2,), jnp.float32),
    }


def pack_operands(params, C, T, lane_pad=128):
    """Pack the many tiny parameters/constants into a few slabs (cuts prologue
    DMA count) and cast the matmul weights to bf16 for the MXU."""
    P, D = params["embed_w"].shape
    F = params["w1"].shape[2]
    L = params["wqkv"].shape[0]
    K = params["head_w2"].shape[1]
    KP = lane_pad
    N = T // P
    S = N + 1
    bf16 = jnp.bfloat16

    # CLS+pos addend and CLS keep-mask (broadcast to D lanes), tiled over C
    pos = params["pos_embed"][0, :S, :]
    cls_vec = params["cls_token"].reshape(1, D)
    addend = pos + jnp.where(jnp.arange(S)[:, None] == 0, cls_vec, 0.0)
    keep = jnp.broadcast_to((jnp.arange(S) != 0).astype(jnp.float32)[:, None], (S, D))
    const2d = jnp.concatenate([jnp.tile(addend, (C, 1)),
                               jnp.tile(keep, (C, 1))], axis=1)       # (C*S, 2D)

    # per-layer vectors: [bqkv | bo | ln1g | ln1b | b1 | b2 | ln2g | ln2b]
    lvecs = jnp.concatenate([params["bqkv"], params["bo"],
                             params["ln1_g"], params["ln1_b"],
                             params["b1"], params["b2"],
                             params["ln2_g"], params["ln2_b"]], axis=2)  # (L,1,9D+F)

    # global vectors: [embed_b | pn_g | pn_b | head_b1 | head_b2(pad)]
    head_b2p = jnp.pad(params["head_b2"], ((0, 0), (0, KP - K)))
    gvecs = jnp.concatenate([params["embed_b"], params["pn_g"], params["pn_b"],
                             params["head_b1"], head_b2p], axis=1)    # (1, 4D+KP)

    # weight slabs (bf16 for the MXU; f32 accumulation inside the kernel)
    wqov1 = jnp.concatenate([params["wqkv"], params["wo"], params["w1"]],
                            axis=2).astype(bf16)                      # (L, D, 4D+F)
    w2 = params["w2"].astype(bf16)                                    # (L, F, D)
    embed_w = params["embed_w"].astype(bf16)                          # (P, D)
    head_w2p = jnp.pad(params["head_w2"], ((0, 0), (0, KP - K)))
    head_w = jnp.concatenate([params["head_w1"], head_w2p],
                             axis=1).astype(bf16)                     # (D, D+KP)

    # channel-conv scalars for SMEM: per layer, conv_w flattened then conv_b
    conv = jnp.concatenate(
        [jnp.concatenate([params["conv_w"][l].reshape(-1), params["conv_b"][l]])
         for l in range(L)], axis=0)                                  # (L*(C*C+C),)

    return dict(const2d=const2d, lvecs=lvecs, gvecs=gvecs, wqov1=wqov1,
                w2=w2, embed_w=embed_w, head_w=head_w, conv=conv)


# ---------------------------------------------------------------------------
# Forward pass (mirrors MyVQVAEDoubleAdapt.forward)
# ---------------------------------------------------------------------------
def forward(params, packed, x, src_mask=None, y_true=None, pseudo_label=None):
    B, C, T = x.shape
    P, D = params["embed_w"].shape
    F = params["w1"].shape[2]
    L = params["wqkv"].shape[0]
    K = params["head_w2"].shape[1]
    KP = packed["head_w"].shape[1] - D
    NV = packed["lvecs"].shape[2]
    assert T % P == 0, "Time series length must be divisible by patch_len"
    N = T // P
    S = N + 1
    CS = C * S

    # patchify; a zero row is reserved at token 0 of every sequence (CLS slot)
    xp = x.reshape(B, C, N, P)
    xp = jnp.pad(xp, ((0, 0), (0, 0), (1, 0), (0, 0))).reshape(B, CS, P)

    kernel = make_fused_forward_kernel(L, C, S, P, D, F, KP)
    cls_rep, cls_pred_pad = pl.pallas_call(
        kernel,
        grid=(B,),
        in_specs=[
            pl.BlockSpec((None, CS, P), lambda b: (b, 0, 0)),          # x patches
            pl.BlockSpec((CS, 2 * D), lambda b: (0, 0)),               # cls/pos consts
            pl.BlockSpec((P, D), lambda b: (0, 0)),                    # embed weight
            pl.BlockSpec((1, 4 * D + KP), lambda b: (0, 0)),           # global vecs
            pl.BlockSpec((L, D, 4 * D + F), lambda b: (0, 0, 0)),      # wqkv|wo|w1
            pl.BlockSpec((L, F, D), lambda b: (0, 0, 0)),              # w2
            pl.BlockSpec((L, 1, NV), lambda b: (0, 0, 0)),             # per-layer vecs
            pl.BlockSpec((D, D + KP), lambda b: (0, 0)),               # head weights
            pl.BlockSpec(memory_space=pltpu.MemorySpace.SMEM),         # conv scalars
        ],
        out_specs=(
            pl.BlockSpec((None, C, D), lambda b: (b, 0, 0)),           # cls_rep
            pl.BlockSpec((None, 1, KP), lambda b: (b, 0, 0)),          # cls_pred (pad)
        ),
        out_shape=(jax.ShapeDtypeStruct((B, C, D), jnp.float32),
                   jax.ShapeDtypeStruct((B, 1, KP), jnp.float32)),
        compiler_params=pltpu.CompilerParams(
            dimension_semantics=("parallel",),
            vmem_limit_bytes=32 * 1024 * 1024),
    )(xp, packed["const2d"], packed["embed_w"], packed["gvecs"],
      packed["wqov1"], packed["w2"], packed["lvecs"], packed["head_w"],
      packed["conv"])

    cls_pred = cls_pred_pad[:, 0, :K]

    loss, ce_loss, kd_loss, accuracy = 0.0, 0.0, 0.0, 0.0
    out_pred = None
    if y_true is not None:
        out_pred = cls_pred
        mask_f = src_mask.astype(jnp.float32)
        denom = jnp.maximum(jnp.sum(mask_f), 1.0)
        logp = jax.nn.log_softmax(cls_pred, axis=-1)
        per_ex = -jnp.take_along_axis(logp, y_true[:, None], axis=1)[:, 0]
        ce_loss = jnp.sum(per_ex * mask_f) / denom
        pred = jnp.argmax(cls_pred, axis=1)
        accuracy = jnp.sum((pred == y_true).astype(jnp.float32) * mask_f) / denom
        kd_loss = 0.0
        # TODO(synk): KDLoss branch not exercised here (pseudo_label is None).
        s = params["awl"]
        loss = (0.5 / (s[0] ** 2)) * ce_loss + jnp.log1p(s[0] ** 2) \
             + (0.5 / (s[1] ** 2)) * kd_loss + jnp.log1p(s[1] ** 2)

    return loss, {"ce_loss": ce_loss, "kd_loss": kd_loss,
                  "accuracy": accuracy, "cls_pred": out_pred, "cls_rep": cls_rep}


if __name__ == "__main__":
    # d_model / hidden = 128 chosen for lane-dense vregs; T = 56 -> 7 patches
    # of length 8, so each sequence has S = 8 tokens (full sublane tiles).
    cfg = dict(patch_len=8, d_model=128, hidden_channels=128, num_layers=2,
               in_channels=4, num_class=5)
    B, C = 2, cfg["in_channels"]
    T = 56

    key = jax.random.PRNGKey(0)
    kx, kp = jax.random.split(key)
    x = jax.random.normal(kx, (B, C, T), dtype=jnp.float32)
    params = init_params(kp, cfg)
    packed = pack_operands(params, C, T)      # one-time layout constants/packing

    y_true = jnp.array([1, 3], dtype=jnp.int32)     # length B
    src_mask = jnp.array([True, False])             # first sample is source

    fwd = jax.jit(forward)
    loss, out = fwd(params, packed, x, src_mask, y_true)
    jax.block_until_ready(loss)
    jax.block_until_ready(out["cls_pred"])
    assert bool(jnp.isfinite(loss)) and bool(jnp.all(jnp.isfinite(out["cls_pred"])))
    print("KERNEL_OK")
</pallas_src>

<mosaic_0001>
module attributes {stable_mosaic.version = 11 : i64} {
  func.func @kernel(%arg0: i32, %arg1: memref<1x32x8xf32, #tpu.memory_space<vmem>>, %arg2: memref<32x256xf32, #tpu.memory_space<vmem>>, %arg3: memref<8x128xbf16, #tpu.memory_space<vmem>>, %arg4: memref<1x640xf32, #tpu.memory_space<vmem>>, %arg5: memref<2x128x640xbf16, #tpu.memory_space<vmem>>, %arg6: memref<2x128x128xbf16, #tpu.memory_space<vmem>>, %arg7: memref<2x1x1280xf32, #tpu.memory_space<vmem>>, %arg8: memref<128x256xbf16, #tpu.memory_space<vmem>>, %arg9: memref<40xf32, #tpu.memory_space<smem>>, %arg10: memref<1x4x128xf32, #tpu.memory_space<vmem>>, %arg11: memref<1x1x128xf32, #tpu.memory_space<vmem>>) attributes {dimension_semantics = [#tpu.dimension_semantics<parallel>], iteration_bounds = array<i64: 2>, scalar_prefetch = 0 : i64, scratch_operands = 0 : i64, tpu.core_type = #tpu.core_type<tc>, window_params = [{transform_indices = @transform_0, window_bounds = array<i64: 1, 32, 8>}, {pipeline_mode = #tpu.pipeline_mode<synchronous>, transform_indices = @transform_1, window_bounds = array<i64: 32, 256>}, {pipeline_mode = #tpu.pipeline_mode<synchronous>, transform_indices = @transform_2, window_bounds = array<i64: 8, 128>}, {pipeline_mode = #tpu.pipeline_mode<synchronous>, transform_indices = @transform_3, window_bounds = array<i64: 1, 640>}, {pipeline_mode = #tpu.pipeline_mode<synchronous>, transform_indices = @transform_4, window_bounds = array<i64: 2, 128, 640>}, {pipeline_mode = #tpu.pipeline_mode<synchronous>, transform_indices = @transform_5, window_bounds = array<i64: 2, 128, 128>}, {pipeline_mode = #tpu.pipeline_mode<synchronous>, transform_indices = @transform_6, window_bounds = array<i64: 2, 1, 1280>}, {pipeline_mode = #tpu.pipeline_mode<synchronous>, transform_indices = @transform_7, window_bounds = array<i64: 128, 256>}, {transform_indices = @transform_8, window_bounds = array<i64: 40>}, {transform_indices = @transform_9, window_bounds = array<i64: 1, 4, 128>}, {transform_indices = @transform_10, window_bounds = array<i64: 1, 1, 128>}]} {
    %c0 = arith.constant 0 : index
    %c0_0 = arith.constant 0 : index
    %c0_1 = arith.constant 0 : index
    %0 = vector.load %arg1[%c0, %c0_0, %c0_1] : memref<1x32x8xf32, #tpu.memory_space<vmem>>, vector<1x32x8xf32>
    %1 = vector.shape_cast %0 : vector<1x32x8xf32> to vector<32x8xf32>
    %2 = arith.truncf %1 : vector<32x8xf32> to vector<32x8xbf16>
    %c0_2 = arith.constant 0 : index
    %c0_3 = arith.constant 0 : index
    %3 = vector.load %arg3[%c0_2, %c0_3] : memref<8x128xbf16, #tpu.memory_space<vmem>>, vector<8x128xbf16>
    %cst = arith.constant dense<0.000000e+00> : vector<32x128xf32>
    %4 = tpu.matmul %2, %3, %cst {dimension_numbers = #tpu.dot_dimension_numbers<[1], [0], [0], [1], [0, 0, 1, 1], [], []>} : vector<32x8xbf16>, vector<8x128xbf16>, vector<32x128xf32> -> vector<32x128xf32>
    %c0_4 = arith.constant 0 : index
    %c0_5 = arith.constant 0 : index
    %5 = vector.load %arg4[%c0_4, %c0_5] : memref<1x640xf32, #tpu.memory_space<vmem>>, vector<1x128xf32>
    %6 = vector.broadcast %5 : vector<1x128xf32> to vector<32x128xf32>
    %7 = arith.addf %4, %6 : vector<32x128xf32>
    %cst_6 = arith.constant 0.000000e+00 : f32
    %8 = vector.broadcast %cst_6 : f32 to vector<32x128xf32>
    %9 = arith.maximumf %7, %8 : vector<32x128xf32>
    %c0_7 = arith.constant 0 : index
    %c128 = arith.constant 128 : index
    %10 = vector.load %arg4[%c0_7, %c128] : memref<1x640xf32, #tpu.memory_space<vmem>>, vector<1x128xf32>
    %c0_8 = arith.constant 0 : index
    %c256 = arith.constant 256 : index
    %11 = vector.load %arg4[%c0_8, %c256] : memref<1x640xf32, #tpu.memory_space<vmem>>, vector<1x128xf32>
    %cst_9 = arith.constant dense<0.000000e+00> : vector<32xf32>
    %12 = vector.multi_reduction <add>, %9, %cst_9 [1] : vector<32x128xf32> to vector<32xf32>
    %13 = vector.shape_cast %12 : vector<32xf32> to vector<32x1xf32>
    %cst_10 = arith.constant 1.280000e+02 : f32
    %14 = vector.broadcast %cst_10 : f32 to vector<32x1xf32>
    %15 = arith.divf %13, %14 : vector<32x1xf32>
    %16 = vector.broadcast %15 : vector<32x1xf32> to vector<32x128xf32>
    %17 = arith.subf %9, %16 : vector<32x128xf32>
    %18 = arith.mulf %17, %17 : vector<32x128xf32>
    %cst_11 = arith.constant dense<0.000000e+00> : vector<32xf32>
    %19 = vector.multi_reduction <add>, %18, %cst_11 [1] : vector<32x128xf32> to vector<32xf32>
    %20 = vector.shape_cast %19 : vector<32xf32> to vector<32x1xf32>
    %cst_12 = arith.constant 1.280000e+02 : f32
    %21 = vector.broadcast %cst_12 : f32 to vector<32x1xf32>
    %22 = arith.divf %20, %21 : vector<32x1xf32>
    %23 = vector.broadcast %15 : vector<32x1xf32> to vector<32x128xf32>
    %24 = arith.subf %9, %23 : vector<32x128xf32>
    %cst_13 = arith.constant 9.99999974E-6 : f32
    %25 = vector.broadcast %cst_13 : f32 to vector<32x1xf32>
    %26 = arith.addf %22, %25 : vector<32x1xf32>
    %27 = math.rsqrt %26 : vector<32x1xf32>
    %28 = vector.broadcast %27 : vector<32x1xf32> to vector<32x128xf32>
    %29 = arith.mulf %24, %28 : vector<32x128xf32>
    %30 = vector.broadcast %10 : vector<1x128xf32> to vector<32x128xf32>
    %31 = arith.mulf %29, %30 : vector<32x128xf32>
    %32 = vector.broadcast %11 : vector<1x128xf32> to vector<32x128xf32>
    %33 = arith.addf %31, %32 : vector<32x128xf32>
    %c0_14 = arith.constant 0 : index
    %c0_15 = arith.constant 0 : index
    %34 = vector.load %arg2[%c0_14, %c0_15] : memref<32x256xf32, #tpu.memory_space<vmem>>, vector<32x128xf32>
    %c0_16 = arith.constant 0 : index
    %c128_17 = arith.constant 128 : index
    %35 = vector.load %arg2[%c0_16, %c128_17] : memref<32x256xf32, #tpu.memory_space<vmem>>, vector<32x128xf32>
    %36 = arith.mulf %33, %35 : vector<32x128xf32>
    %37 = arith.addf %34, %36 : vector<32x128xf32>
    %38 = arith.truncf %37 : vector<32x128xf32> to vector<32x128xbf16>
    %c0_18 = arith.constant 0 : index
    %c0_19 = arith.constant 0 : index
    %c0_20 = arith.constant 0 : index
    %39 = vector.load %arg5[%c0_18, %c0_19, %c0_20] : memref<2x128x640xbf16, #tpu.memory_space<vmem>>, vector<1x128x384xbf16>
    %40 = vector.shape_cast %39 : vector<1x128x384xbf16> to vector<128x384xbf16>
    %cst_21 = arith.constant dense<0.000000e+00> : vector<32x384xf32>
    %41 = tpu.matmul %38, %40, %cst_21 {dimension_numbers = #tpu.dot_dimension_numbers<[1], [0], [0], [1], [0, 0, 1, 1], [], []>} : vector<32x128xbf16>, vector<128x384xbf16>, vector<32x384xf32> -> vector<32x384xf32>
    %c0_22 = arith.constant 0 : index
    %c0_23 = arith.constant 0 : index
    %c0_24 = arith.constant 0 : index
    %42 = vector.load %arg7[%c0_22, %c0_23, %c0_24] : memref<2x1x1280xf32, #tpu.memory_space<vmem>>, vector<1x1x384xf32>
    %43 = vector.shape_cast %42 : vector<1x1x384xf32> to vector<1x384xf32>
    %44 = vector.broadcast %43 : vector<1x384xf32> to vector<32x384xf32>
    %45 = arith.addf %41, %44 : vector<32x384xf32>
    %46 = vector.extract_strided_slice %45 {offsets = [0, 0], sizes = [32, 128], strides = [1, 1]} : vector<32x384xf32> to vector<32x128xf32>
    %47 = vector.shape_cast %46 : vector<32x128xf32> to vector<4x8x128xf32>
    %48 = vector.extract_strided_slice %45 {offsets = [0, 128], sizes = [32, 128], strides = [1, 1]} : vector<32x384xf32> to vector<32x128xf32>
    %49 = vector.shape_cast %48 : vector<32x128xf32> to vector<4x8x128xf32>
    %50 = vector.extract_strided_slice %45 {offsets = [0, 256], sizes = [32, 128], strides = [1, 1]} : vector<32x384xf32> to vector<32x128xf32>
    %51 = vector.shape_cast %50 : vector<32x128xf32> to vector<4x8x128xf32>
    %52 = arith.truncf %47 : vector<4x8x128xf32> to vector<4x8x128xbf16>
    %53 = arith.truncf %49 : vector<4x8x128xf32> to vector<4x8x128xbf16>
    "tpu.trace_start"() <{level = 10 : i32, message = "cqd,ckd->cqk"}> : () -> ()
    %cst_25 = arith.constant dense<0.000000e+00> : vector<4x8x8xf32>
    %54 = tpu.matmul %52, %53, %cst_25 {dimension_numbers = #tpu.dot_dimension_numbers<[2], [2], [1], [1], [0, 0, 0, 1, 1, 1], [0], [0]>} : vector<4x8x128xbf16>, vector<4x8x128xbf16>, vector<4x8x8xf32> -> vector<4x8x8xf32>
    "tpu.trace_stop"() : () -> ()
    %cst_26 = arith.constant 0.0883883461 : f32
    %55 = vector.broadcast %cst_26 : f32 to vector<4x8x8xf32>
    %56 = arith.mulf %54, %55 : vector<4x8x8xf32>
    %cst_27 = arith.constant dense<0xFF800000> : vector<4x8xf32>
    %57 = vector.multi_reduction <maximumf>, %56, %cst_27 [2] : vector<4x8x8xf32> to vector<4x8xf32>
    %58 = vector.shape_cast %57 : vector<4x8xf32> to vector<4x8x1xf32>
    %59 = vector.broadcast %58 : vector<4x8x1xf32> to vector<4x8x8xf32>
    %60 = arith.subf %56, %59 : vector<4x8x8xf32>
    %61 = math.exp %60 : vector<4x8x8xf32>
    %cst_28 = arith.constant dense<0.000000e+00> : vector<4x8xf32>
    %62 = vector.multi_reduction <add>, %61, %cst_28 [2] : vector<4x8x8xf32> to vector<4x8xf32>
    %63 = vector.shape_cast %62 : vector<4x8xf32> to vector<4x8x1xf32>
    %64 = tpu.reciprocal %63 {approx = true} : vector<4x8x1xf32> -> vector<4x8x1xf32>
    %65 = vector.broadcast %64 : vector<4x8x1xf32> to vector<4x8x8xf32>
    %66 = arith.mulf %61, %65 : vector<4x8x8xf32>
    %67 = arith.truncf %66 : vector<4x8x8xf32> to vector<4x8x8xbf16>
    %68 = arith.truncf %51 : vector<4x8x128xf32> to vector<4x8x128xbf16>
    "tpu.trace_start"() <{level = 10 : i32, message = "cqk,ckd->cqd"}> : () -> ()
    %cst_29 = arith.constant dense<0.000000e+00> : vector<4x8x128xf32>
    %69 = tpu.matmul %67, %68, %cst_29 {dimension_numbers = #tpu.dot_dimension_numbers<[2], [1], [1], [2], [0, 0, 0, 1, 1, 2], [0], [0]>} : vector<4x8x8xbf16>, vector<4x8x128xbf16>, vector<4x8x128xf32> -> vector<4x8x128xf32>
    "tpu.trace_stop"() : () -> ()
    %70 = vector.shape_cast %69 : vector<4x8x128xf32> to vector<32x128xf32>
    %71 = arith.truncf %70 : vector<32x128xf32> to vector<32x128xbf16>
    %c0_30 = arith.constant 0 : index
    %c0_31 = arith.constant 0 : index
    %c384 = arith.constant 384 : index
    %72 = vector.load %arg5[%c0_30, %c0_31, %c384] : memref<2x128x640xbf16, #tpu.memory_space<vmem>>, vector<1x128x128xbf16>
    %73 = vector.shape_cast %72 : vector<1x128x128xbf16> to vector<128x128xbf16>
    %cst_32 = arith.constant dense<0.000000e+00> : vector<32x128xf32>
    %74 = tpu.matmul %71, %73, %cst_32 {dimension_numbers = #tpu.dot_dimension_numbers<[1], [0], [0], [1], [0, 0, 1, 1], [], []>} : vector<32x128xbf16>, vector<128x128xbf16>, vector<32x128xf32> -> vector<32x128xf32>
    %c0_33 = arith.constant 0 : index
    %c0_34 = arith.constant 0 : index
    %c384_35 = arith.constant 384 : index
    %75 = vector.load %arg7[%c0_33, %c0_34, %c384_35] : memref<2x1x1280xf32, #tpu.memory_space<vmem>>, vector<1x1x128xf32>
    %76 = vector.shape_cast %75 : vector<1x1x128xf32> to vector<1x128xf32>
    %77 = vector.broadcast %76 : vector<1x128xf32> to vector<32x128xf32>
    %78 = arith.addf %74, %77 : vector<32x128xf32>
    %79 = arith.addf %37, %78 : vector<32x128xf32>
    %c0_36 = arith.constant 0 : index
    %c0_37 = arith.constant 0 : index
    %c512 = arith.constant 512 : index
    %80 = vector.load %arg7[%c0_36, %c0_37, %c512] : memref<2x1x1280xf32, #tpu.memory_space<vmem>>, vector<1x1x128xf32>
    %81 = vector.shape_cast %80 : vector<1x1x128xf32> to vector<1x128xf32>
    %c0_38 = arith.constant 0 : index
    %c0_39 = arith.constant 0 : index
    %c640 = arith.constant 640 : index
    %82 = vector.load %arg7[%c0_38, %c0_39, %c640] : memref<2x1x1280xf32, #tpu.memory_space<vmem>>, vector<1x1x128xf32>
    %83 = vector.shape_cast %82 : vector<1x1x128xf32> to vector<1x128xf32>
    %cst_40 = arith.constant dense<0.000000e+00> : vector<32xf32>
    %84 = vector.multi_reduction <add>, %79, %cst_40 [1] : vector<32x128xf32> to vector<32xf32>
    %85 = vector.shape_cast %84 : vector<32xf32> to vector<32x1xf32>
    %cst_41 = arith.constant 1.280000e+02 : f32
    %86 = vector.broadcast %cst_41 : f32 to vector<32x1xf32>
    %87 = arith.divf %85, %86 : vector<32x1xf32>
    %88 = vector.broadcast %87 : vector<32x1xf32> to vector<32x128xf32>
    %89 = arith.subf %79, %88 : vector<32x128xf32>
    %90 = arith.mulf %89, %89 : vector<32x128xf32>
    %cst_42 = arith.constant dense<0.000000e+00> : vector<32xf32>
    %91 = vector.multi_reduction <add>, %90, %cst_42 [1] : vector<32x128xf32> to vector<32xf32>
    %92 = vector.shape_cast %91 : vector<32xf32> to vector<32x1xf32>
    %cst_43 = arith.constant 1.280000e+02 : f32
    %93 = vector.broadcast %cst_43 : f32 to vector<32x1xf32>
    %94 = arith.divf %92, %93 : vector<32x1xf32>
    %95 = vector.broadcast %87 : vector<32x1xf32> to vector<32x128xf32>
    %96 = arith.subf %79, %95 : vector<32x128xf32>
    %cst_44 = arith.constant 9.99999974E-6 : f32
    %97 = vector.broadcast %cst_44 : f32 to vector<32x1xf32>
    %98 = arith.addf %94, %97 : vector<32x1xf32>
    %99 = math.rsqrt %98 : vector<32x1xf32>
    %100 = vector.broadcast %99 : vector<32x1xf32> to vector<32x128xf32>
    %101 = arith.mulf %96, %100 : vector<32x128xf32>
    %102 = vector.broadcast %81 : vector<1x128xf32> to vector<32x128xf32>
    %103 = arith.mulf %101, %102 : vector<32x128xf32>
    %104 = vector.broadcast %83 : vector<1x128xf32> to vector<32x128xf32>
    %105 = arith.addf %103, %104 : vector<32x128xf32>
    %106 = arith.truncf %105 : vector<32x128xf32> to vector<32x128xbf16>
    %c0_45 = arith.constant 0 : index
    %c0_46 = arith.constant 0 : index
    %c512_47 = arith.constant 512 : index
    %107 = vector.load %arg5[%c0_45, %c0_46, %c512_47] : memref<2x128x640xbf16, #tpu.memory_space<vmem>>, vector<1x128x128xbf16>
    %108 = vector.shape_cast %107 : vector<1x128x128xbf16> to vector<128x128xbf16>
    %cst_48 = arith.constant dense<0.000000e+00> : vector<32x128xf32>
    %109 = tpu.matmul %106, %108, %cst_48 {dimension_numbers = #tpu.dot_dimension_numbers<[1], [0], [0], [1], [0, 0, 1, 1], [], []>} : vector<32x128xbf16>, vector<128x128xbf16>, vector<32x128xf32> -> vector<32x128xf32>
    %c0_49 = arith.constant 0 : index
    %c0_50 = arith.constant 0 : index
    %c768 = arith.constant 768 : index
    %110 = vector.load %arg7[%c0_49, %c0_50, %c768] : memref<2x1x1280xf32, #tpu.memory_space<vmem>>, vector<1x1x128xf32>
    %111 = vector.shape_cast %110 : vector<1x1x128xf32> to vector<1x128xf32>
    %112 = vector.broadcast %111 : vector<1x128xf32> to vector<32x128xf32>
    %113 = arith.addf %109, %112 : vector<32x128xf32>
    %cst_51 = arith.constant 0.000000e+00 : f32
    %114 = vector.broadcast %cst_51 : f32 to vector<32x128xf32>
    %115 = arith.maximumf %113, %114 : vector<32x128xf32>
    %116 = arith.truncf %115 : vector<32x128xf32> to vector<32x128xbf16>
    %c0_52 = arith.constant 0 : index
    %c0_53 = arith.constant 0 : index
    %c0_54 = arith.constant 0 : index
    %117 = vector.load %arg6[%c0_52, %c0_53, %c0_54] : memref<2x128x128xbf16, #tpu.memory_space<vmem>>, vector<1x128x128xbf16>
    %118 = vector.shape_cast %117 : vector<1x128x128xbf16> to vector<128x128xbf16>
    %cst_55 = arith.constant dense<0.000000e+00> : vector<32x128xf32>
    %119 = tpu.matmul %116, %118, %cst_55 {dimension_numbers = #tpu.dot_dimension_numbers<[1], [0], [0], [1], [0, 0, 1, 1], [], []>} : vector<32x128xbf16>, vector<128x128xbf16>, vector<32x128xf32> -> vector<32x128xf32>
    %c0_56 = arith.constant 0 : index
    %c0_57 = arith.constant 0 : index
    %c896 = arith.constant 896 : index
    %120 = vector.load %arg7[%c0_56, %c0_57, %c896] : memref<2x1x1280xf32, #tpu.memory_space<vmem>>, vector<1x1x128xf32>
    %121 = vector.shape_cast %120 : vector<1x1x128xf32> to vector<1x128xf32>
    %122 = vector.broadcast %121 : vector<1x128xf32> to vector<32x128xf32>
    %123 = arith.addf %119, %122 : vector<32x128xf32>
    %124 = arith.addf %105, %123 : vector<32x128xf32>
    %c0_58 = arith.constant 0 : index
    %c0_59 = arith.constant 0 : index
    %c1024 = arith.constant 1024 : index
    %125 = vector.load %arg7[%c0_58, %c0_59, %c1024] : memref<2x1x1280xf32, #tpu.memory_space<vmem>>, vector<1x1x128xf32>
    %126 = vector.shape_cast %125 : vector<1x1x128xf32> to vector<1x128xf32>
    %c0_60 = arith.constant 0 : index
    %c0_61 = arith.constant 0 : index
    %c1152 = arith.constant 1152 : index
    %127 = vector.load %arg7[%c0_60, %c0_61, %c1152] : memref<2x1x1280xf32, #tpu.memory_space<vmem>>, vector<1x1x128xf32>
    %128 = vector.shape_cast %127 : vector<1x1x128xf32> to vector<1x128xf32>
    %cst_62 = arith.constant dense<0.000000e+00> : vector<32xf32>
    %129 = vector.multi_reduction <add>, %124, %cst_62 [1] : vector<32x128xf32> to vector<32xf32>
    %130 = vector.shape_cast %129 : vector<32xf32> to vector<32x1xf32>
    %cst_63 = arith.constant 1.280000e+02 : f32
    %131 = vector.broadcast %cst_63 : f32 to vector<32x1xf32>
    %132 = arith.divf %130, %131 : vector<32x1xf32>
    %133 = vector.broadcast %132 : vector<32x1xf32> to vector<32x128xf32>
    %134 = arith.subf %124, %133 : vector<32x128xf32>
    %135 = arith.mulf %134, %134 : vector<32x128xf32>
    %cst_64 = arith.constant dense<0.000000e+00> : vector<32xf32>
    %136 = vector.multi_reduction <add>, %135, %cst_64 [1] : vector<32x128xf32> to vector<32xf32>
    %137 = vector.shape_cast %136 : vector<32xf32> to vector<32x1xf32>
    %cst_65 = arith.constant 1.280000e+02 : f32
    %138 = vector.broadcast %cst_65 : f32 to vector<32x1xf32>
    %139 = arith.divf %137, %138 : vector<32x1xf32>
    %140 = vector.broadcast %132 : vector<32x1xf32> to vector<32x128xf32>
    %141 = arith.subf %124, %140 : vector<32x128xf32>
    %cst_66 = arith.constant 9.99999974E-6 : f32
    %142 = vector.broadcast %cst_66 : f32 to vector<32x1xf32>
    %143 = arith.addf %139, %142 : vector<32x1xf32>
    %144 = math.rsqrt %143 : vector<32x1xf32>
    %145 = vector.broadcast %144 : vector<32x1xf32> to vector<32x128xf32>
    %146 = arith.mulf %141, %145 : vector<32x128xf32>
    %147 = vector.broadcast %126 : vector<1x128xf32> to vector<32x128xf32>
    %148 = arith.mulf %146, %147 : vector<32x128xf32>
    %149 = vector.broadcast %128 : vector<1x128xf32> to vector<32x128xf32>
    %150 = arith.addf %148, %149 : vector<32x128xf32>
    %151 = vector.extract_strided_slice %150 {offsets = [0, 0], sizes = [8, 128], strides = [1, 1]} : vector<32x128xf32> to vector<8x128xf32>
    %152 = vector.extract_strided_slice %150 {offsets = [8, 0], sizes = [8, 128], strides = [1, 1]} : vector<32x128xf32> to vector<8x128xf32>
    %153 = vector.extract_strided_slice %150 {offsets = [16, 0], sizes = [8, 128], strides = [1, 1]} : vector<32x128xf32> to vector<8x128xf32>
    %154 = vector.extract_strided_slice %150 {offsets = [24, 0], sizes = [8, 128], strides = [1, 1]} : vector<32x128xf32> to vector<8x128xf32>
    %c0_67 = arith.constant 0 : index
    %155 = memref.load %arg9[%c0_67] : memref<40xf32, #tpu.memory_space<smem>>
    %156 = vector.broadcast %155 : f32 to vector<8x128xf32>
    %157 = arith.mulf %156, %151 : vector<8x128xf32>
    %c1 = arith.constant 1 : index
    %158 = memref.load %arg9[%c1] : memref<40xf32, #tpu.memory_space<smem>>
    %159 = vector.broadcast %158 : f32 to vector<8x128xf32>
    %160 = arith.mulf %159, %152 : vector<8x128xf32>
    %161 = arith.addf %157, %160 : vector<8x128xf32>
    %c2 = arith.constant 2 : index
    %162 = memref.load %arg9[%c2] : memref<40xf32, #tpu.memory_space<smem>>
    %163 = vector.broadcast %162 : f32 to vector<8x128xf32>
    %164 = arith.mulf %163, %153 : vector<8x128xf32>
    %165 = arith.addf %161, %164 : vector<8x128xf32>
    %c3 = arith.constant 3 : index
    %166 = memref.load %arg9[%c3] : memref<40xf32, #tpu.memory_space<smem>>
    %167 = vector.broadcast %166 : f32 to vector<8x128xf32>
    %168 = arith.mulf %167, %154 : vector<8x128xf32>
    %169 = arith.addf %165, %168 : vector<8x128xf32>
    %c16 = arith.constant 16 : index
    %170 = memref.load %arg9[%c16] : memref<40xf32, #tpu.memory_space<smem>>
    %171 = vector.broadcast %170 : f32 to vector<8x128xf32>
    %172 = arith.addf %169, %171 : vector<8x128xf32>
    %cst_68 = arith.constant 0.000000e+00 : f32
    %173 = vector.broadcast %cst_68 : f32 to vector<8x128xf32>
    %174 = arith.maximumf %172, %173 : vector<8x128xf32>
    %175 = arith.addf %174, %151 : vector<8x128xf32>
    %c4 = arith.constant 4 : index
    %176 = memref.load %arg9[%c4] : memref<40xf32, #tpu.memory_space<smem>>
    %177 = vector.broadcast %176 : f32 to vector<8x128xf32>
    %178 = arith.mulf %177, %151 : vector<8x128xf32>
    %c5 = arith.constant 5 : index
    %179 = memref.load %arg9[%c5] : memref<40xf32, #tpu.memory_space<smem>>
    %180 = vector.broadcast %179 : f32 to vector<8x128xf32>
    %181 = arith.mulf %180, %152 : vector<8x128xf32>
    %182 = arith.addf %178, %181 : vector<8x128xf32>
    %c6 = arith.constant 6 : index
    %183 = memref.load %arg9[%c6] : memref<40xf32, #tpu.memory_space<smem>>
    %184 = vector.broadcast %183 : f32 to vector<8x128xf32>
    %185 = arith.mulf %184, %153 : vector<8x128xf32>
    %186 = arith.addf %182, %185 : vector<8x128xf32>
    %c7 = arith.constant 7 : index
    %187 = memref.load %arg9[%c7] : memref<40xf32, #tpu.memory_space<smem>>
    %188 = vector.broadcast %187 : f32 to vector<8x128xf32>
    %189 = arith.mulf %188, %154 : vector<8x128xf32>
    %190 = arith.addf %186, %189 : vector<8x128xf32>
    %c17 = arith.constant 17 : index
    %191 = memref.load %arg9[%c17] : memref<40xf32, #tpu.memory_space<smem>>
    %192 = vector.broadcast %191 : f32 to vector<8x128xf32>
    %193 = arith.addf %190, %192 : vector<8x128xf32>
    %cst_69 = arith.constant 0.000000e+00 : f32
    %194 = vector.broadcast %cst_69 : f32 to vector<8x128xf32>
    %195 = arith.maximumf %193, %194 : vector<8x128xf32>
    %196 = arith.addf %195, %152 : vector<8x128xf32>
    %c8 = arith.constant 8 : index
    %197 = memref.load %arg9[%c8] : memref<40xf32, #tpu.memory_space<smem>>
    %198 = vector.broadcast %197 : f32 to vector<8x128xf32>
    %199 = arith.mulf %198, %151 : vector<8x128xf32>
    %c9 = arith.constant 9 : index
    %200 = memref.load %arg9[%c9] : memref<40xf32, #tpu.memory_space<smem>>
    %201 = vector.broadcast %200 : f32 to vector<8x128xf32>
    %202 = arith.mulf %201, %152 : vector<8x128xf32>
    %203 = arith.addf %199, %202 : vector<8x128xf32>
    %c10 = arith.constant 10 : index
    %204 = memref.load %arg9[%c10] : memref<40xf32, #tpu.memory_space<smem>>
    %205 = vector.broadcast %204 : f32 to vector<8x128xf32>
    %206 = arith.mulf %205, %153 : vector<8x128xf32>
    %207 = arith.addf %203, %206 : vector<8x128xf32>
    %c11 = arith.constant 11 : index
    %208 = memref.load %arg9[%c11] : memref<40xf32, #tpu.memory_space<smem>>
    %209 = vector.broadcast %208 : f32 to vector<8x128xf32>
    %210 = arith.mulf %209, %154 : vector<8x128xf32>
    %211 = arith.addf %207, %210 : vector<8x128xf32>
    %c18 = arith.constant 18 : index
    %212 = memref.load %arg9[%c18] : memref<40xf32, #tpu.memory_space<smem>>
    %213 = vector.broadcast %212 : f32 to vector<8x128xf32>
    %214 = arith.addf %211, %213 : vector<8x128xf32>
    %cst_70 = arith.constant 0.000000e+00 : f32
    %215 = vector.broadcast %cst_70 : f32 to vector<8x128xf32>
    %216 = arith.maximumf %214, %215 : vector<8x128xf32>
    %217 = arith.addf %216, %153 : vector<8x128xf32>
    %c12 = arith.constant 12 : index
    %218 = memref.load %arg9[%c12] : memref<40xf32, #tpu.memory_space<smem>>
    %219 = vector.broadcast %218 : f32 to vector<8x128xf32>
    %220 = arith.mulf %219, %151 : vector<8x128xf32>
    %c13 = arith.constant 13 : index
    %221 = memref.load %arg9[%c13] : memref<40xf32, #tpu.memory_space<smem>>
    %222 = vector.broadcast %221 : f32 to vector<8x128xf32>
    %223 = arith.mulf %222, %152 : vector<8x128xf32>
    %224 = arith.addf %220, %223 : vector<8x128xf32>
    %c14 = arith.constant 14 : index
    %225 = memref.load %arg9[%c14] : memref<40xf32, #tpu.memory_space<smem>>
    %226 = vector.broadcast %225 : f32 to vector<8x128xf32>
    %227 = arith.mulf %226, %153 : vector<8x128xf32>
    %228 = arith.addf %224, %227 : vector<8x128xf32>
    %c15 = arith.constant 15 : index
    %229 = memref.load %arg9[%c15] : memref<40xf32, #tpu.memory_space<smem>>
    %230 = vector.broadcast %229 : f32 to vector<8x128xf32>
    %231 = arith.mulf %230, %154 : vector<8x128xf32>
    %232 = arith.addf %228, %231 : vector<8x128xf32>
    %c19 = arith.constant 19 : index
    %233 = memref.load %arg9[%c19] : memref<40xf32, #tpu.memory_space<smem>>
    %234 = vector.broadcast %233 : f32 to vector<8x128xf32>
    %235 = arith.addf %232, %234 : vector<8x128xf32>
    %cst_71 = arith.constant 0.000000e+00 : f32
    %236 = vector.broadcast %cst_71 : f32 to vector<8x128xf32>
    %237 = arith.maximumf %235, %236 : vector<8x128xf32>
    %238 = arith.addf %237, %154 : vector<8x128xf32>
    %239 = tpu.concatenate %175, %196, %217, %238 in 0 : vector<8x128xf32>, vector<8x128xf32>, vector<8x128xf32>, vector<8x128xf32> -> vector<32x128xf32>
    %240 = arith.truncf %239 : vector<32x128xf32> to vector<32x128xbf16>
    %c1_72 = arith.constant 1 : index
    %c0_73 = arith.constant 0 : index
    %c0_74 = arith.constant 0 : index
    %241 = vector.load %arg5[%c1_72, %c0_73, %c0_74] : memref<2x128x640xbf16, #tpu.memory_space<vmem>>, vector<1x128x384xbf16>
    %242 = vector.shape_cast %241 : vector<1x128x384xbf16> to vector<128x384xbf16>
    %cst_75 = arith.constant dense<0.000000e+00> : vector<32x384xf32>
    %243 = tpu.matmul %240, %242, %cst_75 {dimension_numbers = #tpu.dot_dimension_numbers<[1], [0], [0], [1], [0, 0, 1, 1], [], []>} : vector<32x128xbf16>, vector<128x384xbf16>, vector<32x384xf32> -> vector<32x384xf32>
    %c1_76 = arith.constant 1 : index
    %c0_77 = arith.constant 0 : index
    %c0_78 = arith.constant 0 : index
    %244 = vector.load %arg7[%c1_76, %c0_77, %c0_78] : memref<2x1x1280xf32, #tpu.memory_space<vmem>>, vector<1x1x384xf32>
    %245 = vector.shape_cast %244 : vector<1x1x384xf32> to vector<1x384xf32>
    %246 = vector.broadcast %245 : vector<1x384xf32> to vector<32x384xf32>
    %247 = arith.addf %243, %246 : vector<32x384xf32>
    %248 = vector.extract_strided_slice %247 {offsets = [0, 0], sizes = [32, 128], strides = [1, 1]} : vector<32x384xf32> to vector<32x128xf32>
    %249 = vector.shape_cast %248 : vector<32x128xf32> to vector<4x8x128xf32>
    %250 = vector.extract_strided_slice %247 {offsets = [0, 128], sizes = [32, 128], strides = [1, 1]} : vector<32x384xf32> to vector<32x128xf32>
    %251 = vector.shape_cast %250 : vector<32x128xf32> to vector<4x8x128xf32>
    %252 = vector.extract_strided_slice %247 {offsets = [0, 256], sizes = [32, 128], strides = [1, 1]} : vector<32x384xf32> to vector<32x128xf32>
    %253 = vector.shape_cast %252 : vector<32x128xf32> to vector<4x8x128xf32>
    %254 = arith.truncf %249 : vector<4x8x128xf32> to vector<4x8x128xbf16>
    %255 = arith.truncf %251 : vector<4x8x128xf32> to vector<4x8x128xbf16>
    "tpu.trace_start"() <{level = 10 : i32, message = "cqd,ckd->cqk"}> : () -> ()
    %cst_79 = arith.constant dense<0.000000e+00> : vector<4x8x8xf32>
    %256 = tpu.matmul %254, %255, %cst_79 {dimension_numbers = #tpu.dot_dimension_numbers<[2], [2], [1], [1], [0, 0, 0, 1, 1, 1], [0], [0]>} : vector<4x8x128xbf16>, vector<4x8x128xbf16>, vector<4x8x8xf32> -> vector<4x8x8xf32>
    "tpu.trace_stop"() : () -> ()
    %cst_80 = arith.constant 0.0883883461 : f32
    %257 = vector.broadcast %cst_80 : f32 to vector<4x8x8xf32>
    %258 = arith.mulf %256, %257 : vector<4x8x8xf32>
    %cst_81 = arith.constant dense<0xFF800000> : vector<4x8xf32>
    %259 = vector.multi_reduction <maximumf>, %258, %cst_81 [2] : vector<4x8x8xf32> to vector<4x8xf32>
    %260 = vector.shape_cast %259 : vector<4x8xf32> to vector<4x8x1xf32>
    %261 = vector.broadcast %260 : vector<4x8x1xf32> to vector<4x8x8xf32>
    %262 = arith.subf %258, %261 : vector<4x8x8xf32>
    %263 = math.exp %262 : vector<4x8x8xf32>
    %cst_82 = arith.constant dense<0.000000e+00> : vector<4x8xf32>
    %264 = vector.multi_reduction <add>, %263, %cst_82 [2] : vector<4x8x8xf32> to vector<4x8xf32>
    %265 = vector.shape_cast %264 : vector<4x8xf32> to vector<4x8x1xf32>
    %266 = tpu.reciprocal %265 {approx = true} : vector<4x8x1xf32> -> vector<4x8x1xf32>
    %267 = vector.broadcast %266 : vector<4x8x1xf32> to vector<4x8x8xf32>
    %268 = arith.mulf %263, %267 : vector<4x8x8xf32>
    %269 = arith.truncf %268 : vector<4x8x8xf32> to vector<4x8x8xbf16>
    %270 = arith.truncf %253 : vector<4x8x128xf32> to vector<4x8x128xbf16>
    "tpu.trace_start"() <{level = 10 : i32, message = "cqk,ckd->cqd"}> : () -> ()
    %cst_83 = arith.constant dense<0.000000e+00> : vector<4x8x128xf32>
    %271 = tpu.matmul %269, %270, %cst_83 {dimension_numbers = #tpu.dot_dimension_numbers<[2], [1], [1], [2], [0, 0, 0, 1, 1, 2], [0], [0]>} : vector<4x8x8xbf16>, vector<4x8x128xbf16>, vector<4x8x128xf32> -> vector<4x8x128xf32>
    "tpu.trace_stop"() : () -> ()
    %272 = vector.shape_cast %271 : vector<4x8x128xf32> to vector<32x128xf32>
    %273 = arith.truncf %272 : vector<32x128xf32> to vector<32x128xbf16>
    %c1_84 = arith.constant 1 : index
    %c0_85 = arith.constant 0 : index
    %c384_86 = arith.constant 384 : index
    %274 = vector.load %arg5[%c1_84, %c0_85, %c384_86] : memref<2x128x640xbf16, #tpu.memory_space<vmem>>, vector<1x128x128xbf16>
    %275 = vector.shape_cast %274 : vector<1x128x128xbf16> to vector<128x128xbf16>
    %cst_87 = arith.constant dense<0.000000e+00> : vector<32x128xf32>
    %276 = tpu.matmul %273, %275, %cst_87 {dimension_numbers = #tpu.dot_dimension_numbers<[1], [0], [0], [1], [0, 0, 1, 1], [], []>} : vector<32x128xbf16>, vector<128x128xbf16>, vector<32x128xf32> -> vector<32x128xf32>
    %c1_88 = arith.constant 1 : index
    %c0_89 = arith.constant 0 : index
    %c384_90 = arith.constant 384 : index
    %277 = vector.load %arg7[%c1_88, %c0_89, %c384_90] : memref<2x1x1280xf32, #tpu.memory_space<vmem>>, vector<1x1x128xf32>
    %278 = vector.shape_cast %277 : vector<1x1x128xf32> to vector<1x128xf32>
    %279 = vector.broadcast %278 : vector<1x128xf32> to vector<32x128xf32>
    %280 = arith.addf %276, %279 : vector<32x128xf32>
    %281 = arith.addf %239, %280 : vector<32x128xf32>
    %c1_91 = arith.constant 1 : index
    %c0_92 = arith.constant 0 : index
    %c512_93 = arith.constant 512 : index
    %282 = vector.load %arg7[%c1_91, %c0_92, %c512_93] : memref<2x1x1280xf32, #tpu.memory_space<vmem>>, vector<1x1x128xf32>
    %283 = vector.shape_cast %282 : vector<1x1x128xf32> to vector<1x128xf32>
    %c1_94 = arith.constant 1 : index
    %c0_95 = arith.constant 0 : index
    %c640_96 = arith.constant 640 : index
    %284 = vector.load %arg7[%c1_94, %c0_95, %c640_96] : memref<2x1x1280xf32, #tpu.memory_space<vmem>>, vector<1x1x128xf32>
    %285 = vector.shape_cast %284 : vector<1x1x128xf32> to vector<1x128xf32>
    %cst_97 = arith.constant dense<0.000000e+00> : vector<32xf32>
    %286 = vector.multi_reduction <add>, %281, %cst_97 [1] : vector<32x128xf32> to vector<32xf32>
    %287 = vector.shape_cast %286 : vector<32xf32> to vector<32x1xf32>
    %cst_98 = arith.constant 1.280000e+02 : f32
    %288 = vector.broadcast %cst_98 : f32 to vector<32x1xf32>
    %289 = arith.divf %287, %288 : vector<32x1xf32>
    %290 = vector.broadcast %289 : vector<32x1xf32> to vector<32x128xf32>
    %291 = arith.subf %281, %290 : vector<32x128xf32>
    %292 = arith.mulf %291, %291 : vector<32x128xf32>
    %cst_99 = arith.constant dense<0.000000e+00> : vector<32xf32>
    %293 = vector.multi_reduction <add>, %292, %cst_99 [1] : vector<32x128xf32> to vector<32xf32>
    %294 = vector.shape_cast %293 : vector<32xf32> to vector<32x1xf32>
    %cst_100 = arith.constant 1.280000e+02 : f32
    %295 = vector.broadcast %cst_100 : f32 to vector<32x1xf32>
    %296 = arith.divf %294, %295 : vector<32x1xf32>
    %297 = vector.broadcast %289 : vector<32x1xf32> to vector<32x128xf32>
    %298 = arith.subf %281, %297 : vector<32x128xf32>
    %cst_101 = arith.constant 9.99999974E-6 : f32
    %299 = vector.broadcast %cst_101 : f32 to vector<32x1xf32>
    %300 = arith.addf %296, %299 : vector<32x1xf32>
    %301 = math.rsqrt %300 : vector<32x1xf32>
    %302 = vector.broadcast %301 : vector<32x1xf32> to vector<32x128xf32>
    %303 = arith.mulf %298, %302 : vector<32x128xf32>
    %304 = vector.broadcast %283 : vector<1x128xf32> to vector<32x128xf32>
    %305 = arith.mulf %303, %304 : vector<32x128xf32>
    %306 = vector.broadcast %285 : vector<1x128xf32> to vector<32x128xf32>
    %307 = arith.addf %305, %306 : vector<32x128xf32>
    %308 = arith.truncf %307 : vector<32x128xf32> to vector<32x128xbf16>
    %c1_102 = arith.constant 1 : index
    %c0_103 = arith.constant 0 : index
    %c512_104 = arith.constant 512 : index
    %309 = vector.load %arg5[%c1_102, %c0_103, %c512_104] : memref<2x128x640xbf16, #tpu.memory_space<vmem>>, vector<1x128x128xbf16>
    %310 = vector.shape_cast %309 : vector<1x128x128xbf16> to vector<128x128xbf16>
    %cst_105 = arith.constant dense<0.000000e+00> : vector<32x128xf32>
    %311 = tpu.matmul %308, %310, %cst_105 {dimension_numbers = #tpu.dot_dimension_numbers<[1], [0], [0], [1], [0, 0, 1, 1], [], []>} : vector<32x128xbf16>, vector<128x128xbf16>, vector<32x128xf32> -> vector<32x128xf32>
    %c1_106 = arith.constant 1 : index
    %c0_107 = arith.constant 0 : index
    %c768_108 = arith.constant 768 : index
    %312 = vector.load %arg7[%c1_106, %c0_107, %c768_108] : memref<2x1x1280xf32, #tpu.memory_space<vmem>>, vector<1x1x128xf32>
    %313 = vector.shape_cast %312 : vector<1x1x128xf32> to vector<1x128xf32>
    %314 = vector.broadcast %313 : vector<1x128xf32> to vector<32x128xf32>
    %315 = arith.addf %311, %314 : vector<32x128xf32>
    %cst_109 = arith.constant 0.000000e+00 : f32
    %316 = vector.broadcast %cst_109 : f32 to vector<32x128xf32>
    %317 = arith.maximumf %315, %316 : vector<32x128xf32>
    %318 = arith.truncf %317 : vector<32x128xf32> to vector<32x128xbf16>
    %c1_110 = arith.constant 1 : index
    %c0_111 = arith.constant 0 : index
    %c0_112 = arith.constant 0 : index
    %319 = vector.load %arg6[%c1_110, %c0_111, %c0_112] : memref<2x128x128xbf16, #tpu.memory_space<vmem>>, vector<1x128x128xbf16>
    %320 = vector.shape_cast %319 : vector<1x128x128xbf16> to vector<128x128xbf16>
    %cst_113 = arith.constant dense<0.000000e+00> : vector<32x128xf32>
    %321 = tpu.matmul %318, %320, %cst_113 {dimension_numbers = #tpu.dot_dimension_numbers<[1], [0], [0], [1], [0, 0, 1, 1], [], []>} : vector<32x128xbf16>, vector<128x128xbf16>, vector<32x128xf32> -> vector<32x128xf32>
    %c1_114 = arith.constant 1 : index
    %c0_115 = arith.constant 0 : index
    %c896_116 = arith.constant 896 : index
    %322 = vector.load %arg7[%c1_114, %c0_115, %c896_116] : memref<2x1x1280xf32, #tpu.memory_space<vmem>>, vector<1x1x128xf32>
    %323 = vector.shape_cast %322 : vector<1x1x128xf32> to vector<1x128xf32>
    %324 = vector.broadcast %323 : vector<1x128xf32> to vector<32x128xf32>
    %325 = arith.addf %321, %324 : vector<32x128xf32>
    %326 = arith.addf %307, %325 : vector<32x128xf32>
    %c1_117 = arith.constant 1 : index
    %c0_118 = arith.constant 0 : index
    %c1024_119 = arith.constant 1024 : index
    %327 = vector.load %arg7[%c1_117, %c0_118, %c1024_119] : memref<2x1x1280xf32, #tpu.memory_space<vmem>>, vector<1x1x128xf32>
    %328 = vector.shape_cast %327 : vector<1x1x128xf32> to vector<1x128xf32>
    %c1_120 = arith.constant 1 : index
    %c0_121 = arith.constant 0 : index
    %c1152_122 = arith.constant 1152 : index
    %329 = vector.load %arg7[%c1_120, %c0_121, %c1152_122] : memref<2x1x1280xf32, #tpu.memory_space<vmem>>, vector<1x1x128xf32>
    %330 = vector.shape_cast %329 : vector<1x1x128xf32> to vector<1x128xf32>
    %cst_123 = arith.constant dense<0.000000e+00> : vector<32xf32>
    %331 = vector.multi_reduction <add>, %326, %cst_123 [1] : vector<32x128xf32> to vector<32xf32>
    %332 = vector.shape_cast %331 : vector<32xf32> to vector<32x1xf32>
    %cst_124 = arith.constant 1.280000e+02 : f32
    %333 = vector.broadcast %cst_124 : f32 to vector<32x1xf32>
    %334 = arith.divf %332, %333 : vector<32x1xf32>
    %335 = vector.broadcast %334 : vector<32x1xf32> to vector<32x128xf32>
    %336 = arith.subf %326, %335 : vector<32x128xf32>
    %337 = arith.mulf %336, %336 : vector<32x128xf32>
    %cst_125 = arith.constant dense<0.000000e+00> : vector<32xf32>
    %338 = vector.multi_reduction <add>, %337, %cst_125 [1] : vector<32x128xf32> to vector<32xf32>
    %339 = vector.shape_cast %338 : vector<32xf32> to vector<32x1xf32>
    %cst_126 = arith.constant 1.280000e+02 : f32
    %340 = vector.broadcast %cst_126 : f32 to vector<32x1xf32>
    %341 = arith.divf %339, %340 : vector<32x1xf32>
    %342 = vector.broadcast %334 : vector<32x1xf32> to vector<32x128xf32>
    %343 = arith.subf %326, %342 : vector<32x128xf32>
    %cst_127 = arith.constant 9.99999974E-6 : f32
    %344 = vector.broadcast %cst_127 : f32 to vector<32x1xf32>
    %345 = arith.addf %341, %344 : vector<32x1xf32>
    %346 = math.rsqrt %345 : vector<32x1xf32>
    %347 = vector.broadcast %346 : vector<32x1xf32> to vector<32x128xf32>
    %348 = arith.mulf %343, %347 : vector<32x128xf32>
    %349 = vector.broadcast %328 : vector<1x128xf32> to vector<32x128xf32>
    %350 = arith.mulf %348, %349 : vector<32x128xf32>
    %351 = vector.broadcast %330 : vector<1x128xf32> to vector<32x128xf32>
    %352 = arith.addf %350, %351 : vector<32x128xf32>
    %353 = vector.extract_strided_slice %352 {offsets = [0, 0], sizes = [8, 128], strides = [1, 1]} : vector<32x128xf32> to vector<8x128xf32>
    %354 = vector.extract_strided_slice %352 {offsets = [8, 0], sizes = [8, 128], strides = [1, 1]} : vector<32x128xf32> to vector<8x128xf32>
    %355 = vector.extract_strided_slice %352 {offsets = [16, 0], sizes = [8, 128], strides = [1, 1]} : vector<32x128xf32> to vector<8x128xf32>
    %356 = vector.extract_strided_slice %352 {offsets = [24, 0], sizes = [8, 128], strides = [1, 1]} : vector<32x128xf32> to vector<8x128xf32>
    %c20 = arith.constant 20 : index
    %357 = memref.load %arg9[%c20] : memref<40xf32, #tpu.memory_space<smem>>
    %358 = vector.broadcast %357 : f32 to vector<8x128xf32>
    %359 = arith.mulf %358, %353 : vector<8x128xf32>
    %c21 = arith.constant 21 : index
    %360 = memref.load %arg9[%c21] : memref<40xf32, #tpu.memory_space<smem>>
    %361 = vector.broadcast %360 : f32 to vector<8x128xf32>
    %362 = arith.mulf %361, %354 : vector<8x128xf32>
    %363 = arith.addf %359, %362 : vector<8x128xf32>
    %c22 = arith.constant 22 : index
    %364 = memref.load %arg9[%c22] : memref<40xf32, #tpu.memory_space<smem>>
    %365 = vector.broadcast %364 : f32 to vector<8x128xf32>
    %366 = arith.mulf %365, %355 : vector<8x128xf32>
    %367 = arith.addf %363, %366 : vector<8x128xf32>
    %c23 = arith.constant 23 : index
    %368 = memref.load %arg9[%c23] : memref<40xf32, #tpu.memory_space<smem>>
    %369 = vector.broadcast %368 : f32 to vector<8x128xf32>
    %370 = arith.mulf %369, %356 : vector<8x128xf32>
    %371 = arith.addf %367, %370 : vector<8x128xf32>
    %c36 = arith.constant 36 : index
    %372 = memref.load %arg9[%c36] : memref<40xf32, #tpu.memory_space<smem>>
    %373 = vector.broadcast %372 : f32 to vector<8x128xf32>
    %374 = arith.addf %371, %373 : vector<8x128xf32>
    %cst_128 = arith.constant 0.000000e+00 : f32
    %375 = vector.broadcast %cst_128 : f32 to vector<8x128xf32>
    %376 = arith.maximumf %374, %375 : vector<8x128xf32>
    %377 = arith.addf %376, %353 : vector<8x128xf32>
    %c24 = arith.constant 24 : index
    %378 = memref.load %arg9[%c24] : memref<40xf32, #tpu.memory_space<smem>>
    %379 = vector.broadcast %378 : f32 to vector<8x128xf32>
    %380 = arith.mulf %379, %353 : vector<8x128xf32>
    %c25 = arith.constant 25 : index
    %381 = memref.load %arg9[%c25] : memref<40xf32, #tpu.memory_space<smem>>
    %382 = vector.broadcast %381 : f32 to vector<8x128xf32>
    %383 = arith.mulf %382, %354 : vector<8x128xf32>
    %384 = arith.addf %380, %383 : vector<8x128xf32>
    %c26 = arith.constant 26 : index
    %385 = memref.load %arg9[%c26] : memref<40xf32, #tpu.memory_space<smem>>
    %386 = vector.broadcast %385 : f32 to vector<8x128xf32>
    %387 = arith.mulf %386, %355 : vector<8x128xf32>
    %388 = arith.addf %384, %387 : vector<8x128xf32>
    %c27 = arith.constant 27 : index
    %389 = memref.load %arg9[%c27] : memref<40xf32, #tpu.memory_space<smem>>
    %390 = vector.broadcast %389 : f32 to vector<8x128xf32>
    %391 = arith.mulf %390, %356 : vector<8x128xf32>
    %392 = arith.addf %388, %391 : vector<8x128xf32>
    %c37 = arith.constant 37 : index
    %393 = memref.load %arg9[%c37] : memref<40xf32, #tpu.memory_space<smem>>
    %394 = vector.broadcast %393 : f32 to vector<8x128xf32>
    %395 = arith.addf %392, %394 : vector<8x128xf32>
    %cst_129 = arith.constant 0.000000e+00 : f32
    %396 = vector.broadcast %cst_129 : f32 to vector<8x128xf32>
    %397 = arith.maximumf %395, %396 : vector<8x128xf32>
    %398 = arith.addf %397, %354 : vector<8x128xf32>
    %c28 = arith.constant 28 : index
    %399 = memref.load %arg9[%c28] : memref<40xf32, #tpu.memory_space<smem>>
    %400 = vector.broadcast %399 : f32 to vector<8x128xf32>
    %401 = arith.mulf %400, %353 : vector<8x128xf32>
    %c29 = arith.constant 29 : index
    %402 = memref.load %arg9[%c29] : memref<40xf32, #tpu.memory_space<smem>>
    %403 = vector.broadcast %402 : f32 to vector<8x128xf32>
    %404 = arith.mulf %403, %354 : vector<8x128xf32>
    %405 = arith.addf %401, %404 : vector<8x128xf32>
    %c30 = arith.constant 30 : index
    %406 = memref.load %arg9[%c30] : memref<40xf32, #tpu.memory_space<smem>>
    %407 = vector.broadcast %406 : f32 to vector<8x128xf32>
    %408 = arith.mulf %407, %355 : vector<8x128xf32>
    %409 = arith.addf %405, %408 : vector<8x128xf32>
    %c31 = arith.constant 31 : index
    %410 = memref.load %arg9[%c31] : memref<40xf32, #tpu.memory_space<smem>>
    %411 = vector.broadcast %410 : f32 to vector<8x128xf32>
    %412 = arith.mulf %411, %356 : vector<8x128xf32>
    %413 = arith.addf %409, %412 : vector<8x128xf32>
    %c38 = arith.constant 38 : index
    %414 = memref.load %arg9[%c38] : memref<40xf32, #tpu.memory_space<smem>>
    %415 = vector.broadcast %414 : f32 to vector<8x128xf32>
    %416 = arith.addf %413, %415 : vector<8x128xf32>
    %cst_130 = arith.constant 0.000000e+00 : f32
    %417 = vector.broadcast %cst_130 : f32 to vector<8x128xf32>
    %418 = arith.maximumf %416, %417 : vector<8x128xf32>
    %419 = arith.addf %418, %355 : vector<8x128xf32>
    %c32 = arith.constant 32 : index
    %420 = memref.load %arg9[%c32] : memref<40xf32, #tpu.memory_space<smem>>
    %421 = vector.broadcast %420 : f32 to vector<8x128xf32>
    %422 = arith.mulf %421, %353 : vector<8x128xf32>
    %c33 = arith.constant 33 : index
    %423 = memref.load %arg9[%c33] : memref<40xf32, #tpu.memory_space<smem>>
    %424 = vector.broadcast %423 : f32 to vector<8x128xf32>
    %425 = arith.mulf %424, %354 : vector<8x128xf32>
    %426 = arith.addf %422, %425 : vector<8x128xf32>
    %c34 = arith.constant 34 : index
    %427 = memref.load %arg9[%c34] : memref<40xf32, #tpu.memory_space<smem>>
    %428 = vector.broadcast %427 : f32 to vector<8x128xf32>
    %429 = arith.mulf %428, %355 : vector<8x128xf32>
    %430 = arith.addf %426, %429 : vector<8x128xf32>
    %c35 = arith.constant 35 : index
    %431 = memref.load %arg9[%c35] : memref<40xf32, #tpu.memory_space<smem>>
    %432 = vector.broadcast %431 : f32 to vector<8x128xf32>
    %433 = arith.mulf %432, %356 : vector<8x128xf32>
    %434 = arith.addf %430, %433 : vector<8x128xf32>
    %c39 = arith.constant 39 : index
    %435 = memref.load %arg9[%c39] : memref<40xf32, #tpu.memory_space<smem>>
    %436 = vector.broadcast %435 : f32 to vector<8x128xf32>
    %437 = arith.addf %434, %436 : vector<8x128xf32>
    %cst_131 = arith.constant 0.000000e+00 : f32
    %438 = vector.broadcast %cst_131 : f32 to vector<8x128xf32>
    %439 = arith.maximumf %437, %438 : vector<8x128xf32>
    %440 = arith.addf %439, %356 : vector<8x128xf32>
    %441 = tpu.concatenate %377, %398, %419, %440 in 0 : vector<8x128xf32>, vector<8x128xf32>, vector<8x128xf32>, vector<8x128xf32> -> vector<32x128xf32>
    %442 = vector.extract_strided_slice %441 {offsets = [0, 0], sizes = [1, 128], strides = [1, 1]} : vector<32x128xf32> to vector<1x128xf32>
    %443 = vector.extract_strided_slice %441 {offsets = [8, 0], sizes = [1, 128], strides = [1, 1]} : vector<32x128xf32> to vector<1x128xf32>
    %444 = vector.extract_strided_slice %441 {offsets = [16, 0], sizes = [1, 128], strides = [1, 1]} : vector<32x128xf32> to vector<1x128xf32>
    %445 = vector.extract_strided_slice %441 {offsets = [24, 0], sizes = [1, 128], strides = [1, 1]} : vector<32x128xf32> to vector<1x128xf32>
    %446 = tpu.concatenate %442, %443, %444, %445 in 0 : vector<1x128xf32>, vector<1x128xf32>, vector<1x128xf32>, vector<1x128xf32> -> vector<4x128xf32>
    %c0_132 = arith.constant 0 : index
    %c0_133 = arith.constant 0 : index
    %c0_134 = arith.constant 0 : index
    %447 = vector.load %arg10[%c0_132, %c0_133, %c0_134] : memref<1x4x128xf32, #tpu.memory_space<vmem>>, vector<1x4x128xf32>
    %448 = vector.shape_cast %447 : vector<1x4x128xf32> to vector<4x128xf32>
    %449 = vector.shape_cast %446 : vector<4x128xf32> to vector<1x4x128xf32>
    tpu.vector_store %arg10[%c0_132, %c0_133, %c0_134], %449 {strides = array<i32>} : memref<1x4x128xf32, #tpu.memory_space<vmem>>, vector<1x4x128xf32>,
    %cst_135 = arith.constant dense<0.000000e+00> : vector<128xf32>
    %450 = vector.multi_reduction <add>, %446, %cst_135 [0] : vector<4x128xf32> to vector<128xf32>
    %451 = vector.shape_cast %450 : vector<128xf32> to vector<1x128xf32>
    %cst_136 = arith.constant 4.000000e+00 : f32
    %452 = vector.broadcast %cst_136 : f32 to vector<1x128xf32>
    %453 = arith.divf %451, %452 : vector<1x128xf32>
    %454 = arith.truncf %453 : vector<1x128xf32> to vector<1x128xbf16>
    %c0_137 = arith.constant 0 : index
    %c0_138 = arith.constant 0 : index
    %455 = vector.load %arg8[%c0_137, %c0_138] : memref<128x256xbf16, #tpu.memory_space<vmem>>, vector<128x128xbf16>
    %cst_139 = arith.constant dense<0.000000e+00> : vector<1x128xf32>
    %456 = tpu.matmul %454, %455, %cst_139 {dimension_numbers = #tpu.dot_dimension_numbers<[1], [0], [0], [1], [0, 0, 1, 1], [], []>} : vector<1x128xbf16>, vector<128x128xbf16>, vector<1x128xf32> -> vector<1x128xf32>
    %c0_140 = arith.constant 0 : index
    %c384_141 = arith.constant 384 : index
    %457 = vector.load %arg4[%c0_140, %c384_141] : memref<1x640xf32, #tpu.memory_space<vmem>>, vector<1x128xf32>
    %458 = arith.addf %456, %457 : vector<1x128xf32>
    %cst_142 = arith.constant 0.000000e+00 : f32
    %459 = vector.broadcast %cst_142 : f32 to vector<1x128xf32>
    %460 = arith.maximumf %458, %459 : vector<1x128xf32>
    %461 = arith.truncf %460 : vector<1x128xf32> to vector<1x128xbf16>
    %c0_143 = arith.constant 0 : index
    %c128_144 = arith.constant 128 : index
    %462 = vector.load %arg8[%c0_143, %c128_144] : memref<128x256xbf16, #tpu.memory_space<vmem>>, vector<128x128xbf16>
    %cst_145 = arith.constant dense<0.000000e+00> : vector<1x128xf32>
    %463 = tpu.matmul %461, %462, %cst_145 {dimension_numbers = #tpu.dot_dimension_numbers<[1], [0], [0], [1], [0, 0, 1, 1], [], []>} : vector<1x128xbf16>, vector<128x128xbf16>, vector<1x128xf32> -> vector<1x128xf32>
    %c0_146 = arith.constant 0 : index
    %c512_147 = arith.constant 512 : index
    %464 = vector.load %arg4[%c0_146, %c512_147] : memref<1x640xf32, #tpu.memory_space<vmem>>, vector<1x128xf32>
    %465 = arith.addf %463, %464 : vector<1x128xf32>
    %c0_148 = arith.constant 0 : index
    %c0_149 = arith.constant 0 : index
    %c0_150 = arith.constant 0 : index
    %466 = vector.load %arg11[%c0_148, %c0_149, %c0_150] : memref<1x1x128xf32, #tpu.memory_space<vmem>>, vector<1x1x128xf32>
    %467 = vector.shape_cast %466 : vector<1x1x128xf32> to vector<1x128xf32>
    %468 = vector.shape_cast %465 : vector<1x128xf32> to vector<1x1x128xf32>
    tpu.vector_store %arg11[%c0_148, %c0_149, %c0_150], %468 {strides = array<i32>} : memref<1x1x128xf32, #tpu.memory_space<vmem>>, vector<1x1x128xf32>,
    return
  }
  func.func @transform_0(%arg0: i32) -> (i32, i32, i32) {
    %c0_i32 = arith.constant 0 : i32
    %c0_i32_0 = arith.constant 0 : i32
    %c0_i32_1 = arith.constant 0 : i32
    return %arg0, %c0_i32, %c0_i32_0 : i32, i32, i32
  }
  func.func @transform_1(%arg0: i32) -> (i32, i32) {
    %c0_i32 = arith.constant 0 : i32
    %c0_i32_0 = arith.constant 0 : i32
    %c0_i32_1 = arith.constant 0 : i32
    return %c0_i32, %c0_i32_0 : i32, i32
  }
  func.func @transform_2(%arg0: i32) -> (i32, i32) {
    %c0_i32 = arith.constant 0 : i32
    %c0_i32_0 = arith.constant 0 : i32
    %c0_i32_1 = arith.constant 0 : i32
    return %c0_i32, %c0_i32_0 : i32, i32
  }
  func.func @transform_3(%arg0: i32) -> (i32, i32) {
    %c0_i32 = arith.constant 0 : i32
    %c0_i32_0 = arith.constant 0 : i32
    %c0_i32_1 = arith.constant 0 : i32
    return %c0_i32, %c0_i32_0 : i32, i32
  }
  func.func @transform_4(%arg0: i32) -> (i32, i32, i32) {
    %c0_i32 = arith.constant 0 : i32
    %c0_i32_0 = arith.constant 0 : i32
    %c0_i32_1 = arith.constant 0 : i32
    %c0_i32_2 = arith.constant 0 : i32
    return %c0_i32, %c0_i32_0, %c0_i32_1 : i32, i32, i32
  }
  func.func @transform_5(%arg0: i32) -> (i32, i32, i32) {
    %c0_i32 = arith.constant 0 : i32
    %c0_i32_0 = arith.constant 0 : i32
    %c0_i32_1 = arith.constant 0 : i32
    %c0_i32_2 = arith.constant 0 : i32
    return %c0_i32, %c0_i32_0, %c0_i32_1 : i32, i32, i32
  }
  func.func @transform_6(%arg0: i32) -> (i32, i32, i32) {
    %c0_i32 = arith.constant 0 : i32
    %c0_i32_0 = arith.constant 0 : i32
    %c0_i32_1 = arith.constant 0 : i32
    %c0_i32_2 = arith.constant 0 : i32
    return %c0_i32, %c0_i32_0, %c0_i32_1 : i32, i32, i32
  }
  func.func @transform_7(%arg0: i32) -> (i32, i32) {
    %c0_i32 = arith.constant 0 : i32
    %c0_i32_0 = arith.constant 0 : i32
    %c0_i32_1 = arith.constant 0 : i32
    return %c0_i32, %c0_i32_0 : i32, i32
  }
  func.func @transform_8(%arg0: i32) -> i32 {
    %c0_i32 = arith.constant 0 : i32
    %c0_i32_0 = arith.constant 0 : i32
    return %c0_i32 : i32
  }
  func.func @transform_9(%arg0: i32) -> (i32, i32, i32) {
    %c0_i32 = arith.constant 0 : i32
    %c0_i32_0 = arith.constant 0 : i32
    %c0_i32_1 = arith.constant 0 : i32
    return %arg0, %c0_i32, %c0_i32_0 : i32, i32, i32
  }
  func.func @transform_10(%arg0: i32) -> (i32, i32, i32) {
    %c0_i32 = arith.constant 0 : i32
    %c0_i32_0 = arith.constant 0 : i32
    %c0_i32_1 = arith.constant 0 : i32
    return %arg0, %c0_i32, %c0_i32_0 : i32, i32, i32
  }
}

</mosaic_0001>

<llo_original>
// kernel: forward.1
$region0: #{forward.1}
  #allocation0 [shape = 'u32[]', space=smem, size = 0x4, offset = 0x4, fixed_abs, tag = 'smem constant byte address 0x4 - core index']
  #allocation1 [shape = 'u32[144,128]{1,0:T(1,128)}', space=vmem, size = 0x12000, scoped, tag = 'internal scratch']
  %s0 = inlined_call_operand.vmem [shape: f32[2,32,8], index: 0, kind: input, shape index: {}]
  %s1 = inlined_call_operand.vmem [shape: f32[32,256], index: 1, kind: input, shape index: {}]
  %s2 = inlined_call_operand.vmem [shape: bf16[8,128], index: 2, kind: input, shape index: {}]
  %s3 = inlined_call_operand.vmem [shape: f32[1,640], index: 3, kind: input, shape index: {}]
  %s4 = inlined_call_operand.hbm [shape: bf16[2,128,640], index: 4, kind: input, shape index: {}]
  %s5 = inlined_call_operand.vmem [shape: bf16[2,128,128], index: 5, kind: input, shape index: {}]
  %s6 = inlined_call_operand.hbm [shape: f32[2,1,1280], index: 6, kind: input, shape index: {}]
  %s7 = inlined_call_operand.hbm [shape: bf16[128,256], index: 7, kind: input, shape index: {}]
  %s8 = inlined_call_operand.vmem [shape: f32[40], index: 8, kind: input, shape index: {}]
  %s9 = inlined_call_operand.hbm [shape: f32[2,4,128], index: 9, kind: output, shape index: {0}]
  %s10 = inlined_call_operand.vmem [shape: f32[2,1,128], index: 10, kind: output, shape index: {1}]
  %11 = xla_tuple %s9, %s10
  %s12 = sld [smem:[#allocation0]]
  $region93: #{forward.1} parent=0
    _
  %s14 = ssub.s32 1, %s12
  %s15 = scalar_select 0, %s14, %s12
  $region1: #{forward.1} parent=0
    #allocation2 [shape = 'u8[327680]{0}', space=vmem, size = 0x50000, scoped, tag = 'input window, operand 4, single buffered']
    #allocation3 [shape = 's32[2]{0}', space=sflag, size = 0x8, scoped, tag = 'scoped memory for forward.1']
    #allocation4 [shape = 's32[2]{0}', space=sflag, size = 0x8, scoped, tag = 'scoped memory for forward.1']
    #allocation5 [shape = 's32[2]{0}', space=sflag, size = 0x8, scoped, tag = 'scoped memory for forward.1']
    #allocation6 [shape = 'u8[10240]{0}', space=vmem, size = 0x2800, scoped, tag = 'input window, operand 6, single buffered']
    #allocation7 [shape = 's32[1]{0}', space=sflag, size = 0x4, scoped, tag = 'scoped memory for forward.1']
    #allocation8 [shape = 'u8[65536]{0}', space=vmem, size = 0x10000, scoped, tag = 'input window, operand 7, single buffered']
    #allocation9 [shape = 'u8[512]{0}', space=smem, size = 0x200, scoped, tag = 'input window, operand 8, single buffered']
    #allocation10 [shape = 'u8[4096]{0}', space=vmem, size = 0x1000, scoped, tag = 'output window, operand 0']
    %16 = vsyncpa [#allocation3], 0
    %17 = vsyncpa [#allocation7], 0
    %18 = vsyncpa [#allocation5], 0
    %19 = vsyncpa [#allocation4], 0
    %s20 = scalar_lea.sflag [#allocation4], 1
    %21 = vsyncpa %s20, 0
    loop: start=0, step=1, limit=4
    $region2: #{forward.1} parent=1 // loop_pre_header
      _
    $region3: #{forward.1} parent=1 // loop_header
      %s23 = sphi 0, %s27
      %p24 = scmp.ge.s32.totalorder %s23, 4
      %s33 = sphi 0, %s35
      %s36 = sphi 0, %s33
      %s37 = sphi 0, %s36
      %s53 = sphi 0, %s37
      %s57 = sphi 0, %s57
      %s59 = sphi 0, %s57
      %s60 = sphi 0, %s59
      %s74 = sphi 0, %s60
      %s78 = sphi 0, %s78
      %s80 = sphi 0, %s78
      %s81 = sphi 0, %s80
      %s95 = sphi 0, %s81
      %s99 = sphi 0, %s99
      %s101 = sphi 0, %s99
      %s102 = sphi 0, %s101
      %s116 = sphi 0, %s102
      %s120 = sphi 0, %s120
      %s122 = sphi 0, %s120
      %s123 = sphi 0, %s122
      %s137 = sphi 0, %s123
      %s141 = sphi 0, %s141
      %s143 = sphi 0, %s141
      %s144 = sphi 0, %s143
      %s158 = sphi 0, %s144
      %s162 = sphi 0, %s162
      %s164 = sphi 0, %s162
      %s165 = sphi 0, %s164
      %s179 = sphi 0, %s165
      %s183 = sphi 0, %s183
      %s185 = sphi 0, %s183
      %s186 = sphi 0, %s185
      %s200 = sphi 0, %s186
      %s204 = sphi 0, %s204
      %s206 = sphi 0, %s204
      %s207 = sphi 0, %s206
      %s221 = sphi 0, %s207
      %s227 = sphi 0, %s229
      %s230 = sphi 0, %s227
      %s231 = sphi 0, %s230
      %s247 = sphi 0, %s231
      %s253 = sphi 0, %s255
      %s256 = sphi 0, %s253
      %s257 = sphi 0, %s256
      %s273 = sphi 0, %s257
    $region4: #{forward.1} parent=1 // loop_header_branch
      %26 = sbr.rel (%p24) target = $region8
    $region5: #{forward.1} parent=1 // loop_body
      %s28 = ssub.s32 %s23, 1
      %s29 = ssub.s32 %s23, 2
      %s30 = sadd.s32 %s23, 1
      %s31 = ssub.s32 %s23, %s30
      %p32 = scmp.eq.s32.totalorder %s31, 0
      %s34 = sadd.s32 %s33, 1
      %s35 = scalar_select %p32, %s33, %s34
      %p38 = pneg %p32
      %p39 = scmp.eq.s32.totalorder %s23, 1
      %p40 = por %p38, %p39
      %p41 = scmp.ne.s32.totalorder %s33, %s36
      %p42 = scmp.eq.s32.totalorder %s23, 0
      %p43 = por %p41, %p42
      %p44 = scmp.ne.s32.totalorder %s33, %s36
      %p45 = scmp.eq.s32.totalorder %s28, 1
      %p46 = por %p44, %p45
      %p47 = scmp.ne.s32.totalorder %s36, %s37
      %p48 = scmp.eq.s32.totalorder %s28, 0
      %p49 = por %p47, %p48
      %p50 = scmp.ne.s32.totalorder %s36, %s37
      %p51 = scmp.eq.s32.totalorder %s29, 1
      %p52 = por %p50, %p51
      %p54 = scmp.ne.s32.totalorder %s37, %s53
      %p55 = scmp.eq.s32.totalorder %s29, 0
      %p56 = por %p54, %p55
      %s58 = sadd.s32 %s57, 1
      %p61 = scmp.eq.s32.totalorder %s23, 1
      %p62 = scmp.ne.s32.totalorder %s57, %s59
      %p63 = scmp.eq.s32.totalorder %s23, 0
      %p64 = por %p62, %p63
      %p65 = scmp.ne.s32.totalorder %s57, %s59
      %p66 = scmp.eq.s32.totalorder %s28, 1
      %p67 = por %p65, %p66
      %p68 = scmp.ne.s32.totalorder %s59, %s60
      %p69 = scmp.eq.s32.totalorder %s28, 0
      %p70 = por %p68, %p69
      %p71 = scmp.ne.s32.totalorder %s59, %s60
      %p72 = scmp.eq.s32.totalorder %s29, 1
      %p73 = por %p71, %p72
      %p75 = scmp.ne.s32.totalorder %s60, %s74
      %p76 = scmp.eq.s32.totalorder %s29, 0
      %p77 = por %p75, %p76
      %s79 = sadd.s32 %s78, 1
      %p82 = scmp.eq.s32.totalorder %s23, 1
      %p83 = scmp.ne.s32.totalorder %s78, %s80
      %p84 = scmp.eq.s32.totalorder %s23, 0
      %p85 = por %p83, %p84
      %p86 = scmp.ne.s32.totalorder %s78, %s80
      %p87 = scmp.eq.s32.totalorder %s28, 1
      %p88 = por %p86, %p87
      %p89 = scmp.ne.s32.totalorder %s80, %s81
      %p90 = scmp.eq.s32.totalorder %s28, 0
      %p91 = por %p89, %p90
      %p92 = scmp.ne.s32.totalorder %s80, %s81
      %p93 = scmp.eq.s32.totalorder %s29, 1
      %p94 = por %p92, %p93
      %p96 = scmp.ne.s32.totalorder %s81, %s95
      %p97 = scmp.eq.s32.totalorder %s29, 0
      %p98 = por %p96, %p97
      %s100 = sadd.s32 %s99, 1
      %p103 = scmp.eq.s32.totalorder %s23, 1
      %p104 = scmp.ne.s32.totalorder %s99, %s101
      %p105 = scmp.eq.s32.totalorder %s23, 0
      %p106 = por %p104, %p105
      %p107 = scmp.ne.s32.totalorder %s99, %s101
      %p108 = scmp.eq.s32.totalorder %s28, 1
      %p109 = por %p107, %p108
      %p110 = scmp.ne.s32.totalorder %s101, %s102
      %p111 = scmp.eq.s32.totalorder %s28, 0
      %p112 = por %p110, %p111
      %p113 = scmp.ne.s32.totalorder %s101, %s102
      %p114 = scmp.eq.s32.totalorder %s29, 1
      %p115 = por %p113, %p114
      %p117 = scmp.ne.s32.totalorder %s102, %s116
      %p118 = scmp.eq.s32.totalorder %s29, 0
      %p119 = por %p117, %p118
      %s121 = sadd.s32 %s120, 1
      %p124 = scmp.eq.s32.totalorder %s23, 1
      %p125 = scmp.ne.s32.totalorder %s120, %s122
      %p126 = scmp.eq.s32.totalorder %s23, 0
      %p127 = por %p125, %p126
      %p128 = scmp.ne.s32.totalorder %s120, %s122
      %p129 = scmp.eq.s32.totalorder %s28, 1
      %p130 = por %p128, %p129
      %p131 = scmp.ne.s32.totalorder %s122, %s123
      %p132 = scmp.eq.s32.totalorder %s28, 0
      %p133 = por %p131, %p132
      %p134 = scmp.ne.s32.totalorder %s122, %s123
      %p135 = scmp.eq.s32.totalorder %s29, 1
      %p136 = por %p134, %p135
      %p138 = scmp.ne.s32.totalorder %s123, %s137
      %p139 = scmp.eq.s32.totalorder %s29, 0
      %p140 = por %p138, %p139
      %s142 = sadd.s32 %s141, 1
      %p145 = scmp.eq.s32.totalorder %s23, 1
      %p146 = scmp.ne.s32.totalorder %s141, %s143
      %p147 = scmp.eq.s32.totalorder %s23, 0
      %p148 = por %p146, %p147
      %p149 = scmp.ne.s32.totalorder %s141, %s143
      %p150 = scmp.eq.s32.totalorder %s28, 1
      %p151 = por %p149, %p150
      %p152 = scmp.ne.s32.totalorder %s143, %s144
      %p153 = scmp.eq.s32.totalorder %s28, 0
      %p154 = por %p152, %p153
      %p155 = scmp.ne.s32.totalorder %s143, %s144
      %p156 = scmp.eq.s32.totalorder %s29, 1
      %p157 = por %p155, %p156
      %p159 = scmp.ne.s32.totalorder %s144, %s158
      %p160 = scmp.eq.s32.totalorder %s29, 0
      %p161 = por %p159, %p160
      %s163 = sadd.s32 %s162, 1
      %p166 = scmp.eq.s32.totalorder %s23, 1
      %p167 = scmp.ne.s32.totalorder %s162, %s164
      %p168 = scmp.eq.s32.totalorder %s23, 0
      %p169 = por %p167, %p168
      %p170 = scmp.ne.s32.totalorder %s162, %s164
      %p171 = scmp.eq.s32.totalorder %s28, 1
      %p172 = por %p170, %p171
      %p173 = scmp.ne.s32.totalorder %s164, %s165
      %p174 = scmp.eq.s32.totalorder %s28, 0
      %p175 = por %p173, %p174
      %p176 = scmp.ne.s32.totalorder %s164, %s165
      %p177 = scmp.eq.s32.totalorder %s29, 1
      %p178 = por %p176, %p177
      %p180 = scmp.ne.s32.totalorder %s165, %s179
      %p181 = scmp.eq.s32.totalorder %s29, 0
      %p182 = por %p180, %p181
      %s184 = sadd.s32 %s183, 1
      %p187 = scmp.eq.s32.totalorder %s23, 1
      %p188 = scmp.ne.s32.totalorder %s183, %s185
      %p189 = scmp.eq.s32.totalorder %s23, 0
      %p190 = por %p188, %p189
      %p191 = scmp.ne.s32.totalorder %s183, %s185
      %p192 = scmp.eq.s32.totalorder %s28, 1
      %p193 = por %p191, %p192
      %p194 = scmp.ne.s32.totalorder %s185, %s186
      %p195 = scmp.eq.s32.totalorder %s28, 0
      %p196 = por %p194, %p195
      %p197 = scmp.ne.s32.totalorder %s185, %s186
      %p198 = scmp.eq.s32.totalorder %s29, 1
      %p199 = por %p197, %p198
      %p201 = scmp.ne.s32.totalorder %s186, %s200
      %p202 = scmp.eq.s32.totalorder %s29, 0
      %p203 = por %p201, %p202
      %s205 = sadd.s32 %s204, 1
      %p208 = scmp.eq.s32.totalorder %s23, 1
      %p209 = scmp.ne.s32.totalorder %s204, %s206
      %p210 = scmp.eq.s32.totalorder %s23, 0
      %p211 = por %p209, %p210
      %p212 = scmp.ne.s32.totalorder %s204, %s206
      %p213 = scmp.eq.s32.totalorder %s28, 1
      %p214 = por %p212, %p213
      %p215 = scmp.ne.s32.totalorder %s206, %s207
      %p216 = scmp.eq.s32.totalorder %s28, 0
      %p217 = por %p215, %p216
      %p218 = scmp.ne.s32.totalorder %s206, %s207
      %p219 = scmp.eq.s32.totalorder %s29, 1
      %p220 = por %p218, %p219
      %p222 = scmp.ne.s32.totalorder %s207, %s221
      %p223 = scmp.eq.s32.totalorder %s29, 0
      %p224 = por %p222, %p223
      %s225 = ssub.s32 %s23, %s30
      %p226 = scmp.eq.s32.totalorder %s225, 0
      %s228 = sadd.s32 %s227, 1
      %s229 = scalar_select %p226, %s227, %s228
      %p232 = pneg %p226
      %p233 = scmp.eq.s32.totalorder %s23, 1
      %p234 = por %p232, %p233
      %p235 = scmp.ne.s32.totalorder %s227, %s230
      %p236 = scmp.eq.s32.totalorder %s23, 0
      %p237 = por %p235, %p236
      %p238 = scmp.ne.s32.totalorder %s227, %s230
      %p239 = scmp.eq.s32.totalorder %s28, 1
      %p240 = por %p238, %p239
      %p241 = scmp.ne.s32.totalorder %s230, %s231
      %p242 = scmp.eq.s32.totalorder %s28, 0
      %p243 = por %p241, %p242
      %p244 = scmp.ne.s32.totalorder %s230, %s231
      %p245 = scmp.eq.s32.totalorder %s29, 1
      %p246 = por %p244, %p245
      %p248 = scmp.ne.s32.totalorder %s231, %s247
      %p249 = scmp.eq.s32.totalorder %s29, 0
      %p250 = por %p248, %p249
      %s251 = ssub.s32 %s23, %s30
      %p252 = scmp.eq.s32.totalorder %s251, 0
      %s254 = sadd.s32 %s253, 1
      %s255 = scalar_select %p252, %s253, %s254
      %p258 = pneg %p252
      %p259 = scmp.eq.s32.totalorder %s23, 1
      %p260 = por %p258, %p259
      %p261 = scmp.ne.s32.totalorder %s253, %s256
      %p262 = scmp.eq.s32.totalorder %s23, 0
      %p263 = por %p261, %p262
      %p264 = scmp.ne.s32.totalorder %s253, %s256
      %p265 = scmp.eq.s32.totalorder %s28, 1
      %p266 = por %p264, %p265
      %p267 = scmp.ne.s32.totalorder %s256, %s257
      %p268 = scmp.eq.s32.totalorder %s28, 0
      %p269 = por %p267, %p268
      %p270 = scmp.ne.s32.totalorder %s256, %s257
      %p271 = scmp.eq.s32.totalorder %s29, 1
      %p272 = por %p270, %p271
      %p274 = scmp.ne.s32.totalorder %s257, %s273
      %p275 = scmp.eq.s32.totalorder %s29, 0
      %p276 = por %p274, %p275
      %p277 = scmp.le.s32.totalorder 1, %s23
      %p278 = scmp.lt.s32.totalorder %s23, 3
      %p279 = pnand %p277, %p278
      %p280 = pneg %p279
      // Predicated region
      $region9: #{forward.1} parent=5 // pred_check
        _
      $region10: #{forward.1} parent=5 // pred_check_branch
        %282 = sbr.rel (%p279) target = $region12
      $region11: #{forward.1} parent=5 // pred_region
        %s283 = ssub.s32 %s23, 1
        // Predicated region
        $region13: #{forward.1} parent=11 // pred_check
          %p284 = pneg %p70
        $region14: #{forward.1} parent=11 // pred_check_branch
          %286 = sbr.rel (%p284) target = $region16
        $region15: #{forward.1} parent=11 // pred_region
          _
        $region16: #{forward.1} parent=11 // pred_fallthru
          _
        // Predicated region
        $region17: #{forward.1} parent=11 // pred_check
          %p287 = pneg %p91
        $region18: #{forward.1} parent=11 // pred_check_branch
          %289 = sbr.rel (%p287) target = $region20
        $region19: #{forward.1} parent=11 // pred_region
          _
        $region20: #{forward.1} parent=11 // pred_fallthru
          _
        // Predicated region
        $region21: #{forward.1} parent=11 // pred_check
          %p290 = pneg %p112
        $region22: #{forward.1} parent=11 // pred_check_branch
          %292 = sbr.rel (%p290) target = $region24
        $region23: #{forward.1} parent=11 // pred_region
          _
        $region24: #{forward.1} parent=11 // pred_fallthru
          _
        // Predicated region
        $region25: #{forward.1} parent=11 // pred_check
          %p293 = pneg %p133
        $region26: #{forward.1} parent=11 // pred_check_branch
          %295 = sbr.rel (%p293) target = $region28
        $region27: #{forward.1} parent=11 // pred_region
          %s297 = ssub.s32 10240, 10240
          %298 = vsyncadd [#allocation3], %s297
          %s299 = sshll.u32 [#allocation2], 4
          %s300 = int_to_ptr.vmem [resolvable:$true] %s299
          %305 = dma.hbm_to_vmem [thread:$0]  %s4, 10240, %s300, [#allocation3], 320, 320, 20
        $region28: #{forward.1} parent=11 // pred_fallthru
          _
        // Predicated region
        $region29: #{forward.1} parent=11 // pred_check
          %p306 = pneg %p154
        $region30: #{forward.1} parent=11 // pred_check_branch
          %308 = sbr.rel (%p306) target = $region32
        $region31: #{forward.1} parent=11 // pred_region
          _
        $region32: #{forward.1} parent=11 // pred_fallthru
          _
        // Predicated region
        $region33: #{forward.1} parent=11 // pred_check
          %p309 = pneg %p175
        $region34: #{forward.1} parent=11 // pred_check_branch
          %311 = sbr.rel (%p309) target = $region36
        $region35: #{forward.1} parent=11 // pred_region
          %s313 = ssub.s32 320, 320
          %314 = vsyncadd [#allocation7], %s313
          %s315 = sshll.u32 [#allocation6], 4
          %s316 = int_to_ptr.vmem [resolvable:$true] %s315
          %321 = dma.hbm_to_vmem [thread:$0]  %s6, 320, %s316, [#allocation7], 160, 160, 10
        $region36: #{forward.1} parent=11 // pred_fallthru
          _
        // Predicated region
        $region37: #{forward.1} parent=11 // pred_check
          %p322 = pneg %p196
        $region38: #{forward.1} parent=11 // pred_check_branch
          %324 = sbr.rel (%p322) target = $region40
        $region39: #{forward.1} parent=11 // pred_region
          %s326 = ssub.s32 2048, 2048
          %327 = vsyncadd [#allocation7], %s326
          %s328 = sshll.u32 [#allocation8], 4
          %s329 = int_to_ptr.vmem [resolvable:$true] %s328
          %334 = dma.hbm_to_vmem [thread:$0]  %s7, 2048, %s329, [#allocation7], 128, 128, 8
        $region40: #{forward.1} parent=11 // pred_fallthru
          _
        // Predicated region
        $region41: #{forward.1} parent=11 // pred_check
          %p335 = pneg %p217
        $region42: #{forward.1} parent=11 // pred_check_branch
          %337 = sbr.rel (%p335) target = $region44
        $region43: #{forward.1} parent=11 // pred_region
          %s339 = ssub.s32 16, 16
          %340 = vsyncadd [#allocation5], %s339
          %s342 = sshll.u32 %s8, 4
          %s343 = int_to_ptr.vmem [resolvable:$true] %s342
          %345 = dma.vmem_to_smem %s343, 16, [#allocation9], [#allocation5]
        $region44: #{forward.1} parent=11 // pred_fallthru
          _
      $region12: #{forward.1} parent=5 // pred_fallthru
        _
      %p346 = scmp.lt.s32.totalorder %s23, 2
      // Predicated region
      $region45: #{forward.1} parent=5 // pred_check
        %p347 = pneg %p346
      $region46: #{forward.1} parent=5 // pred_check_branch
        %349 = sbr.rel (%p347) target = $region48
      $region47: #{forward.1} parent=5 // pred_region
        // Predicated region
        $region49: #{forward.1} parent=47 // pred_check
          %p350 = pneg %p43
        $region50: #{forward.1} parent=47 // pred_check_branch
          %352 = sbr.rel (%p350) target = $region52
        $region51: #{forward.1} parent=47 // pred_region
          %p353 = scmp.lt.s32.totalorder %s23, 1
          %s354 = scalar_select %p353, %s23, 1
          %s355 = smul.addr %s354, 4
          %s356 = smul.addr %s355, 8
          %s357 = scalar_lea.vmem %s0, %s356
        $region52: #{forward.1} parent=47 // pred_fallthru
          _
      $region48: #{forward.1} parent=5 // pred_fallthru
        _
      %p358 = scmp.le.s32.totalorder 1, %s23
      %p359 = scmp.lt.s32.totalorder %s23, 3
      %p360 = pnand %p358, %p359
      %p361 = pneg %p360
      // Predicated region
      $region53: #{forward.1} parent=5 // pred_check
        _
      $region54: #{forward.1} parent=5 // pred_check_branch
        %363 = sbr.rel (%p360) target = $region56
      $region55: #{forward.1} parent=5 // pred_region
        %s364 = ssub.s32 %s23, 1
        // Predicated region
        $region57: #{forward.1} parent=55 // pred_check
          %p365 = pneg %p133
        $region58: #{forward.1} parent=55 // pred_check_branch
          %367 = sbr.rel (%p365) target = $region60
        $region59: #{forward.1} parent=55 // pred_region
          %368 = dma.done [#allocation3], 10240
        $region60: #{forward.1} parent=55 // pred_fallthru
          _
        // Predicated region
        $region61: #{forward.1} parent=55 // pred_check
          %p369 = pneg %p175
        $region62: #{forward.1} parent=55 // pred_check_branch
          %371 = sbr.rel (%p369) target = $region64
        $region63: #{forward.1} parent=55 // pred_region
          %372 = dma.done [#allocation7], 320
        $region64: #{forward.1} parent=55 // pred_fallthru
          _
        // Predicated region
        $region65: #{forward.1} parent=55 // pred_check
          %p373 = pneg %p196
        $region66: #{forward.1} parent=55 // pred_check_branch
          %375 = sbr.rel (%p373) target = $region68
        $region67: #{forward.1} parent=55 // pred_region
          %376 = dma.done [#allocation7], 2048
        $region68: #{forward.1} parent=55 // pred_fallthru
          _
        // Predicated region
        $region69: #{forward.1} parent=55 // pred_check
          %p377 = pneg %p217
        $region70: #{forward.1} parent=55 // pred_check_branch
          %379 = sbr.rel (%p377) target = $region72
        $region71: #{forward.1} parent=55 // pred_region
          %380 = dma.done [#allocation5], 16
        $region72: #{forward.1} parent=55 // pred_fallthru
          _
        %381 = sfence
        %p382 = scmp.lt.s32.totalorder %s28, 1
        %s383 = scalar_select %p382, %s28, 1
        %s384 = smul.addr %s383, 4
        %s385 = smul.addr %s384, 8
        %s386 = scalar_lea.vmem %s0, %s385
        %p387 = pneg %p49
        %p388 = pneg %p46
        %p389 = pneg %p70
        %p390 = pneg %p67
        %p391 = pneg %p91
        %p392 = pneg %p88
        %p393 = pneg %p112
        %p394 = pneg %p109
        %p395 = pneg %p133
        %p396 = pneg %p130
        %p397 = pneg %p154
        %p398 = pneg %p151
        %p399 = pneg %p175
        %p400 = pneg %p172
        %p401 = pneg %p196
        %p402 = pneg %p193
        %p403 = pneg %p217
        %p404 = pneg %p214
        %p405 = pneg %p243
        %p406 = pneg %p240
        %s407 = sand.u32 %s230, 1
        %s408 = scalar_lea.sflag [#allocation4], %s407
        %s409 = sand.u32 %s230, 1
        %s410 = smul.addr %s409, 4
        %s411 = scalar_lea.vmem [#allocation10], %s410
        %p412 = pneg %p269
        %p413 = pneg %p266
        %p414 = scmp.lt.s32.totalorder %s28, 1
        %s415 = scalar_select %p414, %s28, 1
        %s416 = scalar_lea.vmem %s10, %s415
        %p417 = scmp.lt.s32.totalorder %s28, 1
        %s418 = scalar_select %p417, %s28, 1
        %s419 = smul.addr %s418, 4
        %s420 = smul.addr %s419, 8
        %s421 = scalar_lea.vmem %s0, %s420
        %p422 = scmp.lt.s32.totalorder %s28, 1
        %s423 = scalar_select %p422, %s28, 1
        %s424 = scalar_lea.vmem %s10, %s423
        %v426 = vld [vmem:[%s421] sm:$0xff]
        %v427 = vld [vmem:[%s421 + $0x8] sm:$0xff]
        %v428 = vld [vmem:[%s421 + $0x10] sm:$0xff]
        %v429 = vld [vmem:[%s421 + $0x18] sm:$0xff]
        %v430 = vpack.c.bf16 %v427, %v426
        %v431 = vpack.c.bf16 %v429, %v428
        %v432 = vld [vmem:[%s2] sm:$0xf]
        %v433 = vld [vmem:[%s3] sm:$0x1]
        %v435 = vlaneseq
        %v436 = vshrl.u32 %v435, 7
        %v437 = vsub.s32 0, %v436
        %v438 = vrot.slane %v433, %v437
        %vm440 = vcmask 64512
        %v442 = vsel %vm440, %v430, 0
        %v445 = vsel %vm440, %v431, 0
        %vm447 = vcmask 1043456
        %v449 = vsel %vm447, %v432, 0
        %451 = vmatprep.subr.bf16.mxu0 0
        %452 = vmatpush1.bf16.msra.mxu0 0
        %453 = vmatprep.subr.bf16.mxu0 0
        %454 = vmatpush1.bf16.msra.mxu0 0
        %455 = vmatprep.subr.bf16.mxu0 0
        %456 = vmatpush1.bf16.msra.mxu0 0
        %457 = vmatprep.subr.bf16.mxu0 0
        %458 = vmatpush1.bf16.msra.mxu0 0
        %459 = vmatprep.subr.bf16.mxu0 0
        %460 = vmatpush1.bf16.msra.mxu0 0
        %461 = vmatprep.subr.bf16.mxu0 0
        %462 = vmatpush1.bf16.msra.mxu0 0
        %463 = vmatprep.subr.bf16.mxu0 0
        %464 = vmatpush1.bf16.msra.mxu0 0
        %465 = vmatprep.subr.bf16.mxu0 0
        %466 = vmatpush1.bf16.msra.mxu0 %v449
        %467 = vmatprep.subr.bf16.mxu0 0
        %468 = vmatpush2.bf16.msra.mxu0 0
        %469 = vmatprep.subr.bf16.mxu0 0
        %470 = vmatpush2.bf16.msra.mxu0 0
        %471 = vmatprep.subr.bf16.mxu0 0
        %472 = vmatpush2.bf16.msra.mxu0 0
        %473 = vmatprep.subr.bf16.mxu0 0
        %474 = vmatpush2.bf16.msra.mxu0 0
        %475 = vmatprep.subr.bf16.mxu0 0
        %476 = vmatpush2.bf16.msra.mxu0 0
        %477 = vmatprep.subr.bf16.mxu0 0
        %478 = vmatpush2.bf16.msra.mxu0 0
        %479 = vmatprep.subr.bf16.mxu0 0
        %480 = vmatpush2.bf16.msra.mxu0 0
        %481 = vmatprep.subr.bf16.mxu0 0
        %482 = vmatpush2.bf16.msra.mxu0 0
        %483 = vmatprep.mubr.bf16.mxu0 0
        %484 = vmatmul.mubr.bf16.gmra.mxu0 %v442
        %v485 = vpop.f32.mrf.mxu0
        %v486 = vadd.f32 %v438, %v485
        %v487 = vpop.f32.mrf.mxu0
        %v488 = vpop.f32.mrf.mxu0
        %v489 = vadd.f32 %v438, %v488
        %v490 = vpop.f32.mrf.mxu0
        %491 = vmatprep.mubr.bf16.mxu0 0
        %492 = vmatmul.mubr.bf16.gmra.mxu0 %v445
        %v493 = vpop.f32.mrf.mxu0
        %v494 = vadd.f32 %v438, %v493
        %v495 = vpop.f32.mrf.mxu0
        %v496 = vpop.f32.mrf.mxu0
        %v497 = vadd.f32 %v438, %v496
        %v498 = vpop.f32.mrf.mxu0
        %499 = vdwg.mxu0
        %v500 = vmax.f32 %v486, 0.0
        %v501 = vmax.f32 %v489, 0.0
        %v502 = vmax.f32 %v494, 0.0
        %v503 = vmax.f32 %v497, 0.0
        %v504 = vld [vmem:[%s3 + $0x1] sm:$0x1]
        %v505 = vld [vmem:[%s3 + $0x2] sm:$0x1]
        %506 = vadd.xlane.f32.xlu0 %v500
        %v507 = vpop.xlane.xlu0 %506
        %508 = vadd.xlane.f32.xlu0 %v501
        %v509 = vpop.xlane.xlu0 %508
        %510 = vadd.xlane.f32.xlu0 %v502
        %v511 = vpop.xlane.xlu0 %510
        %512 = vadd.xlane.f32.xlu0 %v503
        %v513 = vpop.xlane.xlu0 %512
        %v514 = vrcp.pop 128.0
        %v515 = vmul.f32 %v507, %v514
        %v516 = vmul.f32 %v509, %v514
        %v517 = vmul.f32 %v511, %v514
        %v518 = vmul.f32 %v513, %v514
        %v519 = vsub.f32 %v500, %v515
        %v520 = vsub.f32 %v501, %v516
        %v521 = vsub.f32 %v502, %v517
        %v522 = vsub.f32 %v503, %v518
        %v523 = vmul.f32 %v519, %v519
        %v524 = vmul.f32 %v520, %v520
        %v525 = vmul.f32 %v521, %v521
        %v526 = vmul.f32 %v522, %v522
        %527 = vadd.xlane.f32.xlu0 %v523
        %v528 = vpop.xlane.xlu0 %527
        %529 = vadd.xlane.f32.xlu0 %v524
        %v530 = vpop.xlane.xlu0 %529
        %531 = vadd.xlane.f32.xlu0 %v525
        %v532 = vpop.xlane.xlu0 %531
        %533 = vadd.xlane.f32.xlu0 %v526
        %v534 = vpop.xlane.xlu0 %533
        %v535 = vmul.f32 %v528, %v514
        %v536 = vmul.f32 %v530, %v514
        %v537 = vmul.f32 %v532, %v514
        %v538 = vmul.f32 %v534, %v514
        %v539 = vadd.f32 %v535, 1e-05
        %v540 = vadd.f32 %v536, 1e-05
        %v541 = vadd.f32 %v537, 1e-05
        %v542 = vadd.f32 %v538, 1e-05
        %v543 = vrsqrt.pop %v539
        %v544 = vrsqrt.pop %v540
        %v545 = vrsqrt.pop %v541
        %v546 = vrsqrt.pop %v542
        %v547 = vmul.f32 %v519, %v543
        %v548 = vmul.f32 %v520, %v544
        %v549 = vmul.f32 %v521, %v545
        %v550 = vmul.f32 %v522, %v546
        %v552 = vlaneseq
        %v553 = vshrl.u32 %v552, 7
        %v554 = vsub.s32 0, %v553
        %v555 = vrot.slane %v504, %v554
        %v557 = vmul.f32 %v547, %v555
        %v558 = vmul.f32 %v548, %v555
        %v559 = vmul.f32 %v549, %v555
        %v560 = vmul.f32 %v550, %v555
        %v562 = vlaneseq
        %v563 = vshrl.u32 %v562, 7
        %v564 = vsub.s32 0, %v563
        %v565 = vrot.slane %v505, %v564
        %v567 = vadd.f32 %v557, %v565
        %v568 = vadd.f32 %v558, %v565
        %v569 = vadd.f32 %v559, %v565
        %v570 = vadd.f32 %v560, %v565
        %v571 = vld [vmem:[%s1] sm:$0xff]
        %v572 = vld [vmem:[%s1 + $0x10] sm:$0xff]
        %v573 = vld [vmem:[%s1 + $0x20] sm:$0xff]
        %v574 = vld [vmem:[%s1 + $0x30] sm:$0xff]
        %v575 = vld [vmem:[%s1 + $0x8] sm:$0xff]
        %v576 = vld [vmem:[%s1 + $0x18] sm:$0xff]
        %v577 = vld [vmem:[%s1 + $0x28] sm:$0xff]
        %v578 = vld [vmem:[%s1 + $0x38] sm:$0xff]
        %v579 = vmul.f32 %v567, %v575
        %v580 = vmul.f32 %v568, %v576
        %v581 = vmul.f32 %v569, %v577
        %v582 = vmul.f32 %v570, %v578
        %v583 = vadd.f32 %v571, %v579
        %v584 = vadd.f32 %v572, %v580
        %v585 = vadd.f32 %v573, %v581
        %v586 = vadd.f32 %v574, %v582
        %v587 = vpack.c.bf16 %v584, %v583
        %v588 = vpack.c.bf16 %v586, %v585
        %v589 = vld [vmem:[#allocation2] sm:$0xff]
        %v590 = vld [vmem:[#allocation2 + $0x8] sm:$0xf]
        %v591 = vld [vmem:[#allocation2 + $0x14] sm:$0xff]
        %v592 = vld [vmem:[#allocation2 + $0x1c] sm:$0xf]
        %v593 = vld [vmem:[#allocation2 + $0x28] sm:$0xff]
        %v594 = vld [vmem:[#allocation2 + $0x30] sm:$0xf]
        %v595 = vld [vmem:[#allocation2 + $0x3c] sm:$0xff]
        %v596 = vld [vmem:[#allocation2 + $0x44] sm:$0xf]
        %v597 = vld [vmem:[#allocation2 + $0x50] sm:$0xff]
        %v598 = vld [vmem:[#allocation2 + $0x58] sm:$0xf]
        %v599 = vld [vmem:[#allocation2 + $0x64] sm:$0xff]
        %v600 = vld [vmem:[#allocation2 + $0x6c] sm:$0xf]
        %v601 = vld [vmem:[#allocation2 + $0x78] sm:$0xff]
        %v602 = vld [vmem:[#allocation2 + $0x80] sm:$0xf]
        %v603 = vld [vmem:[#allocation2 + $0x8c] sm:$0xff]
        %v604 = vld [vmem:[#allocation2 + $0x94] sm:$0xf]
        %v605 = vld [vmem:[#allocation2 + $0xa0] sm:$0xff]
        %v606 = vld [vmem:[#allocation2 + $0xa8] sm:$0xf]
        %v607 = vld [vmem:[#allocation2 + $0xb4] sm:$0xff]
        %v608 = vld [vmem:[#allocation2 + $0xbc] sm:$0xf]
        %v609 = vld [vmem:[#allocation2 + $0xc8] sm:$0xff]
        %v610 = vld [vmem:[#allocation2 + $0xd0] sm:$0xf]
        %v611 = vld [vmem:[#allocation2 + $0xdc] sm:$0xff]
        %v612 = vld [vmem:[#allocation2 + $0xe4] sm:$0xf]
        %v613 = vld [vmem:[#allocation2 + $0xf0] sm:$0xff]
        %v614 = vld [vmem:[#allocation2 + $0xf8] sm:$0xf]
        %v615 = vld [vmem:[#allocation2 + $0x104] sm:$0xff]
        %v616 = vld [vmem:[#allocation2 + $0x10c] sm:$0xf]
        %v617 = vld [vmem:[#allocation2 + $0x118] sm:$0xff]
        %v618 = vld [vmem:[#allocation2 + $0x120] sm:$0xf]
        %v619 = vld [vmem:[#allocation2 + $0x12c] sm:$0xff]
        %v620 = vld [vmem:[#allocation2 + $0x134] sm:$0xf]
        %v621 = vld [vmem:[#allocation6] sm:$0x7]
        %v623 = vlaneseq
        %v624 = vshrl.u32 %v623, 7
        %v625 = vsub.s32 0, %v624
        %v626 = vrot.slane %v621, %v625
        %v627 = vlaneseq
        %v628 = vshrl.u32 %v627, 7
        %v629 = vsub.s32 1, %v628
        %v630 = vrot.slane %v621, %v629
        %v631 = vlaneseq
        %v632 = vshrl.u32 %v631, 7
        %v633 = vsub.s32 2, %v632
        %v634 = vrot.slane %v621, %v633
        %v670 = vunpack.c.l.b16 %v589
        %v671 = vunpack.c.h.b16 %v589
        %v672 = vunpack.c.l.b16 %v590
        %v673 = vunpack.c.l.b16 %v591
        %v674 = vunpack.c.h.b16 %v591
        %v675 = vunpack.c.l.b16 %v592
        %v676 = vunpack.c.l.b16 %v593
        %v677 = vunpack.c.h.b16 %v593
        %v678 = vunpack.c.l.b16 %v594
        %v679 = vunpack.c.l.b16 %v595
        %v680 = vunpack.c.h.b16 %v595
        %v681 = vunpack.c.l.b16 %v596
        %v682 = vunpack.c.l.b16 %v597
        %v683 = vunpack.c.h.b16 %v597
        %v684 = vunpack.c.l.b16 %v598
        %v685 = vunpack.c.l.b16 %v599
        %v686 = vunpack.c.h.b16 %v599
        %v687 = vunpack.c.l.b16 %v600
        %v688 = vunpack.c.l.b16 %v601
        %v689 = vunpack.c.h.b16 %v601
        %v690 = vunpack.c.l.b16 %v602
        %v691 = vunpack.c.l.b16 %v603
        %v692 = vunpack.c.h.b16 %v603
        %v693 = vunpack.c.l.b16 %v604
        %v694 = vunpack.c.l.b16 %v605
        %v695 = vunpack.c.h.b16 %v605
        %v696 = vunpack.c.l.b16 %v606
        %v697 = vunpack.c.l.b16 %v607
        %v698 = vunpack.c.h.b16 %v607
        %v699 = vunpack.c.l.b16 %v608
        %v700 = vunpack.c.l.b16 %v609
        %v701 = vunpack.c.h.b16 %v609
        %v702 = vunpack.c.l.b16 %v610
        %v703 = vunpack.c.l.b16 %v611
        %v704 = vunpack.c.h.b16 %v611
        %v705 = vunpack.c.l.b16 %v612
        %v706 = vunpack.c.l.b16 %v613
        %v707 = vunpack.c.h.b16 %v613
        %v708 = vunpack.c.l.b16 %v614
        %v709 = vunpack.c.l.b16 %v615
        %v710 = vunpack.c.h.b16 %v615
        %v711 = vunpack.c.l.b16 %v616
        %v712 = vunpack.c.l.b16 %v617
        %v713 = vunpack.c.h.b16 %v617
        %v714 = vunpack.c.l.b16 %v618
        %v715 = vunpack.c.l.b16 %v619
        %v716 = vunpack.c.h.b16 %v619
        %v717 = vunpack.c.l.b16 %v620
        %v718 = vpack.c.b16 %v673, %v670
        %v719 = vpack.c.b16 %v674, %v671
        %v720 = vpack.c.b16 %v675, %v672
        %v721 = vpack.c.b16 %v679, %v676
        %v722 = vpack.c.b16 %v680, %v677
        %v723 = vpack.c.b16 %v681, %v678
        %v724 = vpack.c.b16 %v685, %v682
        %v725 = vpack.c.b16 %v686, %v683
        %v726 = vpack.c.b16 %v687, %v684
        %v727 = vpack.c.b16 %v691, %v688
        %v728 = vpack.c.b16 %v692, %v689
        %v729 = vpack.c.b16 %v693, %v690
        %v730 = vpack.c.b16 %v697, %v694
        %v731 = vpack.c.b16 %v698, %v695
        %v732 = vpack.c.b16 %v699, %v696
        %v733 = vpack.c.b16 %v703, %v700
        %v734 = vpack.c.b16 %v704, %v701
        %v735 = vpack.c.b16 %v705, %v702
        %v736 = vpack.c.b16 %v709, %v706
        %v737 = vpack.c.b16 %v710, %v707
        %v738 = vpack.c.b16 %v711, %v708
        %v739 = vpack.c.b16 %v715, %v712
        %v740 = vpack.c.b16 %v716, %v713
        %v741 = vpack.c.b16 %v717, %v714
        %766 = vmatprep.subr.bf16.mxu0 %v740
        %767 = vmatpush1.bf16.msra.mxu0 %v739
        %768 = vmatprep.subr.bf16.mxu0 %v737
        %769 = vmatpush1.bf16.msra.mxu0 %v736
        %770 = vmatprep.subr.bf16.mxu0 %v734
        %771 = vmatpush1.bf16.msra.mxu0 %v733
        %772 = vmatprep.subr.bf16.mxu0 %v731
        %773 = vmatpush1.bf16.msra.mxu0 %v730
        %774 = vmatprep.subr.bf16.mxu0 %v728
        %775 = vmatpush1.bf16.msra.mxu0 %v727
        %776 = vmatprep.subr.bf16.mxu0 %v725
        %777 = vmatpush1.bf16.msra.mxu0 %v724
        %778 = vmatprep.subr.bf16.mxu0 %v722
        %779 = vmatpush1.bf16.msra.mxu0 %v721
        %780 = vmatprep.subr.bf16.mxu0 %v719
        %781 = vmatpush1.bf16.msra.mxu0 %v718
        %782 = vmatprep.subr.bf16.mxu0 0
        %783 = vmatpush2.bf16.msra.mxu0 0
        %784 = vmatprep.subr.bf16.mxu0 0
        %785 = vmatpush2.bf16.msra.mxu0 0
        %786 = vmatprep.subr.bf16.mxu0 0
        %787 = vmatpush2.bf16.msra.mxu0 0
        %788 = vmatprep.subr.bf16.mxu0 0
        %789 = vmatpush2.bf16.msra.mxu0 0
        %790 = vmatprep.subr.bf16.mxu0 0
        %791 = vmatpush2.bf16.msra.mxu0 0
        %792 = vmatprep.subr.bf16.mxu0 0
        %793 = vmatpush2.bf16.msra.mxu0 0
        %794 = vmatprep.subr.bf16.mxu0 0
        %795 = vmatpush2.bf16.msra.mxu0 0
        %796 = vmatprep.subr.bf16.mxu0 0
        %797 = vmatpush2.bf16.msra.mxu0 0
        %798 = vmatprep.mubr.bf16.mxu0 0
        %799 = vmatmul.mubr.bf16.gmra.mxu0 %v587
        %v800 = vpop.f32.mrf.mxu0
        %v801 = vadd.f32 %v626, %v800
        %v802 = vpop.f32.mrf.mxu0
        %v803 = vadd.f32 %v630, %v802
        %v804 = vpop.f32.mrf.mxu0
        %v805 = vadd.f32 %v626, %v804
        %v806 = vpop.f32.mrf.mxu0
        %v807 = vadd.f32 %v630, %v806
        %808 = vmatprep.mubr.bf16.mxu0 0
        %809 = vmatmul.mubr.bf16.gmra.mxu0 %v588
        %v810 = vpop.f32.mrf.mxu0
        %v811 = vadd.f32 %v626, %v810
        %v812 = vpop.f32.mrf.mxu0
        %v813 = vadd.f32 %v630, %v812
        %v814 = vpop.f32.mrf.mxu0
        %v815 = vadd.f32 %v626, %v814
        %v816 = vpop.f32.mrf.mxu0
        %v817 = vadd.f32 %v630, %v816
        %818 = vdwg.mxu0
        %819 = vmatprep.subr.bf16.mxu0 0
        %820 = vmatpush1.bf16.msra.mxu0 %v741
        %821 = vmatprep.subr.bf16.mxu0 0
        %822 = vmatpush1.bf16.msra.mxu0 %v738
        %823 = vmatprep.subr.bf16.mxu0 0
        %824 = vmatpush1.bf16.msra.mxu0 %v735
        %825 = vmatprep.subr.bf16.mxu0 0
        %826 = vmatpush1.bf16.msra.mxu0 %v732
        %827 = vmatprep.subr.bf16.mxu0 0
        %828 = vmatpush1.bf16.msra.mxu0 %v729
        %829 = vmatprep.subr.bf16.mxu0 0
        %830 = vmatpush1.bf16.msra.mxu0 %v726
        %831 = vmatprep.subr.bf16.mxu0 0
        %832 = vmatpush1.bf16.msra.mxu0 %v723
        %833 = vmatprep.subr.bf16.mxu0 0
        %834 = vmatpush1.bf16.msra.mxu0 %v720
        %835 = vmatprep.subr.bf16.mxu0 0
        %836 = vmatpush2.bf16.msra.mxu0 0
        %837 = vmatprep.subr.bf16.mxu0 0
        %838 = vmatpush2.bf16.msra.mxu0 0
        %839 = vmatprep.subr.bf16.mxu0 0
        %840 = vmatpush2.bf16.msra.mxu0 0
        %841 = vmatprep.subr.bf16.mxu0 0
        %842 = vmatpush2.bf16.msra.mxu0 0
        %843 = vmatprep.subr.bf16.mxu0 0
        %844 = vmatpush2.bf16.msra.mxu0 0
        %845 = vmatprep.subr.bf16.mxu0 0
        %846 = vmatpush2.bf16.msra.mxu0 0
        %847 = vmatprep.subr.bf16.mxu0 0
        %848 = vmatpush2.bf16.msra.mxu0 0
        %849 = vmatprep.subr.bf16.mxu0 0
        %850 = vmatpush2.bf16.msra.mxu0 0
        %851 = vmatprep.mubr.bf16.mxu0 0
        %852 = vmatmul.mubr.bf16.gmra.mxu0 %v587
        %v853 = vpop.f32.mrf.mxu0
        %v854 = vadd.f32 %v634, %v853
        %v855 = vpop.f32.mrf.mxu0
        %v856 = vpop.f32.mrf.mxu0
        %v857 = vadd.f32 %v634, %v856
        %v858 = vpop.f32.mrf.mxu0
        %859 = vmatprep.mubr.bf16.mxu0 0
        %860 = vmatmul.mubr.bf16.gmra.mxu0 %v588
        %v861 = vpop.f32.mrf.mxu0
        %v862 = vadd.f32 %v634, %v861
        %v863 = vpop.f32.mrf.mxu0
        %v864 = vpop.f32.mrf.mxu0
        %v865 = vadd.f32 %v634, %v864
        %v866 = vpop.f32.mrf.mxu0
        %867 = vdwg.mxu0
        %v868 = vpack.c.bf16 %v801, %v801
        %v869 = vpack.c.bf16 %v805, %v805
        %v870 = vpack.c.bf16 %v811, %v811
        %v871 = vpack.c.bf16 %v815, %v815
        %v872 = vpack.c.bf16 %v803, %v803
        %v873 = vpack.c.bf16 %v807, %v807
        %v874 = vpack.c.bf16 %v813, %v813
        %v875 = vpack.c.bf16 %v817, %v817
        %876 = vmatprep.subr.bf16.mxu0 0
        %877 = vmatpush1.bf16.xpose.msra.mxu0 0
        %878 = vmatprep.subr.bf16.mxu0 0
        %879 = vmatpush1.bf16.xpose.msra.mxu0 0
        %880 = vmatprep.subr.bf16.mxu0 0
        %881 = vmatpush1.bf16.xpose.msra.mxu0 0
        %882 = vmatprep.subr.bf16.mxu0 0
        %883 = vmatpush1.bf16.xpose.msra.mxu0 0
        %884 = vmatprep.subr.bf16.mxu0 0
        %885 = vmatpush1.bf16.xpose.msra.mxu0 0
        %886 = vmatprep.subr.bf16.mxu0 0
        %887 = vmatpush1.bf16.xpose.msra.mxu0 0
        %888 = vmatprep.subr.bf16.mxu0 0
        %889 = vmatpush1.bf16.xpose.msra.mxu0 0
        %890 = vmatprep.subr.bf16.mxu0 0
        %891 = vmatpush1.bf16.xpose.msra.mxu0 %v872
        %892 = vmatprep.subr.bf16.mxu0 0
        %893 = vmatpush2.bf16.xpose.msra.mxu0 0
        %894 = vmatprep.subr.bf16.mxu0 0
        %895 = vmatpush2.bf16.xpose.msra.mxu0 0
        %896 = vmatprep.subr.bf16.mxu0 0
        %897 = vmatpush2.bf16.xpose.msra.mxu0 0
        %898 = vmatprep.subr.bf16.mxu0 0
        %899 = vmatpush2.bf16.xpose.msra.mxu0 0
        %900 = vmatprep.subr.bf16.mxu0 0
        %901 = vmatpush2.bf16.xpose.msra.mxu0 0
        %902 = vmatprep.subr.bf16.mxu0 0
        %903 = vmatpush2.bf16.xpose.msra.mxu0 0
        %904 = vmatprep.subr.bf16.mxu0 0
        %905 = vmatpush2.bf16.xpose.msra.mxu0 0
        %906 = vmatprep.subr.bf16.mxu0 0
        %907 = vmatpush2.bf16.xpose.msra.mxu0 0
        %908 = vmatprep.mubr.bf16.mxu0 0
        %909 = vmatmul.mubr.bf16.gmra.mxu0 %v868
        %v910 = vpop.f32.mrf.mxu0
        %v911 = vadd.f32 0.0, %v910
        %v912 = vpop.f32.mrf.mxu0
        %v913 = vpop.f32.mrf.mxu0
        %v914 = vpop.f32.mrf.mxu0
        %915 = vdwg.mxu0
        %916 = vmatprep.subr.bf16.mxu0 0
        %917 = vmatpush1.bf16.xpose.msra.mxu0 0
        %918 = vmatprep.subr.bf16.mxu0 0
        %919 = vmatpush1.bf16.xpose.msra.mxu0 0
        %920 = vmatprep.subr.bf16.mxu0 0
        %921 = vmatpush1.bf16.xpose.msra.mxu0 0
        %922 = vmatprep.subr.bf16.mxu0 0
        %923 = vmatpush1.bf16.xpose.msra.mxu0 0
        %924 = vmatprep.subr.bf16.mxu0 0
        %925 = vmatpush1.bf16.xpose.msra.mxu0 0
        %926 = vmatprep.subr.bf16.mxu0 0
        %927 = vmatpush1.bf16.xpose.msra.mxu0 0
        %928 = vmatprep.subr.bf16.mxu0 0
        %929 = vmatpush1.bf16.xpose.msra.mxu0 0
        %930 = vmatprep.subr.bf16.mxu0 0
        %931 = vmatpush1.bf16.xpose.msra.mxu0 %v873
        %932 = vmatprep.subr.bf16.mxu0 0
        %933 = vmatpush2.bf16.xpose.msra.mxu0 0
        %934 = vmatprep.subr.bf16.mxu0 0
        %935 = vmatpush2.bf16.xpose.msra.mxu0 0
        %936 = vmatprep.subr.bf16.mxu0 0
        %937 = vmatpush2.bf16.xpose.msra.mxu0 0
        %938 = vmatprep.subr.bf16.mxu0 0
        %939 = vmatpush2.bf16.xpose.msra.mxu0 0
        %940 = vmatprep.subr.bf16.mxu0 0
        %941 = vmatpush2.bf16.xpose.msra.mxu0 0
        %942 = vmatprep.subr.bf16.mxu0 0
        %943 = vmatpush2.bf16.xpose.msra.mxu0 0
        %944 = vmatprep.subr.bf16.mxu0 0
        %945 = vmatpush2.bf16.xpose.msra.mxu0 0
        %946 = vmatprep.subr.bf16.mxu0 0
        %947 = vmatpush2.bf16.xpose.msra.mxu0 0
        %948 = vmatprep.mubr.bf16.mxu0 0
        %949 = vmatmul.mubr.bf16.gmra.mxu0 %v869
        %v950 = vpop.f32.mrf.mxu0
        %v951 = vadd.f32 0.0, %v950
        %v952 = vpop.f32.mrf.mxu0
        %v953 = vpop.f32.mrf.mxu0
        %v954 = vpop.f32.mrf.mxu0
        %955 = vdwg.mxu0
        %956 = vmatprep.subr.bf16.mxu0 0
        %957 = vmatpush1.bf16.xpose.msra.mxu0 0
        %958 = vmatprep.subr.bf16.mxu0 0
        %959 = vmatpush1.bf16.xpose.msra.mxu0 0
        %960 = vmatprep.subr.bf16.mxu0 0
        %961 = vmatpush1.bf16.xpose.msra.mxu0 0
        %962 = vmatprep.subr.bf16.mxu0 0
        %963 = vmatpush1.bf16.xpose.msra.mxu0 0
        %964 = vmatprep.subr.bf16.mxu0 0
        %965 = vmatpush1.bf16.xpose.msra.mxu0 0
        %966 = vmatprep.subr.bf16.mxu0 0
        %967 = vmatpush1.bf16.xpose.msra.mxu0 0
        %968 = vmatprep.subr.bf16.mxu0 0
        %969 = vmatpush1.bf16.xpose.msra.mxu0 0
        %970 = vmatprep.subr.bf16.mxu0 0
        %971 = vmatpush1.bf16.xpose.msra.mxu0 %v874
        %972 = vmatprep.subr.bf16.mxu0 0
        %973 = vmatpush2.bf16.xpose.msra.mxu0 0
        %974 = vmatprep.subr.bf16.mxu0 0
        %975 = vmatpush2.bf16.xpose.msra.mxu0 0
        %976 = vmatprep.subr.bf16.mxu0 0
        %977 = vmatpush2.bf16.xpose.msra.mxu0 0
        %978 = vmatprep.subr.bf16.mxu0 0
        %979 = vmatpush2.bf16.xpose.msra.mxu0 0
        %980 = vmatprep.subr.bf16.mxu0 0
        %981 = vmatpush2.bf16.xpose.msra.mxu0 0
        %982 = vmatprep.subr.bf16.mxu0 0
        %983 = vmatpush2.bf16.xpose.msra.mxu0 0
        %984 = vmatprep.subr.bf16.mxu0 0
        %985 = vmatpush2.bf16.xpose.msra.mxu0 0
        %986 = vmatprep.subr.bf16.mxu0 0
        %987 = vmatpush2.bf16.xpose.msra.mxu0 0
        %988 = vmatprep.mubr.bf16.mxu0 0
        %989 = vmatmul.mubr.bf16.gmra.mxu0 %v870
        %v990 = vpop.f32.mrf.mxu0
        %v991 = vadd.f32 0.0, %v990
        %v992 = vpop.f32.mrf.mxu0
        %v993 = vpop.f32.mrf.mxu0
        %v994 = vpop.f32.mrf.mxu0
        %995 = vdwg.mxu0
        %996 = vmatprep.subr.bf16.mxu0 0
        %997 = vmatpush1.bf16.xpose.msra.mxu0 0
        %998 = vmatprep.subr.bf16.mxu0 0
        %999 = vmatpush1.bf16.xpose.msra.mxu0 0
        %1000 = vmatprep.subr.bf16.mxu0 0
        %1001 = vmatpush1.bf16.xpose.msra.mxu0 0
        %1002 = vmatprep.subr.bf16.mxu0 0
        %1003 = vmatpush1.bf16.xpose.msra.mxu0 0
        %1004 = vmatprep.subr.bf16.mxu0 0
        %1005 = vmatpush1.bf16.xpose.msra.mxu0 0
        %1006 = vmatprep.subr.bf16.mxu0 0
        %1007 = vmatpush1.bf16.xpose.msra.mxu0 0
        %1008 = vmatprep.subr.bf16.mxu0 0
        %1009 = vmatpush1.bf16.xpose.msra.mxu0 0
        %1010 = vmatprep.subr.bf16.mxu0 0
        %1011 = vmatpush1.bf16.xpose.msra.mxu0 %v875
        %1012 = vmatprep.subr.bf16.mxu0 0
        %1013 = vmatpush2.bf16.xpose.msra.mxu0 0
        %1014 = vmatprep.subr.bf16.mxu0 0
        %1015 = vmatpush2.bf16.xpose.msra.mxu0 0
        %1016 = vmatprep.subr.bf16.mxu0 0
        %1017 = vmatpush2.bf16.xpose.msra.mxu0 0
        %1018 = vmatprep.subr.bf16.mxu0 0
        %1019 = vmatpush2.bf16.xpose.msra.mxu0 0
        %1020 = vmatprep.subr.bf16.mxu0 0
        %1021 = vmatpush2.bf16.xpose.msra.mxu0 0
        %1022 = vmatprep.subr.bf16.mxu0 0
        %1023 = vmatpush2.bf16.xpose.msra.mxu0 0
        %1024 = vmatprep.subr.bf16.mxu0 0
        %1025 = vmatpush2.bf16.xpose.msra.mxu0 0
        %1026 = vmatprep.subr.bf16.mxu0 0
        %1027 = vmatpush2.bf16.xpose.msra.mxu0 0
        %1028 = vmatprep.mubr.bf16.mxu0 0
        %1029 = vmatmul.mubr.bf16.gmra.mxu0 %v871
        %v1030 = vpop.f32.mrf.mxu0
        %v1031 = vadd.f32 0.0, %v1030
        %v1032 = vpop.f32.mrf.mxu0
        %v1033 = vpop.f32.mrf.mxu0
        %v1034 = vpop.f32.mrf.mxu0
        %1035 = vdwg.mxu0
        %v1036 = vmul.f32 %v911, 0.088388346
        %v1037 = vmul.f32 %v951, 0.088388346
        %v1038 = vmul.f32 %v991, 0.088388346
        %v1039 = vmul.f32 %v1031, 0.088388346
        %v1040 = vsel %vm440, %v1036, -inf
        %1041 = vmax.xlane.f32.xlu0 %v1040
        %v1042 = vpop.xlane.xlu0 %1041
        %v1043 = vsel %vm440, %v1037, -inf
        %1044 = vmax.xlane.f32.xlu0 %v1043
        %v1045 = vpop.xlane.xlu0 %1044
        %v1046 = vsel %vm440, %v1038, -inf
        %1047 = vmax.xlane.f32.xlu0 %v1046
        %v1048 = vpop.xlane.xlu0 %1047
        %v1049 = vsel %vm440, %v1039, -inf
        %1050 = vmax.xlane.f32.xlu0 %v1049
        %v1051 = vpop.xlane.xlu0 %1050
        %v1052 = vsub.f32 %v1036, %v1042
        %v1053 = vsub.f32 %v1037, %v1045
        %v1054 = vsub.f32 %v1038, %v1048
        %v1055 = vsub.f32 %v1039, %v1051
        %v1056 = vmul.f32 %v1052, 1.442695
        %v1057 = vpow.pop %v1056
        %v1058 = vmul.f32 %v1053, 1.442695
        %v1059 = vpow.pop %v1058
        %v1060 = vmul.f32 %v1054, 1.442695
        %v1061 = vpow.pop %v1060
        %v1062 = vmul.f32 %v1055, 1.442695
        %v1063 = vpow.pop %v1062
        %v1064 = vsel %vm440, %v1057, 0.0
        %1065 = vadd.xlane.f32.xlu0 %v1064
        %v1066 = vpop.xlane.xlu0 %1065
        %v1067 = vsel %vm440, %v1059, 0.0
        %1068 = vadd.xlane.f32.xlu0 %v1067
        %v1069 = vpop.xlane.xlu0 %1068
        %v1070 = vsel %vm440, %v1061, 0.0
        %1071 = vadd.xlane.f32.xlu0 %v1070
        %v1072 = vpop.xlane.xlu0 %1071
        %v1073 = vsel %vm440, %v1063, 0.0
        %1074 = vadd.xlane.f32.xlu0 %v1073
        %v1075 = vpop.xlane.xlu0 %1074
        %v1076 = vrcp.pop %v1066
        %v1077 = vrcp.pop %v1069
        %v1078 = vrcp.pop %v1072
        %v1079 = vrcp.pop %v1075
        %v1080 = vmul.f32 %v1057, %v1076
        %v1081 = vmul.f32 %v1059, %v1077
        %v1082 = vmul.f32 %v1061, %v1078
        %v1083 = vmul.f32 %v1063, %v1079
        %v1084 = vpack.c.bf16 %v1080, %v1080
        %v1085 = vpack.c.bf16 %v1081, %v1081
        %v1086 = vpack.c.bf16 %v1082, %v1082
        %v1087 = vpack.c.bf16 %v1083, %v1083
        %v1088 = vpack.c.bf16 %v854, %v854
        %v1089 = vpack.c.bf16 %v857, %v857
        %v1090 = vpack.c.bf16 %v862, %v862
        %v1091 = vpack.c.bf16 %v865, %v865
        %v1093 = vsel %vm440, %v1084, 0
        %v1096 = vsel %vm447, %v1088, 0
        %1098 = vmatprep.subr.bf16.mxu0 0
        %1099 = vmatpush1.bf16.msra.mxu0 0
        %1100 = vmatprep.subr.bf16.mxu0 0
        %1101 = vmatpush1.bf16.msra.mxu0 0
        %1102 = vmatprep.subr.bf16.mxu0 0
        %1103 = vmatpush1.bf16.msra.mxu0 0
        %1104 = vmatprep.subr.bf16.mxu0 0
        %1105 = vmatpush1.bf16.msra.mxu0 0
        %1106 = vmatprep.subr.bf16.mxu0 0
        %1107 = vmatpush1.bf16.msra.mxu0 0
        %1108 = vmatprep.subr.bf16.mxu0 0
        %1109 = vmatpush1.bf16.msra.mxu0 0
        %1110 = vmatprep.subr.bf16.mxu0 0
        %1111 = vmatpush1.bf16.msra.mxu0 0
        %1112 = vmatprep.subr.bf16.mxu0 0
        %1113 = vmatpush1.bf16.msra.mxu0 %v1096
        %1114 = vmatprep.subr.bf16.mxu0 0
        %1115 = vmatpush2.bf16.msra.mxu0 0
        %1116 = vmatprep.subr.bf16.mxu0 0
        %1117 = vmatpush2.bf16.msra.mxu0 0
        %1118 = vmatprep.subr.bf16.mxu0 0
        %1119 = vmatpush2.bf16.msra.mxu0 0
        %1120 = vmatprep.subr.bf16.mxu0 0
        %1121 = vmatpush2.bf16.msra.mxu0 0
        %1122 = vmatprep.subr.bf16.mxu0 0
        %1123 = vmatpush2.bf16.msra.mxu0 0
        %1124 = vmatprep.subr.bf16.mxu0 0
        %1125 = vmatpush2.bf16.msra.mxu0 0
        %1126 = vmatprep.subr.bf16.mxu0 0
        %1127 = vmatpush2.bf16.msra.mxu0 0
        %1128 = vmatprep.subr.bf16.mxu0 0
        %1129 = vmatpush2.bf16.msra.mxu0 0
        %1130 = vmatprep.mubr.bf16.mxu0 0
        %1131 = vmatmul.mubr.bf16.gmra.mxu0 %v1093
        %v1132 = vpop.f32.mrf.mxu0
        %v1133 = vadd.f32 0.0, %v1132
        %v1134 = vpop.f32.mrf.mxu0
        %v1135 = vpop.f32.mrf.mxu0
        %v1136 = vpop.f32.mrf.mxu0
        %1137 = vdwg.mxu0
        %v1139 = vsel %vm440, %v1085, 0
        %v1142 = vsel %vm447, %v1089, 0
        %1144 = vmatprep.subr.bf16.mxu0 0
        %1145 = vmatpush1.bf16.msra.mxu0 0
        %1146 = vmatprep.subr.bf16.mxu0 0
        %1147 = vmatpush1.bf16.msra.mxu0 0
        %1148 = vmatprep.subr.bf16.mxu0 0
        %1149 = vmatpush1.bf16.msra.mxu0 0
        %1150 = vmatprep.subr.bf16.mxu0 0
        %1151 = vmatpush1.bf16.msra.mxu0 0
        %1152 = vmatprep.subr.bf16.mxu0 0
        %1153 = vmatpush1.bf16.msra.mxu0 0
        %1154 = vmatprep.subr.bf16.mxu0 0
        %1155 = vmatpush1.bf16.msra.mxu0 0
        %1156 = vmatprep.subr.bf16.mxu0 0
        %1157 = vmatpush1.bf16.msra.mxu0 0
        %1158 = vmatprep.subr.bf16.mxu0 0
        %1159 = vmatpush1.bf16.msra.mxu0 %v1142
        %1160 = vmatprep.subr.bf16.mxu0 0
        %1161 = vmatpush2.bf16.msra.mxu0 0
        %1162 = vmatprep.subr.bf16.mxu0 0
        %1163 = vmatpush2.bf16.msra.mxu0 0
        %1164 = vmatprep.subr.bf16.mxu0 0
        %1165 = vmatpush2.bf16.msra.mxu0 0
        %1166 = vmatprep.subr.bf16.mxu0 0
        %1167 = vmatpush2.bf16.msra.mxu0 0
        %1168 = vmatprep.subr.bf16.mxu0 0
        %1169 = vmatpush2.bf16.msra.mxu0 0
        %1170 = vmatprep.subr.bf16.mxu0 0
        %1171 = vmatpush2.bf16.msra.mxu0 0
        %1172 = vmatprep.subr.bf16.mxu0 0
        %1173 = vmatpush2.bf16.msra.mxu0 0
        %1174 = vmatprep.subr.bf16.mxu0 0
        %1175 = vmatpush2.bf16.msra.mxu0 0
        %1176 = vmatprep.mubr.bf16.mxu0 0
        %1177 = vmatmul.mubr.bf16.gmra.mxu0 %v1139
        %v1178 = vpop.f32.mrf.mxu0
        %v1179 = vadd.f32 0.0, %v1178
        %v1180 = vpop.f32.mrf.mxu0
        %v1181 = vpop.f32.mrf.mxu0
        %v1182 = vpop.f32.mrf.mxu0
        %1183 = vdwg.mxu0
        %v1185 = vsel %vm440, %v1086, 0
        %v1188 = vsel %vm447, %v1090, 0
        %1190 = vmatprep.subr.bf16.mxu0 0
        %1191 = vmatpush1.bf16.msra.mxu0 0
        %1192 = vmatprep.subr.bf16.mxu0 0
        %1193 = vmatpush1.bf16.msra.mxu0 0
        %1194 = vmatprep.subr.bf16.mxu0 0
        %1195 = vmatpush1.bf16.msra.mxu0 0
        %1196 = vmatprep.subr.bf16.mxu0 0
        %1197 = vmatpush1.bf16.msra.mxu0 0
        %1198 = vmatprep.subr.bf16.mxu0 0
        %1199 = vmatpush1.bf16.msra.mxu0 0
        %1200 = vmatprep.subr.bf16.mxu0 0
        %1201 = vmatpush1.bf16.msra.mxu0 0
        %1202 = vmatprep.subr.bf16.mxu0 0
        %1203 = vmatpush1.bf16.msra.mxu0 0
        %1204 = vmatprep.subr.bf16.mxu0 0
        %1205 = vmatpush1.bf16.msra.mxu0 %v1188
        %1206 = vmatprep.subr.bf16.mxu0 0
        %1207 = vmatpush2.bf16.msra.mxu0 0
        %1208 = vmatprep.subr.bf16.mxu0 0
        %1209 = vmatpush2.bf16.msra.mxu0 0
        %1210 = vmatprep.subr.bf16.mxu0 0
        %1211 = vmatpush2.bf16.msra.mxu0 0
        %1212 = vmatprep.subr.bf16.mxu0 0
        %1213 = vmatpush2.bf16.msra.mxu0 0
        %1214 = vmatprep.subr.bf16.mxu0 0
        %1215 = vmatpush2.bf16.msra.mxu0 0
        %1216 = vmatprep.subr.bf16.mxu0 0
        %1217 = vmatpush2.bf16.msra.mxu0 0
        %1218 = vmatprep.subr.bf16.mxu0 0
        %1219 = vmatpush2.bf16.msra.mxu0 0
        %1220 = vmatprep.subr.bf16.mxu0 0
        %1221 = vmatpush2.bf16.msra.mxu0 0
        %1222 = vmatprep.mubr.bf16.mxu0 0
        %1223 = vmatmul.mubr.bf16.gmra.mxu0 %v1185
        %v1224 = vpop.f32.mrf.mxu0
        %v1225 = vadd.f32 0.0, %v1224
        %v1226 = vpop.f32.mrf.mxu0
        %v1227 = vpop.f32.mrf.mxu0
        %v1228 = vpop.f32.mrf.mxu0
        %1229 = vdwg.mxu0
        %v1231 = vsel %vm440, %v1087, 0
        %v1234 = vsel %vm447, %v1091, 0
        %1236 = vmatprep.subr.bf16.mxu0 0
        %1237 = vmatpush1.bf16.msra.mxu0 0
        %1238 = vmatprep.subr.bf16.mxu0 0
        %1239 = vmatpush1.bf16.msra.mxu0 0
        %1240 = vmatprep.subr.bf16.mxu0 0
        %1241 = vmatpush1.bf16.msra.mxu0 0
        %1242 = vmatprep.subr.bf16.mxu0 0
        %1243 = vmatpush1.bf16.msra.mxu0 0
        %1244 = vmatprep.subr.bf16.mxu0 0
        %1245 = vmatpush1.bf16.msra.mxu0 0
        %1246 = vmatprep.subr.bf16.mxu0 0
        %1247 = vmatpush1.bf16.msra.mxu0 0
        %1248 = vmatprep.subr.bf16.mxu0 0
        %1249 = vmatpush1.bf16.msra.mxu0 0
        %1250 = vmatprep.subr.bf16.mxu0 0
        %1251 = vmatpush1.bf16.msra.mxu0 %v1234
        %1252 = vmatprep.subr.bf16.mxu0 0
        %1253 = vmatpush2.bf16.msra.mxu0 0
        %1254 = vmatprep.subr.bf16.mxu0 0
        %1255 = vmatpush2.bf16.msra.mxu0 0
        %1256 = vmatprep.subr.bf16.mxu0 0
        %1257 = vmatpush2.bf16.msra.mxu0 0
        %1258 = vmatprep.subr.bf16.mxu0 0
        %1259 = vmatpush2.bf16.msra.mxu0 0
        %1260 = vmatprep.subr.bf16.mxu0 0
        %1261 = vmatpush2.bf16.msra.mxu0 0
        %1262 = vmatprep.subr.bf16.mxu0 0
        %1263 = vmatpush2.bf16.msra.mxu0 0
        %1264 = vmatprep.subr.bf16.mxu0 0
        %1265 = vmatpush2.bf16.msra.mxu0 0
        %1266 = vmatprep.subr.bf16.mxu0 0
        %1267 = vmatpush2.bf16.msra.mxu0 0
        %1268 = vmatprep.mubr.bf16.mxu0 0
        %1269 = vmatmul.mubr.bf16.gmra.mxu0 %v1231
        %v1270 = vpop.f32.mrf.mxu0
        %v1271 = vadd.f32 0.0, %v1270
        %v1272 = vpop.f32.mrf.mxu0
        %v1273 = vpop.f32.mrf.mxu0
        %v1274 = vpop.f32.mrf.mxu0
        %1275 = vdwg.mxu0
        %v1276 = vpack.c.bf16 %v1179, %v1133
        %v1277 = vpack.c.bf16 %v1271, %v1225
        %v1278 = vld [vmem:[#allocation2 + $0xc] sm:$0xf]
        %v1279 = vld [vmem:[#allocation2 + $0x20] sm:$0xf]
        %v1280 = vld [vmem:[#allocation2 + $0x34] sm:$0xf]
        %v1281 = vld [vmem:[#allocation2 + $0x48] sm:$0xf]
        %v1282 = vld [vmem:[#allocation2 + $0x5c] sm:$0xf]
        %v1283 = vld [vmem:[#allocation2 + $0x70] sm:$0xf]
        %v1284 = vld [vmem:[#allocation2 + $0x84] sm:$0xf]
        %v1285 = vld [vmem:[#allocation2 + $0x98] sm:$0xf]
        %v1286 = vld [vmem:[#allocation2 + $0xac] sm:$0xf]
        %v1287 = vld [vmem:[#allocation2 + $0xc0] sm:$0xf]
        %v1288 = vld [vmem:[#allocation2 + $0xd4] sm:$0xf]
        %v1289 = vld [vmem:[#allocation2 + $0xe8] sm:$0xf]
        %v1290 = vld [vmem:[#allocation2 + $0xfc] sm:$0xf]
        %v1291 = vld [vmem:[#allocation2 + $0x110] sm:$0xf]
        %v1292 = vld [vmem:[#allocation2 + $0x124] sm:$0xf]
        %v1293 = vld [vmem:[#allocation2 + $0x138] sm:$0xf]
        %v1294 = vld [vmem:[#allocation6 + $0x3] sm:$0x1]
        %v1296 = vlaneseq
        %v1297 = vshrl.u32 %v1296, 7
        %v1298 = vsub.s32 0, %v1297
        %v1299 = vrot.slane %v1294, %v1298
        %v1317 = vunpack.c.l.b16 %v1278
        %v1318 = vunpack.c.l.b16 %v1279
        %v1319 = vunpack.c.l.b16 %v1280
        %v1320 = vunpack.c.l.b16 %v1281
        %v1321 = vunpack.c.l.b16 %v1282
        %v1322 = vunpack.c.l.b16 %v1283
        %v1323 = vunpack.c.l.b16 %v1284
        %v1324 = vunpack.c.l.b16 %v1285
        %v1325 = vunpack.c.l.b16 %v1286
        %v1326 = vunpack.c.l.b16 %v1287
        %v1327 = vunpack.c.l.b16 %v1288
        %v1328 = vunpack.c.l.b16 %v1289
        %v1329 = vunpack.c.l.b16 %v1290
        %v1330 = vunpack.c.l.b16 %v1291
        %v1331 = vunpack.c.l.b16 %v1292
        %v1332 = vunpack.c.l.b16 %v1293
        %v1333 = vpack.c.b16 %v1318, %v1317
        %v1334 = vpack.c.b16 %v1320, %v1319
        %v1335 = vpack.c.b16 %v1322, %v1321
        %v1336 = vpack.c.b16 %v1324, %v1323
        %v1337 = vpack.c.b16 %v1326, %v1325
        %v1338 = vpack.c.b16 %v1328, %v1327
        %v1339 = vpack.c.b16 %v1330, %v1329
        %v1340 = vpack.c.b16 %v1332, %v1331
        %1349 = vmatprep.subr.bf16.mxu0 0
        %1350 = vmatpush1.bf16.msra.mxu0 %v1340
        %1351 = vmatprep.subr.bf16.mxu0 0
        %1352 = vmatpush1.bf16.msra.mxu0 %v1339
        %1353 = vmatprep.subr.bf16.mxu0 0
        %1354 = vmatpush1.bf16.msra.mxu0 %v1338
        %1355 = vmatprep.subr.bf16.mxu0 0
        %1356 = vmatpush1.bf16.msra.mxu0 %v1337
        %1357 = vmatprep.subr.bf16.mxu0 0
        %1358 = vmatpush1.bf16.msra.mxu0 %v1336
        %1359 = vmatprep.subr.bf16.mxu0 0
        %1360 = vmatpush1.bf16.msra.mxu0 %v1335
        %1361 = vmatprep.subr.bf16.mxu0 0
        %1362 = vmatpush1.bf16.msra.mxu0 %v1334
        %1363 = vmatprep.subr.bf16.mxu0 0
        %1364 = vmatpush1.bf16.msra.mxu0 %v1333
        %1365 = vmatprep.subr.bf16.mxu0 0
        %1366 = vmatpush2.bf16.msra.mxu0 0
        %1367 = vmatprep.subr.bf16.mxu0 0
        %1368 = vmatpush2.bf16.msra.mxu0 0
        %1369 = vmatprep.subr.bf16.mxu0 0
        %1370 = vmatpush2.bf16.msra.mxu0 0
        %1371 = vmatprep.subr.bf16.mxu0 0
        %1372 = vmatpush2.bf16.msra.mxu0 0
        %1373 = vmatprep.subr.bf16.mxu0 0
        %1374 = vmatpush2.bf16.msra.mxu0 0
        %1375 = vmatprep.subr.bf16.mxu0 0
        %1376 = vmatpush2.bf16.msra.mxu0 0
        %1377 = vmatprep.subr.bf16.mxu0 0
        %1378 = vmatpush2.bf16.msra.mxu0 0
        %1379 = vmatprep.subr.bf16.mxu0 0
        %1380 = vmatpush2.bf16.msra.mxu0 0
        %1381 = vmatprep.mubr.bf16.mxu0 0
        %1382 = vmatmul.mubr.bf16.gmra.mxu0 %v1276
        %v1383 = vpop.f32.mrf.mxu0
        %v1384 = vadd.f32 %v1299, %v1383
        %v1385 = vpop.f32.mrf.mxu0
        %v1386 = vpop.f32.mrf.mxu0
        %v1387 = vadd.f32 %v1299, %v1386
        %v1388 = vpop.f32.mrf.mxu0
        %1389 = vmatprep.mubr.bf16.mxu0 0
        %1390 = vmatmul.mubr.bf16.gmra.mxu0 %v1277
        %v1391 = vpop.f32.mrf.mxu0
        %v1392 = vadd.f32 %v1299, %v1391
        %v1393 = vpop.f32.mrf.mxu0
        %v1394 = vpop.f32.mrf.mxu0
        %v1395 = vadd.f32 %v1299, %v1394
        %v1396 = vpop.f32.mrf.mxu0
        %1397 = vdwg.mxu0
        %v1398 = vadd.f32 %v583, %v1384
        %v1399 = vadd.f32 %v584, %v1387
        %v1400 = vadd.f32 %v585, %v1392
        %v1401 = vadd.f32 %v586, %v1395
        %v1402 = vld [vmem:[#allocation6 + $0x4] sm:$0x1]
        %v1403 = vld [vmem:[#allocation6 + $0x5] sm:$0x1]
        %1404 = vadd.xlane.f32.xlu0 %v1398
        %v1405 = vpop.xlane.xlu0 %1404
        %1406 = vadd.xlane.f32.xlu0 %v1399
        %v1407 = vpop.xlane.xlu0 %1406
        %1408 = vadd.xlane.f32.xlu0 %v1400
        %v1409 = vpop.xlane.xlu0 %1408
        %1410 = vadd.xlane.f32.xlu0 %v1401
        %v1411 = vpop.xlane.xlu0 %1410
        %v1412 = vmul.f32 %v1405, %v514
        %v1413 = vmul.f32 %v1407, %v514
        %v1414 = vmul.f32 %v1409, %v514
        %v1415 = vmul.f32 %v1411, %v514
        %v1416 = vsub.f32 %v1398, %v1412
        %v1417 = vsub.f32 %v1399, %v1413
        %v1418 = vsub.f32 %v1400, %v1414
        %v1419 = vsub.f32 %v1401, %v1415
        %v1420 = vmul.f32 %v1416, %v1416
        %v1421 = vmul.f32 %v1417, %v1417
        %v1422 = vmul.f32 %v1418, %v1418
        %v1423 = vmul.f32 %v1419, %v1419
        %1424 = vadd.xlane.f32.xlu0 %v1420
        %v1425 = vpop.xlane.xlu0 %1424
        %1426 = vadd.xlane.f32.xlu0 %v1421
        %v1427 = vpop.xlane.xlu0 %1426
        %1428 = vadd.xlane.f32.xlu0 %v1422
        %v1429 = vpop.xlane.xlu0 %1428
        %1430 = vadd.xlane.f32.xlu0 %v1423
        %v1431 = vpop.xlane.xlu0 %1430
        %v1432 = vmul.f32 %v1425, %v514
        %v1433 = vmul.f32 %v1427, %v514
        %v1434 = vmul.f32 %v1429, %v514
        %v1435 = vmul.f32 %v1431, %v514
        %v1436 = vadd.f32 %v1432, 1e-05
        %v1437 = vadd.f32 %v1433, 1e-05
        %v1438 = vadd.f32 %v1434, 1e-05
        %v1439 = vadd.f32 %v1435, 1e-05
        %v1440 = vrsqrt.pop %v1436
        %v1441 = vrsqrt.pop %v1437
        %v1442 = vrsqrt.pop %v1438
        %v1443 = vrsqrt.pop %v1439
        %v1444 = vmul.f32 %v1416, %v1440
        %v1445 = vmul.f32 %v1417, %v1441
        %v1446 = vmul.f32 %v1418, %v1442
        %v1447 = vmul.f32 %v1419, %v1443
        %v1449 = vlaneseq
        %v1450 = vshrl.u32 %v1449, 7
        %v1451 = vsub.s32 0, %v1450
        %v1452 = vrot.slane %v1402, %v1451
        %v1454 = vmul.f32 %v1444, %v1452
        %v1455 = vmul.f32 %v1445, %v1452
        %v1456 = vmul.f32 %v1446, %v1452
        %v1457 = vmul.f32 %v1447, %v1452
        %v1459 = vlaneseq
        %v1460 = vshrl.u32 %v1459, 7
        %v1461 = vsub.s32 0, %v1460
        %v1462 = vrot.slane %v1403, %v1461
        %v1464 = vadd.f32 %v1454, %v1462
        %v1465 = vadd.f32 %v1455, %v1462
        %v1466 = vadd.f32 %v1456, %v1462
        %v1467 = vadd.f32 %v1457, %v1462
        %v1468 = vpack.c.bf16 %v1465, %v1464
        %v1469 = vpack.c.bf16 %v1467, %v1466
        %v1470 = vld [vmem:[#allocation2 + $0x10] sm:$0xf]
        %v1471 = vld [vmem:[#allocation2 + $0x24] sm:$0xf]
        %v1472 = vld [vmem:[#allocation2 + $0x38] sm:$0xf]
        %v1473 = vld [vmem:[#allocation2 + $0x4c] sm:$0xf]
        %v1474 = vld [vmem:[#allocation2 + $0x60] sm:$0xf]
        %v1475 = vld [vmem:[#allocation2 + $0x74] sm:$0xf]
        %v1476 = vld [vmem:[#allocation2 + $0x88] sm:$0xf]
        %v1477 = vld [vmem:[#allocation2 + $0x9c] sm:$0xf]
        %v1478 = vld [vmem:[#allocation2 + $0xb0] sm:$0xf]
        %v1479 = vld [vmem:[#allocation2 + $0xc4] sm:$0xf]
        %v1480 = vld [vmem:[#allocation2 + $0xd8] sm:$0xf]
        %v1481 = vld [vmem:[#allocation2 + $0xec] sm:$0xf]
        %v1482 = vld [vmem:[#allocation2 + $0x100] sm:$0xf]
        %v1483 = vld [vmem:[#allocation2 + $0x114] sm:$0xf]
        %v1484 = vld [vmem:[#allocation2 + $0x128] sm:$0xf]
        %v1485 = vld [vmem:[#allocation2 + $0x13c] sm:$0xf]
        %v1486 = vld [vmem:[#allocation6 + $0x6] sm:$0x1]
        %v1488 = vlaneseq
        %v1489 = vshrl.u32 %v1488, 7
        %v1490 = vsub.s32 0, %v1489
        %v1491 = vrot.slane %v1486, %v1490
        %v1509 = vunpack.c.l.b16 %v1470
        %v1510 = vunpack.c.l.b16 %v1471
        %v1511 = vunpack.c.l.b16 %v1472
        %v1512 = vunpack.c.l.b16 %v1473
        %v1513 = vunpack.c.l.b16 %v1474
        %v1514 = vunpack.c.l.b16 %v1475
        %v1515 = vunpack.c.l.b16 %v1476
        %v1516 = vunpack.c.l.b16 %v1477
        %v1517 = vunpack.c.l.b16 %v1478
        %v1518 = vunpack.c.l.b16 %v1479
        %v1519 = vunpack.c.l.b16 %v1480
        %v1520 = vunpack.c.l.b16 %v1481
        %v1521 = vunpack.c.l.b16 %v1482
        %v1522 = vunpack.c.l.b16 %v1483
        %v1523 = vunpack.c.l.b16 %v1484
        %v1524 = vunpack.c.l.b16 %v1485
        %v1525 = vpack.c.b16 %v1510, %v1509
        %v1526 = vpack.c.b16 %v1512, %v1511
        %v1527 = vpack.c.b16 %v1514, %v1513
        %v1528 = vpack.c.b16 %v1516, %v1515
        %v1529 = vpack.c.b16 %v1518, %v1517
        %v1530 = vpack.c.b16 %v1520, %v1519
        %v1531 = vpack.c.b16 %v1522, %v1521
        %v1532 = vpack.c.b16 %v1524, %v1523
        %1541 = vmatprep.subr.bf16.mxu0 0
        %1542 = vmatpush1.bf16.msra.mxu0 %v1532
        %1543 = vmatprep.subr.bf16.mxu0 0
        %1544 = vmatpush1.bf16.msra.mxu0 %v1531
        %1545 = vmatprep.subr.bf16.mxu0 0
        %1546 = vmatpush1.bf16.msra.mxu0 %v1530
        %1547 = vmatprep.subr.bf16.mxu0 0
        %1548 = vmatpush1.bf16.msra.mxu0 %v1529
        %1549 = vmatprep.subr.bf16.mxu0 0
        %1550 = vmatpush1.bf16.msra.mxu0 %v1528
        %1551 = vmatprep.subr.bf16.mxu0 0
        %1552 = vmatpush1.bf16.msra.mxu0 %v1527
        %1553 = vmatprep.subr.bf16.mxu0 0
        %1554 = vmatpush1.bf16.msra.mxu0 %v1526
        %1555 = vmatprep.subr.bf16.mxu0 0
        %1556 = vmatpush1.bf16.msra.mxu0 %v1525
        %1557 = vmatprep.subr.bf16.mxu0 0
        %1558 = vmatpush2.bf16.msra.mxu0 0
        %1559 = vmatprep.subr.bf16.mxu0 0
        %1560 = vmatpush2.bf16.msra.mxu0 0
        %1561 = vmatprep.subr.bf16.mxu0 0
        %1562 = vmatpush2.bf16.msra.mxu0 0
        %1563 = vmatprep.subr.bf16.mxu0 0
        %1564 = vmatpush2.bf16.msra.mxu0 0
        %1565 = vmatprep.subr.bf16.mxu0 0
        %1566 = vmatpush2.bf16.msra.mxu0 0
        %1567 = vmatprep.subr.bf16.mxu0 0
        %1568 = vmatpush2.bf16.msra.mxu0 0
        %1569 = vmatprep.subr.bf16.mxu0 0
        %1570 = vmatpush2.bf16.msra.mxu0 0
        %1571 = vmatprep.subr.bf16.mxu0 0
        %1572 = vmatpush2.bf16.msra.mxu0 0
        %1573 = vmatprep.mubr.bf16.mxu0 0
        %1574 = vmatmul.mubr.bf16.gmra.mxu0 %v1468
        %v1575 = vpop.f32.mrf.mxu0
        %v1576 = vadd.f32 %v1491, %v1575
        %v1577 = vpop.f32.mrf.mxu0
        %v1578 = vpop.f32.mrf.mxu0
        %v1579 = vadd.f32 %v1491, %v1578
        %v1580 = vpop.f32.mrf.mxu0
        %1581 = vmatprep.mubr.bf16.mxu0 0
        %1582 = vmatmul.mubr.bf16.gmra.mxu0 %v1469
        %v1583 = vpop.f32.mrf.mxu0
        %v1584 = vadd.f32 %v1491, %v1583
        %v1585 = vpop.f32.mrf.mxu0
        %v1586 = vpop.f32.mrf.mxu0
        %v1587 = vadd.f32 %v1491, %v1586
        %v1588 = vpop.f32.mrf.mxu0
        %1589 = vdwg.mxu0
        %v1590 = vmax.f32 %v1576, 0.0
        %v1591 = vmax.f32 %v1579, 0.0
        %v1592 = vmax.f32 %v1584, 0.0
        %v1593 = vmax.f32 %v1587, 0.0
        %v1594 = vpack.c.bf16 %v1591, %v1590
        %v1595 = vpack.c.bf16 %v1593, %v1592
        %v1596 = vld [vmem:[%s5] sm:$0xf]
        %v1597 = vld [vmem:[%s5 + $0x4] sm:$0xf]
        %v1598 = vld [vmem:[%s5 + $0x8] sm:$0xf]
        %v1599 = vld [vmem:[%s5 + $0xc] sm:$0xf]
        %v1600 = vld [vmem:[%s5 + $0x10] sm:$0xf]
        %v1601 = vld [vmem:[%s5 + $0x14] sm:$0xf]
        %v1602 = vld [vmem:[%s5 + $0x18] sm:$0xf]
        %v1603 = vld [vmem:[%s5 + $0x1c] sm:$0xf]
        %v1604 = vld [vmem:[%s5 + $0x20] sm:$0xf]
        %v1605 = vld [vmem:[%s5 + $0x24] sm:$0xf]
        %v1606 = vld [vmem:[%s5 + $0x28] sm:$0xf]
        %v1607 = vld [vmem:[%s5 + $0x2c] sm:$0xf]
        %v1608 = vld [vmem:[%s5 + $0x30] sm:$0xf]
        %v1609 = vld [vmem:[%s5 + $0x34] sm:$0xf]
        %v1610 = vld [vmem:[%s5 + $0x38] sm:$0xf]
        %v1611 = vld [vmem:[%s5 + $0x3c] sm:$0xf]
        %v1612 = vld [vmem:[#allocation6 + $0x7] sm:$0x1]
        %v1614 = vlaneseq
        %v1615 = vshrl.u32 %v1614, 7
        %v1616 = vsub.s32 0, %v1615
        %v1617 = vrot.slane %v1612, %v1616
        %v1635 = vunpack.c.l.b16 %v1596
        %v1636 = vunpack.c.l.b16 %v1597
        %v1637 = vunpack.c.l.b16 %v1598
        %v1638 = vunpack.c.l.b16 %v1599
        %v1639 = vunpack.c.l.b16 %v1600
        %v1640 = vunpack.c.l.b16 %v1601
        %v1641 = vunpack.c.l.b16 %v1602
        %v1642 = vunpack.c.l.b16 %v1603
        %v1643 = vunpack.c.l.b16 %v1604
        %v1644 = vunpack.c.l.b16 %v1605
        %v1645 = vunpack.c.l.b16 %v1606
        %v1646 = vunpack.c.l.b16 %v1607
        %v1647 = vunpack.c.l.b16 %v1608
        %v1648 = vunpack.c.l.b16 %v1609
        %v1649 = vunpack.c.l.b16 %v1610
        %v1650 = vunpack.c.l.b16 %v1611
        %v1651 = vpack.c.b16 %v1636, %v1635
        %v1652 = vpack.c.b16 %v1638, %v1637
        %v1653 = vpack.c.b16 %v1640, %v1639
        %v1654 = vpack.c.b16 %v1642, %v1641
        %v1655 = vpack.c.b16 %v1644, %v1643
        %v1656 = vpack.c.b16 %v1646, %v1645
        %v1657 = vpack.c.b16 %v1648, %v1647
        %v1658 = vpack.c.b16 %v1650, %v1649
        %1667 = vmatprep.subr.bf16.mxu0 0
        %1668 = vmatpush1.bf16.msra.mxu0 %v1658
        %1669 = vmatprep.subr.bf16.mxu0 0
        %1670 = vmatpush1.bf16.msra.mxu0 %v1657
        %1671 = vmatprep.subr.bf16.mxu0 0
        %1672 = vmatpush1.bf16.msra.mxu0 %v1656
        %1673 = vmatprep.subr.bf16.mxu0 0
        %1674 = vmatpush1.bf16.msra.mxu0 %v1655
        %1675 = vmatprep.subr.bf16.mxu0 0
        %1676 = vmatpush1.bf16.msra.mxu0 %v1654
        %1677 = vmatprep.subr.bf16.mxu0 0
        %1678 = vmatpush1.bf16.msra.mxu0 %v1653
        %1679 = vmatprep.subr.bf16.mxu0 0
        %1680 = vmatpush1.bf16.msra.mxu0 %v1652
        %1681 = vmatprep.subr.bf16.mxu0 0
        %1682 = vmatpush1.bf16.msra.mxu0 %v1651
        %1683 = vmatprep.subr.bf16.mxu0 0
        %1684 = vmatpush2.bf16.msra.mxu0 0
        %1685 = vmatprep.subr.bf16.mxu0 0
        %1686 = vmatpush2.bf16.msra.mxu0 0
        %1687 = vmatprep.subr.bf16.mxu0 0
        %1688 = vmatpush2.bf16.msra.mxu0 0
        %1689 = vmatprep.subr.bf16.mxu0 0
        %1690 = vmatpush2.bf16.msra.mxu0 0
        %1691 = vmatprep.subr.bf16.mxu0 0
        %1692 = vmatpush2.bf16.msra.mxu0 0
        %1693 = vmatprep.subr.bf16.mxu0 0
        %1694 = vmatpush2.bf16.msra.mxu0 0
        %1695 = vmatprep.subr.bf16.mxu0 0
        %1696 = vmatpush2.bf16.msra.mxu0 0
        %1697 = vmatprep.subr.bf16.mxu0 0
        %1698 = vmatpush2.bf16.msra.mxu0 0
        %1699 = vmatprep.mubr.bf16.mxu0 0
        %1700 = vmatmul.mubr.bf16.gmra.mxu0 %v1594
        %v1701 = vpop.f32.mrf.mxu0
        %v1702 = vadd.f32 %v1617, %v1701
        %v1703 = vpop.f32.mrf.mxu0
        %v1704 = vpop.f32.mrf.mxu0
        %v1705 = vadd.f32 %v1617, %v1704
        %v1706 = vpop.f32.mrf.mxu0
        %1707 = vmatprep.mubr.bf16.mxu0 0
        %1708 = vmatmul.mubr.bf16.gmra.mxu0 %v1595
        %v1709 = vpop.f32.mrf.mxu0
        %v1710 = vadd.f32 %v1617, %v1709
        %v1711 = vpop.f32.mrf.mxu0
        %v1712 = vpop.f32.mrf.mxu0
        %v1713 = vadd.f32 %v1617, %v1712
        %v1714 = vpop.f32.mrf.mxu0
        %1715 = vdwg.mxu0
        %v1716 = vadd.f32 %v1464, %v1702
        %v1717 = vadd.f32 %v1465, %v1705
        %v1718 = vadd.f32 %v1466, %v1710
        %v1719 = vadd.f32 %v1467, %v1713
        %v1720 = vld [vmem:[#allocation6 + $0x8] sm:$0x1]
        %v1721 = vld [vmem:[#allocation6 + $0x9] sm:$0x1]
        %1722 = vadd.xlane.f32.xlu0 %v1716
        %v1723 = vpop.xlane.xlu0 %1722
        %1724 = vadd.xlane.f32.xlu0 %v1717
        %v1725 = vpop.xlane.xlu0 %1724
        %1726 = vadd.xlane.f32.xlu0 %v1718
        %v1727 = vpop.xlane.xlu0 %1726
        %1728 = vadd.xlane.f32.xlu0 %v1719
        %v1729 = vpop.xlane.xlu0 %1728
        %v1730 = vmul.f32 %v1723, %v514
        %v1731 = vmul.f32 %v1725, %v514
        %v1732 = vmul.f32 %v1727, %v514
        %v1733 = vmul.f32 %v1729, %v514
        %v1734 = vsub.f32 %v1716, %v1730
        %v1735 = vsub.f32 %v1717, %v1731
        %v1736 = vsub.f32 %v1718, %v1732
        %v1737 = vsub.f32 %v1719, %v1733
        %v1738 = vmul.f32 %v1734, %v1734
        %v1739 = vmul.f32 %v1735, %v1735
        %v1740 = vmul.f32 %v1736, %v1736
        %v1741 = vmul.f32 %v1737, %v1737
        %1742 = vadd.xlane.f32.xlu0 %v1738
        %v1743 = vpop.xlane.xlu0 %1742
        %1744 = vadd.xlane.f32.xlu0 %v1739
        %v1745 = vpop.xlane.xlu0 %1744
        %1746 = vadd.xlane.f32.xlu0 %v1740
        %v1747 = vpop.xlane.xlu0 %1746
        %1748 = vadd.xlane.f32.xlu0 %v1741
        %v1749 = vpop.xlane.xlu0 %1748
        %v1750 = vmul.f32 %v1743, %v514
        %v1751 = vmul.f32 %v1745, %v514
        %v1752 = vmul.f32 %v1747, %v514
        %v1753 = vmul.f32 %v1749, %v514
        %v1754 = vadd.f32 %v1750, 1e-05
        %v1755 = vadd.f32 %v1751, 1e-05
        %v1756 = vadd.f32 %v1752, 1e-05
        %v1757 = vadd.f32 %v1753, 1e-05
        %v1758 = vrsqrt.pop %v1754
        %v1759 = vrsqrt.pop %v1755
        %v1760 = vrsqrt.pop %v1756
        %v1761 = vrsqrt.pop %v1757
        %v1762 = vmul.f32 %v1734, %v1758
        %v1763 = vmul.f32 %v1735, %v1759
        %v1764 = vmul.f32 %v1736, %v1760
        %v1765 = vmul.f32 %v1737, %v1761
        %v1767 = vlaneseq
        %v1768 = vshrl.u32 %v1767, 7
        %v1769 = vsub.s32 0, %v1768
        %v1770 = vrot.slane %v1720, %v1769
        %v1772 = vmul.f32 %v1762, %v1770
        %v1773 = vmul.f32 %v1763, %v1770
        %v1774 = vmul.f32 %v1764, %v1770
        %v1775 = vmul.f32 %v1765, %v1770
        %v1777 = vlaneseq
        %v1778 = vshrl.u32 %v1777, 7
        %v1779 = vsub.s32 0, %v1778
        %v1780 = vrot.slane %v1721, %v1779
        %v1782 = vadd.f32 %v1772, %v1780
        %v1783 = vadd.f32 %v1773, %v1780
        %v1784 = vadd.f32 %v1774, %v1780
        %v1785 = vadd.f32 %v1775, %v1780
        %s1786 = sld [smem:[#allocation9]]
        %v1787 = vstv %s1786
        %v1788 = vmul.f32 %v1787, %v1782
        %s1789 = sld [smem:[#allocation9 + $0x1]]
        %v1790 = vstv %s1789
        %v1791 = vmul.f32 %v1790, %v1783
        %v1792 = vadd.f32 %v1788, %v1791
        %s1793 = sld [smem:[#allocation9 + $0x2]]
        %v1794 = vstv %s1793
        %v1795 = vmul.f32 %v1794, %v1784
        %v1796 = vadd.f32 %v1792, %v1795
        %s1797 = sld [smem:[#allocation9 + $0x3]]
        %v1798 = vstv %s1797
        %v1799 = vmul.f32 %v1798, %v1785
        %v1800 = vadd.f32 %v1796, %v1799
        %s1801 = sld [smem:[#allocation9 + $0x10]]
        %v1802 = vstv %s1801
        %v1803 = vadd.f32 %v1800, %v1802
        %v1804 = vmax.f32 %v1803, 0.0
        %v1805 = vadd.f32 %v1804, %v1782
        %s1806 = sld [smem:[#allocation9 + $0x4]]
        %v1807 = vstv %s1806
        %v1808 = vmul.f32 %v1807, %v1782
        %s1809 = sld [smem:[#allocation9 + $0x5]]
        %v1810 = vstv %s1809
        %v1811 = vmul.f32 %v1810, %v1783
        %v1812 = vadd.f32 %v1808, %v1811
        %s1813 = sld [smem:[#allocation9 + $0x6]]
        %v1814 = vstv %s1813
        %v1815 = vmul.f32 %v1814, %v1784
        %v1816 = vadd.f32 %v1812, %v1815
        %s1817 = sld [smem:[#allocation9 + $0x7]]
        %v1818 = vstv %s1817
        %v1819 = vmul.f32 %v1818, %v1785
        %v1820 = vadd.f32 %v1816, %v1819
        %s1821 = sld [smem:[#allocation9 + $0x11]]
        %v1822 = vstv %s1821
        %v1823 = vadd.f32 %v1820, %v1822
        %v1824 = vmax.f32 %v1823, 0.0
        %v1825 = vadd.f32 %v1824, %v1783
        %s1826 = sld [smem:[#allocation9 + $0x8]]
        %v1827 = vstv %s1826
        %v1828 = vmul.f32 %v1827, %v1782
        %s1829 = sld [smem:[#allocation9 + $0x9]]
        %v1830 = vstv %s1829
        %v1831 = vmul.f32 %v1830, %v1783
        %v1832 = vadd.f32 %v1828, %v1831
        %s1833 = sld [smem:[#allocation9 + $0xa]]
        %v1834 = vstv %s1833
        %v1835 = vmul.f32 %v1834, %v1784
        %v1836 = vadd.f32 %v1832, %v1835
        %s1837 = sld [smem:[#allocation9 + $0xb]]
        %v1838 = vstv %s1837
        %v1839 = vmul.f32 %v1838, %v1785
        %v1840 = vadd.f32 %v1836, %v1839
        %s1841 = sld [smem:[#allocation9 + $0x12]]
        %v1842 = vstv %s1841
        %v1843 = vadd.f32 %v1840, %v1842
        %v1844 = vmax.f32 %v1843, 0.0
        %v1845 = vadd.f32 %v1844, %v1784
        %s1846 = sld [smem:[#allocation9 + $0xc]]
        %v1847 = vstv %s1846
        %v1848 = vmul.f32 %v1847, %v1782
        %s1849 = sld [smem:[#allocation9 + $0xd]]
        %v1850 = vstv %s1849
        %v1851 = vmul.f32 %v1850, %v1783
        %v1852 = vadd.f32 %v1848, %v1851
        %s1853 = sld [smem:[#allocation9 + $0xe]]
        %v1854 = vstv %s1853
        %v1855 = vmul.f32 %v1854, %v1784
        %v1856 = vadd.f32 %v1852, %v1855
        %s1857 = sld [smem:[#allocation9 + $0xf]]
        %v1858 = vstv %s1857
        %v1859 = vmul.f32 %v1858, %v1785
        %v1860 = vadd.f32 %v1856, %v1859
        %s1861 = sld [smem:[#allocation9 + $0x13]]
        %v1862 = vstv %s1861
        %v1863 = vadd.f32 %v1860, %v1862
        %v1864 = vmax.f32 %v1863, 0.0
        %v1865 = vadd.f32 %v1864, %v1785
        %v1866 = vpack.c.bf16 %v1825, %v1805
        %v1867 = vpack.c.bf16 %v1865, %v1845
        %s1868 = scalar_lea.vmem [#allocation2], 320
        %v1869 = vld [vmem:[%s1868] sm:$0xff]
        %v1870 = vld [vmem:[%s1868 + $0x8] sm:$0xf]
        %v1871 = vld [vmem:[%s1868 + $0x14] sm:$0xff]
        %v1872 = vld [vmem:[%s1868 + $0x1c] sm:$0xf]
        %v1873 = vld [vmem:[%s1868 + $0x28] sm:$0xff]
        %v1874 = vld [vmem:[%s1868 + $0x30] sm:$0xf]
        %v1875 = vld [vmem:[%s1868 + $0x3c] sm:$0xff]
        %v1876 = vld [vmem:[%s1868 + $0x44] sm:$0xf]
        %v1877 = vld [vmem:[%s1868 + $0x50] sm:$0xff]
        %v1878 = vld [vmem:[%s1868 + $0x58] sm:$0xf]
        %v1879 = vld [vmem:[%s1868 + $0x64] sm:$0xff]
        %v1880 = vld [vmem:[%s1868 + $0x6c] sm:$0xf]
        %v1881 = vld [vmem:[%s1868 + $0x78] sm:$0xff]
        %v1882 = vld [vmem:[%s1868 + $0x80] sm:$0xf]
        %v1883 = vld [vmem:[%s1868 + $0x8c] sm:$0xff]
        %v1884 = vld [vmem:[%s1868 + $0x94] sm:$0xf]
        %v1885 = vld [vmem:[%s1868 + $0xa0] sm:$0xff]
        %v1886 = vld [vmem:[%s1868 + $0xa8] sm:$0xf]
        %v1887 = vld [vmem:[%s1868 + $0xb4] sm:$0xff]
        %v1888 = vld [vmem:[%s1868 + $0xbc] sm:$0xf]
        %v1889 = vld [vmem:[%s1868 + $0xc8] sm:$0xff]
        %v1890 = vld [vmem:[%s1868 + $0xd0] sm:$0xf]
        %v1891 = vld [vmem:[%s1868 + $0xdc] sm:$0xff]
        %v1892 = vld [vmem:[%s1868 + $0xe4] sm:$0xf]
        %v1893 = vld [vmem:[%s1868 + $0xf0] sm:$0xff]
        %v1894 = vld [vmem:[%s1868 + $0xf8] sm:$0xf]
        %v1895 = vld [vmem:[%s1868 + $0x104] sm:$0xff]
        %v1896 = vld [vmem:[%s1868 + $0x10c] sm:$0xf]
        %v1897 = vld [vmem:[%s1868 + $0x118] sm:$0xff]
        %v1898 = vld [vmem:[%s1868 + $0x120] sm:$0xf]
        %v1899 = vld [vmem:[%s1868 + $0x12c] sm:$0xff]
        %v1900 = vld [vmem:[%s1868 + $0x134] sm:$0xf]
        %s1901 = scalar_lea.vmem [#allocation6], 10
        %v1902 = vld [vmem:[%s1901] sm:$0x7]
        %v1904 = vlaneseq
        %v1905 = vshrl.u32 %v1904, 7
        %v1906 = vsub.s32 0, %v1905
        %v1907 = vrot.slane %v1902, %v1906
        %v1908 = vlaneseq
        %v1909 = vshrl.u32 %v1908, 7
        %v1910 = vsub.s32 1, %v1909
        %v1911 = vrot.slane %v1902, %v1910
        %v1912 = vlaneseq
        %v1913 = vshrl.u32 %v1912, 7
        %v1914 = vsub.s32 2, %v1913
        %v1915 = vrot.slane %v1902, %v1914
        %v1951 = vunpack.c.l.b16 %v1869
        %v1952 = vunpack.c.h.b16 %v1869
        %v1953 = vunpack.c.l.b16 %v1870
        %v1954 = vunpack.c.l.b16 %v1871
        %v1955 = vunpack.c.h.b16 %v1871
        %v1956 = vunpack.c.l.b16 %v1872
        %v1957 = vunpack.c.l.b16 %v1873
        %v1958 = vunpack.c.h.b16 %v1873
        %v1959 = vunpack.c.l.b16 %v1874
        %v1960 = vunpack.c.l.b16 %v1875
        %v1961 = vunpack.c.h.b16 %v1875
        %v1962 = vunpack.c.l.b16 %v1876
        %v1963 = vunpack.c.l.b16 %v1877
        %v1964 = vunpack.c.h.b16 %v1877
        %v1965 = vunpack.c.l.b16 %v1878
        %v1966 = vunpack.c.l.b16 %v1879
        %v1967 = vunpack.c.h.b16 %v1879
        %v1968 = vunpack.c.l.b16 %v1880
        %v1969 = vunpack.c.l.b16 %v1881
        %v1970 = vunpack.c.h.b16 %v1881
        %v1971 = vunpack.c.l.b16 %v1882
        %v1972 = vunpack.c.l.b16 %v1883
        %v1973 = vunpack.c.h.b16 %v1883
        %v1974 = vunpack.c.l.b16 %v1884
        %v1975 = vunpack.c.l.b16 %v1885
        %v1976 = vunpack.c.h.b16 %v1885
        %v1977 = vunpack.c.l.b16 %v1886
        %v1978 = vunpack.c.l.b16 %v1887
        %v1979 = vunpack.c.h.b16 %v1887
        %v1980 = vunpack.c.l.b16 %v1888
        %v1981 = vunpack.c.l.b16 %v1889
        %v1982 = vunpack.c.h.b16 %v1889
        %v1983 = vunpack.c.l.b16 %v1890
        %v1984 = vunpack.c.l.b16 %v1891
        %v1985 = vunpack.c.h.b16 %v1891
        %v1986 = vunpack.c.l.b16 %v1892
        %v1987 = vunpack.c.l.b16 %v1893
        %v1988 = vunpack.c.h.b16 %v1893
        %v1989 = vunpack.c.l.b16 %v1894
        %v1990 = vunpack.c.l.b16 %v1895
        %v1991 = vunpack.c.h.b16 %v1895
        %v1992 = vunpack.c.l.b16 %v1896
        %v1993 = vunpack.c.l.b16 %v1897
        %v1994 = vunpack.c.h.b16 %v1897
        %v1995 = vunpack.c.l.b16 %v1898
        %v1996 = vunpack.c.l.b16 %v1899
        %v1997 = vunpack.c.h.b16 %v1899
        %v1998 = vunpack.c.l.b16 %v1900
        %v1999 = vpack.c.b16 %v1954, %v1951
        %v2000 = vpack.c.b16 %v1955, %v1952
        %v2001 = vpack.c.b16 %v1956, %v1953
        %v2002 = vpack.c.b16 %v1960, %v1957
        %v2003 = vpack.c.b16 %v1961, %v1958
        %v2004 = vpack.c.b16 %v1962, %v1959
        %v2005 = vpack.c.b16 %v1966, %v1963
        %v2006 = vpack.c.b16 %v1967, %v1964
        %v2007 = vpack.c.b16 %v1968, %v1965
        %v2008 = vpack.c.b16 %v1972, %v1969
        %v2009 = vpack.c.b16 %v1973, %v1970
        %v2010 = vpack.c.b16 %v1974, %v1971
        %v2011 = vpack.c.b16 %v1978, %v1975
        %v2012 = vpack.c.b16 %v1979, %v1976
        %v2013 = vpack.c.b16 %v1980, %v1977
        %v2014 = vpack.c.b16 %v1984, %v1981
        %v2015 = vpack.c.b16 %v1985, %v1982
        %v2016 = vpack.c.b16 %v1986, %v1983
        %v2017 = vpack.c.b16 %v1990, %v1987
        %v2018 = vpack.c.b16 %v1991, %v1988
        %v2019 = vpack.c.b16 %v1992, %v1989
        %v2020 = vpack.c.b16 %v1996, %v1993
        %v2021 = vpack.c.b16 %v1997, %v1994
        %v2022 = vpack.c.b16 %v1998, %v1995
        %2047 = vmatprep.subr.bf16.mxu0 %v2021
        %2048 = vmatpush1.bf16.msra.mxu0 %v2020
        %2049 = vmatprep.subr.bf16.mxu0 %v2018
        %2050 = vmatpush1.bf16.msra.mxu0 %v2017
        %2051 = vmatprep.subr.bf16.mxu0 %v2015
        %2052 = vmatpush1.bf16.msra.mxu0 %v2014
        %2053 = vmatprep.subr.bf16.mxu0 %v2012
        %2054 = vmatpush1.bf16.msra.mxu0 %v2011
        %2055 = vmatprep.subr.bf16.mxu0 %v2009
        %2056 = vmatpush1.bf16.msra.mxu0 %v2008
        %2057 = vmatprep.subr.bf16.mxu0 %v2006
        %2058 = vmatpush1.bf16.msra.mxu0 %v2005
        %2059 = vmatprep.subr.bf16.mxu0 %v2003
        %2060 = vmatpush1.bf16.msra.mxu0 %v2002
        %2061 = vmatprep.subr.bf16.mxu0 %v2000
        %2062 = vmatpush1.bf16.msra.mxu0 %v1999
        %2063 = vmatprep.subr.bf16.mxu0 0
        %2064 = vmatpush2.bf16.msra.mxu0 0
        %2065 = vmatprep.subr.bf16.mxu0 0
        %2066 = vmatpush2.bf16.msra.mxu0 0
        %2067 = vmatprep.subr.bf16.mxu0 0
        %2068 = vmatpush2.bf16.msra.mxu0 0
        %2069 = vmatprep.subr.bf16.mxu0 0
        %2070 = vmatpush2.bf16.msra.mxu0 0
        %2071 = vmatprep.subr.bf16.mxu0 0
        %2072 = vmatpush2.bf16.msra.mxu0 0
        %2073 = vmatprep.subr.bf16.mxu0 0
        %2074 = vmatpush2.bf16.msra.mxu0 0
        %2075 = vmatprep.subr.bf16.mxu0 0
        %2076 = vmatpush2.bf16.msra.mxu0 0
        %2077 = vmatprep.subr.bf16.mxu0 0
        %2078 = vmatpush2.bf16.msra.mxu0 0
        %2079 = vmatprep.mubr.bf16.mxu0 0
        %2080 = vmatmul.mubr.bf16.gmra.mxu0 %v1866
        %v2081 = vpop.f32.mrf.mxu0
        %v2082 = vadd.f32 %v1907, %v2081
        %v2083 = vpop.f32.mrf.mxu0
        %v2084 = vadd.f32 %v1911, %v2083
        %v2085 = vpop.f32.mrf.mxu0
        %v2086 = vadd.f32 %v1907, %v2085
        %v2087 = vpop.f32.mrf.mxu0
        %v2088 = vadd.f32 %v1911, %v2087
        %2089 = vmatprep.mubr.bf16.mxu0 0
        %2090 = vmatmul.mubr.bf16.gmra.mxu0 %v1867
        %v2091 = vpop.f32.mrf.mxu0
        %v2092 = vadd.f32 %v1907, %v2091
        %v2093 = vpop.f32.mrf.mxu0
        %v2094 = vadd.f32 %v1911, %v2093
        %v2095 = vpop.f32.mrf.mxu0
        %v2096 = vadd.f32 %v1907, %v2095
        %v2097 = vpop.f32.mrf.mxu0
        %v2098 = vadd.f32 %v1911, %v2097
        %2099 = vdwg.mxu0
        %2100 = vmatprep.subr.bf16.mxu0 0
        %2101 = vmatpush1.bf16.msra.mxu0 %v2022
        %2102 = vmatprep.subr.bf16.mxu0 0
        %2103 = vmatpush1.bf16.msra.mxu0 %v2019
        %2104 = vmatprep.subr.bf16.mxu0 0
        %2105 = vmatpush1.bf16.msra.mxu0 %v2016
        %2106 = vmatprep.subr.bf16.mxu0 0
        %2107 = vmatpush1.bf16.msra.mxu0 %v2013
        %2108 = vmatprep.subr.bf16.mxu0 0
        %2109 = vmatpush1.bf16.msra.mxu0 %v2010
        %2110 = vmatprep.subr.bf16.mxu0 0
        %2111 = vmatpush1.bf16.msra.mxu0 %v2007
        %2112 = vmatprep.subr.bf16.mxu0 0
        %2113 = vmatpush1.bf16.msra.mxu0 %v2004
        %2114 = vmatprep.subr.bf16.mxu0 0
        %2115 = vmatpush1.bf16.msra.mxu0 %v2001
        %2116 = vmatprep.subr.bf16.mxu0 0
        %2117 = vmatpush2.bf16.msra.mxu0 0
        %2118 = vmatprep.subr.bf16.mxu0 0
        %2119 = vmatpush2.bf16.msra.mxu0 0
        %2120 = vmatprep.subr.bf16.mxu0 0
        %2121 = vmatpush2.bf16.msra.mxu0 0
        %2122 = vmatprep.subr.bf16.mxu0 0
        %2123 = vmatpush2.bf16.msra.mxu0 0
        %2124 = vmatprep.subr.bf16.mxu0 0
        %2125 = vmatpush2.bf16.msra.mxu0 0
        %2126 = vmatprep.subr.bf16.mxu0 0
        %2127 = vmatpush2.bf16.msra.mxu0 0
        %2128 = vmatprep.subr.bf16.mxu0 0
        %2129 = vmatpush2.bf16.msra.mxu0 0
        %2130 = vmatprep.subr.bf16.mxu0 0
        %2131 = vmatpush2.bf16.msra.mxu0 0
        %2132 = vmatprep.mubr.bf16.mxu0 0
        %2133 = vmatmul.mubr.bf16.gmra.mxu0 %v1866
        %v2134 = vpop.f32.mrf.mxu0
        %v2135 = vadd.f32 %v1915, %v2134
        %v2136 = vpop.f32.mrf.mxu0
        %v2137 = vpop.f32.mrf.mxu0
        %v2138 = vadd.f32 %v1915, %v2137
        %v2139 = vpop.f32.mrf.mxu0
        %2140 = vmatprep.mubr.bf16.mxu0 0
        %2141 = vmatmul.mubr.bf16.gmra.mxu0 %v1867
        %v2142 = vpop.f32.mrf.mxu0
        %v2143 = vadd.f32 %v1915, %v2142
        %v2144 = vpop.f32.mrf.mxu0
        %v2145 = vpop.f32.mrf.mxu0
        %v2146 = vadd.f32 %v1915, %v2145
        %v2147 = vpop.f32.mrf.mxu0
        %2148 = vdwg.mxu0
        %v2149 = vpack.c.bf16 %v2082, %v2082
        %v2150 = vpack.c.bf16 %v2086, %v2086
        %v2151 = vpack.c.bf16 %v2092, %v2092
        %v2152 = vpack.c.bf16 %v2096, %v2096
        %v2153 = vpack.c.bf16 %v2084, %v2084
        %v2154 = vpack.c.bf16 %v2088, %v2088
        %v2155 = vpack.c.bf16 %v2094, %v2094
        %v2156 = vpack.c.bf16 %v2098, %v2098
        %2157 = vmatprep.subr.bf16.mxu0 0
        %2158 = vmatpush1.bf16.xpose.msra.mxu0 0
        %2159 = vmatprep.subr.bf16.mxu0 0
        %2160 = vmatpush1.bf16.xpose.msra.mxu0 0
        %2161 = vmatprep.subr.bf16.mxu0 0
        %2162 = vmatpush1.bf16.xpose.msra.mxu0 0
        %2163 = vmatprep.subr.bf16.mxu0 0
        %2164 = vmatpush1.bf16.xpose.msra.mxu0 0
        %2165 = vmatprep.subr.bf16.mxu0 0
        %2166 = vmatpush1.bf16.xpose.msra.mxu0 0
        %2167 = vmatprep.subr.bf16.mxu0 0
        %2168 = vmatpush1.bf16.xpose.msra.mxu0 0
        %2169 = vmatprep.subr.bf16.mxu0 0
        %2170 = vmatpush1.bf16.xpose.msra.mxu0 0
        %2171 = vmatprep.subr.bf16.mxu0 0
        %2172 = vmatpush1.bf16.xpose.msra.mxu0 %v2153
        %2173 = vmatprep.subr.bf16.mxu0 0
        %2174 = vmatpush2.bf16.xpose.msra.mxu0 0
        %2175 = vmatprep.subr.bf16.mxu0 0
        %2176 = vmatpush2.bf16.xpose.msra.mxu0 0
        %2177 = vmatprep.subr.bf16.mxu0 0
        %2178 = vmatpush2.bf16.xpose.msra.mxu0 0
        %2179 = vmatprep.subr.bf16.mxu0 0
        %2180 = vmatpush2.bf16.xpose.msra.mxu0 0
        %2181 = vmatprep.subr.bf16.mxu0 0
        %2182 = vmatpush2.bf16.xpose.msra.mxu0 0
        %2183 = vmatprep.subr.bf16.mxu0 0
        %2184 = vmatpush2.bf16.xpose.msra.mxu0 0
        %2185 = vmatprep.subr.bf16.mxu0 0
        %2186 = vmatpush2.bf16.xpose.msra.mxu0 0
        %2187 = vmatprep.subr.bf16.mxu0 0
        %2188 = vmatpush2.bf16.xpose.msra.mxu0 0
        %2189 = vmatprep.mubr.bf16.mxu0 0
        %2190 = vmatmul.mubr.bf16.gmra.mxu0 %v2149
        %v2191 = vpop.f32.mrf.mxu0
        %v2192 = vadd.f32 0.0, %v2191
        %v2193 = vpop.f32.mrf.mxu0
        %v2194 = vpop.f32.mrf.mxu0
        %v2195 = vpop.f32.mrf.mxu0
        %2196 = vdwg.mxu0
        %2197 = vmatprep.subr.bf16.mxu0 0
        %2198 = vmatpush1.bf16.xpose.msra.mxu0 0
        %2199 = vmatprep.subr.bf16.mxu0 0
        %2200 = vmatpush1.bf16.xpose.msra.mxu0 0
        %2201 = vmatprep.subr.bf16.mxu0 0
        %2202 = vmatpush1.bf16.xpose.msra.mxu0 0
        %2203 = vmatprep.subr.bf16.mxu0 0
        %2204 = vmatpush1.bf16.xpose.msra.mxu0 0
        %2205 = vmatprep.subr.bf16.mxu0 0
        %2206 = vmatpush1.bf16.xpose.msra.mxu0 0
        %2207 = vmatprep.subr.bf16.mxu0 0
        %2208 = vmatpush1.bf16.xpose.msra.mxu0 0
        %2209 = vmatprep.subr.bf16.mxu0 0
        %2210 = vmatpush1.bf16.xpose.msra.mxu0 0
        %2211 = vmatprep.subr.bf16.mxu0 0
        %2212 = vmatpush1.bf16.xpose.msra.mxu0 %v2154
        %2213 = vmatprep.subr.bf16.mxu0 0
        %2214 = vmatpush2.bf16.xpose.msra.mxu0 0
        %2215 = vmatprep.subr.bf16.mxu0 0
        %2216 = vmatpush2.bf16.xpose.msra.mxu0 0
        %2217 = vmatprep.subr.bf16.mxu0 0
        %2218 = vmatpush2.bf16.xpose.msra.mxu0 0
        %2219 = vmatprep.subr.bf16.mxu0 0
        %2220 = vmatpush2.bf16.xpose.msra.mxu0 0
        %2221 = vmatprep.subr.bf16.mxu0 0
        %2222 = vmatpush2.bf16.xpose.msra.mxu0 0
        %2223 = vmatprep.subr.bf16.mxu0 0
        %2224 = vmatpush2.bf16.xpose.msra.mxu0 0
        %2225 = vmatprep.subr.bf16.mxu0 0
        %2226 = vmatpush2.bf16.xpose.msra.mxu0 0
        %2227 = vmatprep.subr.bf16.mxu0 0
        %2228 = vmatpush2.bf16.xpose.msra.mxu0 0
        %2229 = vmatprep.mubr.bf16.mxu0 0
        %2230 = vmatmul.mubr.bf16.gmra.mxu0 %v2150
        %v2231 = vpop.f32.mrf.mxu0
        %v2232 = vadd.f32 0.0, %v2231
        %v2233 = vpop.f32.mrf.mxu0
        %v2234 = vpop.f32.mrf.mxu0
        %v2235 = vpop.f32.mrf.mxu0
        %2236 = vdwg.mxu0
        %2237 = vmatprep.subr.bf16.mxu0 0
        %2238 = vmatpush1.bf16.xpose.msra.mxu0 0
        %2239 = vmatprep.subr.bf16.mxu0 0
        %2240 = vmatpush1.bf16.xpose.msra.mxu0 0
        %2241 = vmatprep.subr.bf16.mxu0 0
        %2242 = vmatpush1.bf16.xpose.msra.mxu0 0
        %2243 = vmatprep.subr.bf16.mxu0 0
        %2244 = vmatpush1.bf16.xpose.msra.mxu0 0
        %2245 = vmatprep.subr.bf16.mxu0 0
        %2246 = vmatpush1.bf16.xpose.msra.mxu0 0
        %2247 = vmatprep.subr.bf16.mxu0 0
        %2248 = vmatpush1.bf16.xpose.msra.mxu0 0
        %2249 = vmatprep.subr.bf16.mxu0 0
        %2250 = vmatpush1.bf16.xpose.msra.mxu0 0
        %2251 = vmatprep.subr.bf16.mxu0 0
        %2252 = vmatpush1.bf16.xpose.msra.mxu0 %v2155
        %2253 = vmatprep.subr.bf16.mxu0 0
        %2254 = vmatpush2.bf16.xpose.msra.mxu0 0
        %2255 = vmatprep.subr.bf16.mxu0 0
        %2256 = vmatpush2.bf16.xpose.msra.mxu0 0
        %2257 = vmatprep.subr.bf16.mxu0 0
        %2258 = vmatpush2.bf16.xpose.msra.mxu0 0
        %2259 = vmatprep.subr.bf16.mxu0 0
        %2260 = vmatpush2.bf16.xpose.msra.mxu0 0
        %2261 = vmatprep.subr.bf16.mxu0 0
        %2262 = vmatpush2.bf16.xpose.msra.mxu0 0
        %2263 = vmatprep.subr.bf16.mxu0 0
        %2264 = vmatpush2.bf16.xpose.msra.mxu0 0
        %2265 = vmatprep.subr.bf16.mxu0 0
        %2266 = vmatpush2.bf16.xpose.msra.mxu0 0
        %2267 = vmatprep.subr.bf16.mxu0 0
        %2268 = vmatpush2.bf16.xpose.msra.mxu0 0
        %2269 = vmatprep.mubr.bf16.mxu0 0
        %2270 = vmatmul.mubr.bf16.gmra.mxu0 %v2151
        %v2271 = vpop.f32.mrf.mxu0
        %v2272 = vadd.f32 0.0, %v2271
        %v2273 = vpop.f32.mrf.mxu0
        %v2274 = vpop.f32.mrf.mxu0
        %v2275 = vpop.f32.mrf.mxu0
        %2276 = vdwg.mxu0
        %2277 = vmatprep.subr.bf16.mxu0 0
        %2278 = vmatpush1.bf16.xpose.msra.mxu0 0
        %2279 = vmatprep.subr.bf16.mxu0 0
        %2280 = vmatpush1.bf16.xpose.msra.mxu0 0
        %2281 = vmatprep.subr.bf16.mxu0 0
        %2282 = vmatpush1.bf16.xpose.msra.mxu0 0
        %2283 = vmatprep.subr.bf16.mxu0 0
        %2284 = vmatpush1.bf16.xpose.msra.mxu0 0
        %2285 = vmatprep.subr.bf16.mxu0 0
        %2286 = vmatpush1.bf16.xpose.msra.mxu0 0
        %2287 = vmatprep.subr.bf16.mxu0 0
        %2288 = vmatpush1.bf16.xpose.msra.mxu0 0
        %2289 = vmatprep.subr.bf16.mxu0 0
        %2290 = vmatpush1.bf16.xpose.msra.mxu0 0
        %2291 = vmatprep.subr.bf16.mxu0 0
        %2292 = vmatpush1.bf16.xpose.msra.mxu0 %v2156
        %2293 = vmatprep.subr.bf16.mxu0 0
        %2294 = vmatpush2.bf16.xpose.msra.mxu0 0
        %2295 = vmatprep.subr.bf16.mxu0 0
        %2296 = vmatpush2.bf16.xpose.msra.mxu0 0
        %2297 = vmatprep.subr.bf16.mxu0 0
        %2298 = vmatpush2.bf16.xpose.msra.mxu0 0
        %2299 = vmatprep.subr.bf16.mxu0 0
        %2300 = vmatpush2.bf16.xpose.msra.mxu0 0
        %2301 = vmatprep.subr.bf16.mxu0 0
        %2302 = vmatpush2.bf16.xpose.msra.mxu0 0
        %2303 = vmatprep.subr.bf16.mxu0 0
        %2304 = vmatpush2.bf16.xpose.msra.mxu0 0
        %2305 = vmatprep.subr.bf16.mxu0 0
        %2306 = vmatpush2.bf16.xpose.msra.mxu0 0
        %2307 = vmatprep.subr.bf16.mxu0 0
        %2308 = vmatpush2.bf16.xpose.msra.mxu0 0
        %2309 = vmatprep.mubr.bf16.mxu0 0
        %2310 = vmatmul.mubr.bf16.gmra.mxu0 %v2152
        %v2311 = vpop.f32.mrf.mxu0
        %v2312 = vadd.f32 0.0, %v2311
        %v2313 = vpop.f32.mrf.mxu0
        %v2314 = vpop.f32.mrf.mxu0
        %v2315 = vpop.f32.mrf.mxu0
        %2316 = vdwg.mxu0
        %v2317 = vmul.f32 %v2192, 0.088388346
        %v2318 = vmul.f32 %v2232, 0.088388346
        %v2319 = vmul.f32 %v2272, 0.088388346
        %v2320 = vmul.f32 %v2312, 0.088388346
        %v2321 = vsel %vm440, %v2317, -inf
        %2322 = vmax.xlane.f32.xlu0 %v2321
        %v2323 = vpop.xlane.xlu0 %2322
        %v2324 = vsel %vm440, %v2318, -inf
        %2325 = vmax.xlane.f32.xlu0 %v2324
        %v2326 = vpop.xlane.xlu0 %2325
        %v2327 = vsel %vm440, %v2319, -inf
        %2328 = vmax.xlane.f32.xlu0 %v2327
        %v2329 = vpop.xlane.xlu0 %2328
        %v2330 = vsel %vm440, %v2320, -inf
        %2331 = vmax.xlane.f32.xlu0 %v2330
        %v2332 = vpop.xlane.xlu0 %2331
        %v2333 = vsub.f32 %v2317, %v2323
        %v2334 = vsub.f32 %v2318, %v2326
        %v2335 = vsub.f32 %v2319, %v2329
        %v2336 = vsub.f32 %v2320, %v2332
        %v2337 = vmul.f32 %v2333, 1.442695
        %v2338 = vpow.pop %v2337
        %v2339 = vmul.f32 %v2334, 1.442695
        %v2340 = vpow.pop %v2339
        %v2341 = vmul.f32 %v2335, 1.442695
        %v2342 = vpow.pop %v2341
        %v2343 = vmul.f32 %v2336, 1.442695
        %v2344 = vpow.pop %v2343
        %v2345 = vsel %vm440, %v2338, 0.0
        %2346 = vadd.xlane.f32.xlu0 %v2345
        %v2347 = vpop.xlane.xlu0 %2346
        %v2348 = vsel %vm440, %v2340, 0.0
        %2349 = vadd.xlane.f32.xlu0 %v2348
        %v2350 = vpop.xlane.xlu0 %2349
        %v2351 = vsel %vm440, %v2342, 0.0
        %2352 = vadd.xlane.f32.xlu0 %v2351
        %v2353 = vpop.xlane.xlu0 %2352
        %v2354 = vsel %vm440, %v2344, 0.0
        %2355 = vadd.xlane.f32.xlu0 %v2354
        %v2356 = vpop.xlane.xlu0 %2355
        %v2357 = vrcp.pop %v2347
        %v2358 = vrcp.pop %v2350
        %v2359 = vrcp.pop %v2353
        %v2360 = vrcp.pop %v2356
        %v2361 = vmul.f32 %v2338, %v2357
        %v2362 = vmul.f32 %v2340, %v2358
        %v2363 = vmul.f32 %v2342, %v2359
        %v2364 = vmul.f32 %v2344, %v2360
        %v2365 = vpack.c.bf16 %v2361, %v2361
        %v2366 = vpack.c.bf16 %v2362, %v2362
        %v2367 = vpack.c.bf16 %v2363, %v2363
        %v2368 = vpack.c.bf16 %v2364, %v2364
        %v2369 = vpack.c.bf16 %v2135, %v2135
        %v2370 = vpack.c.bf16 %v2138, %v2138
        %v2371 = vpack.c.bf16 %v2143, %v2143
        %v2372 = vpack.c.bf16 %v2146, %v2146
        %v2374 = vsel %vm440, %v2365, 0
        %v2377 = vsel %vm447, %v2369, 0
        %2379 = vmatprep.subr.bf16.mxu0 0
        %2380 = vmatpush1.bf16.msra.mxu0 0
        %2381 = vmatprep.subr.bf16.mxu0 0
        %2382 = vmatpush1.bf16.msra.mxu0 0
        %2383 = vmatprep.subr.bf16.mxu0 0
        %2384 = vmatpush1.bf16.msra.mxu0 0
        %2385 = vmatprep.subr.bf16.mxu0 0
        %2386 = vmatpush1.bf16.msra.mxu0 0
        %2387 = vmatprep.subr.bf16.mxu0 0
        %2388 = vmatpush1.bf16.msra.mxu0 0
        %2389 = vmatprep.subr.bf16.mxu0 0
        %2390 = vmatpush1.bf16.msra.mxu0 0
        %2391 = vmatprep.subr.bf16.mxu0 0
        %2392 = vmatpush1.bf16.msra.mxu0 0
        %2393 = vmatprep.subr.bf16.mxu0 0
        %2394 = vmatpush1.bf16.msra.mxu0 %v2377
        %2395 = vmatprep.subr.bf16.mxu0 0
        %2396 = vmatpush2.bf16.msra.mxu0 0
        %2397 = vmatprep.subr.bf16.mxu0 0
        %2398 = vmatpush2.bf16.msra.mxu0 0
        %2399 = vmatprep.subr.bf16.mxu0 0
        %2400 = vmatpush2.bf16.msra.mxu0 0
        %2401 = vmatprep.subr.bf16.mxu0 0
        %2402 = vmatpush2.bf16.msra.mxu0 0
        %2403 = vmatprep.subr.bf16.mxu0 0
        %2404 = vmatpush2.bf16.msra.mxu0 0
        %2405 = vmatprep.subr.bf16.mxu0 0
        %2406 = vmatpush2.bf16.msra.mxu0 0
        %2407 = vmatprep.subr.bf16.mxu0 0
        %2408 = vmatpush2.bf16.msra.mxu0 0
        %2409 = vmatprep.subr.bf16.mxu0 0
        %2410 = vmatpush2.bf16.msra.mxu0 0
        %2411 = vmatprep.mubr.bf16.mxu0 0
        %2412 = vmatmul.mubr.bf16.gmra.mxu0 %v2374
        %v2413 = vpop.f32.mrf.mxu0
        %v2414 = vadd.f32 0.0, %v2413
        %v2415 = vpop.f32.mrf.mxu0
        %v2416 = vpop.f32.mrf.mxu0
        %v2417 = vpop.f32.mrf.mxu0
        %2418 = vdwg.mxu0
        %v2420 = vsel %vm440, %v2366, 0
        %v2423 = vsel %vm447, %v2370, 0
        %2425 = vmatprep.subr.bf16.mxu0 0
        %2426 = vmatpush1.bf16.msra.mxu0 0
        %2427 = vmatprep.subr.bf16.mxu0 0
        %2428 = vmatpush1.bf16.msra.mxu0 0
        %2429 = vmatprep.subr.bf16.mxu0 0
        %2430 = vmatpush1.bf16.msra.mxu0 0
        %2431 = vmatprep.subr.bf16.mxu0 0
        %2432 = vmatpush1.bf16.msra.mxu0 0
        %2433 = vmatprep.subr.bf16.mxu0 0
        %2434 = vmatpush1.bf16.msra.mxu0 0
        %2435 = vmatprep.subr.bf16.mxu0 0
        %2436 = vmatpush1.bf16.msra.mxu0 0
        %2437 = vmatprep.subr.bf16.mxu0 0
        %2438 = vmatpush1.bf16.msra.mxu0 0
        %2439 = vmatprep.subr.bf16.mxu0 0
        %2440 = vmatpush1.bf16.msra.mxu0 %v2423
        %2441 = vmatprep.subr.bf16.mxu0 0
        %2442 = vmatpush2.bf16.msra.mxu0 0
        %2443 = vmatprep.subr.bf16.mxu0 0
        %2444 = vmatpush2.bf16.msra.mxu0 0
        %2445 = vmatprep.subr.bf16.mxu0 0
        %2446 = vmatpush2.bf16.msra.mxu0 0
        %2447 = vmatprep.subr.bf16.mxu0 0
        %2448 = vmatpush2.bf16.msra.mxu0 0
        %2449 = vmatprep.subr.bf16.mxu0 0
        %2450 = vmatpush2.bf16.msra.mxu0 0
        %2451 = vmatprep.subr.bf16.mxu0 0
        %2452 = vmatpush2.bf16.msra.mxu0 0
        %2453 = vmatprep.subr.bf16.mxu0 0
        %2454 = vmatpush2.bf16.msra.mxu0 0
        %2455 = vmatprep.subr.bf16.mxu0 0
        %2456 = vmatpush2.bf16.msra.mxu0 0
        %2457 = vmatprep.mubr.bf16.mxu0 0
        %2458 = vmatmul.mubr.bf16.gmra.mxu0 %v2420
        %v2459 = vpop.f32.mrf.mxu0
        %v2460 = vadd.f32 0.0, %v2459
        %v2461 = vpop.f32.mrf.mxu0
        %v2462 = vpop.f32.mrf.mxu0
        %v2463 = vpop.f32.mrf.mxu0
        %2464 = vdwg.mxu0
        %v2466 = vsel %vm440, %v2367, 0
        %v2469 = vsel %vm447, %v2371, 0
        %2471 = vmatprep.subr.bf16.mxu0 0
        %2472 = vmatpush1.bf16.msra.mxu0 0
        %2473 = vmatprep.subr.bf16.mxu0 0
        %2474 = vmatpush1.bf16.msra.mxu0 0
        %2475 = vmatprep.subr.bf16.mxu0 0
        %2476 = vmatpush1.bf16.msra.mxu0 0
        %2477 = vmatprep.subr.bf16.mxu0 0
        %2478 = vmatpush1.bf16.msra.mxu0 0
        %2479 = vmatprep.subr.bf16.mxu0 0
        %2480 = vmatpush1.bf16.msra.mxu0 0
        %2481 = vmatprep.subr.bf16.mxu0 0
        %2482 = vmatpush1.bf16.msra.mxu0 0
        %2483 = vmatprep.subr.bf16.mxu0 0
        %2484 = vmatpush1.bf16.msra.mxu0 0
        %2485 = vmatprep.subr.bf16.mxu0 0
        %2486 = vmatpush1.bf16.msra.mxu0 %v2469
        %2487 = vmatprep.subr.bf16.mxu0 0
        %2488 = vmatpush2.bf16.msra.mxu0 0
        %2489 = vmatprep.subr.bf16.mxu0 0
        %2490 = vmatpush2.bf16.msra.mxu0 0
        %2491 = vmatprep.subr.bf16.mxu0 0
        %2492 = vmatpush2.bf16.msra.mxu0 0
        %2493 = vmatprep.subr.bf16.mxu0 0
        %2494 = vmatpush2.bf16.msra.mxu0 0
        %2495 = vmatprep.subr.bf16.mxu0 0
        %2496 = vmatpush2.bf16.msra.mxu0 0
        %2497 = vmatprep.subr.bf16.mxu0 0
        %2498 = vmatpush2.bf16.msra.mxu0 0
        %2499 = vmatprep.subr.bf16.mxu0 0
        %2500 = vmatpush2.bf16.msra.mxu0 0
        %2501 = vmatprep.subr.bf16.mxu0 0
        %2502 = vmatpush2.bf16.msra.mxu0 0
        %2503 = vmatprep.mubr.bf16.mxu0 0
        %2504 = vmatmul.mubr.bf16.gmra.mxu0 %v2466
        %v2505 = vpop.f32.mrf.mxu0
        %v2506 = vadd.f32 0.0, %v2505
        %v2507 = vpop.f32.mrf.mxu0
        %v2508 = vpop.f32.mrf.mxu0
        %v2509 = vpop.f32.mrf.mxu0
        %2510 = vdwg.mxu0
        %v2512 = vsel %vm440, %v2368, 0
        %v2515 = vsel %vm447, %v2372, 0
        %2517 = vmatprep.subr.bf16.mxu0 0
        %2518 = vmatpush1.bf16.msra.mxu0 0
        %2519 = vmatprep.subr.bf16.mxu0 0
        %2520 = vmatpush1.bf16.msra.mxu0 0
        %2521 = vmatprep.subr.bf16.mxu0 0
        %2522 = vmatpush1.bf16.msra.mxu0 0
        %2523 = vmatprep.subr.bf16.mxu0 0
        %2524 = vmatpush1.bf16.msra.mxu0 0
        %2525 = vmatprep.subr.bf16.mxu0 0
        %2526 = vmatpush1.bf16.msra.mxu0 0
        %2527 = vmatprep.subr.bf16.mxu0 0
        %2528 = vmatpush1.bf16.msra.mxu0 0
        %2529 = vmatprep.subr.bf16.mxu0 0
        %2530 = vmatpush1.bf16.msra.mxu0 0
        %2531 = vmatprep.subr.bf16.mxu0 0
        %2532 = vmatpush1.bf16.msra.mxu0 %v2515
        %2533 = vmatprep.subr.bf16.mxu0 0
        %2534 = vmatpush2.bf16.msra.mxu0 0
        %2535 = vmatprep.subr.bf16.mxu0 0
        %2536 = vmatpush2.bf16.msra.mxu0 0
        %2537 = vmatprep.subr.bf16.mxu0 0
        %2538 = vmatpush2.bf16.msra.mxu0 0
        %2539 = vmatprep.subr.bf16.mxu0 0
        %2540 = vmatpush2.bf16.msra.mxu0 0
        %2541 = vmatprep.subr.bf16.mxu0 0
        %2542 = vmatpush2.bf16.msra.mxu0 0
        %2543 = vmatprep.subr.bf16.mxu0 0
        %2544 = vmatpush2.bf16.msra.mxu0 0
        %2545 = vmatprep.subr.bf16.mxu0 0
        %2546 = vmatpush2.bf16.msra.mxu0 0
        %2547 = vmatprep.subr.bf16.mxu0 0
        %2548 = vmatpush2.bf16.msra.mxu0 0
        %2549 = vmatprep.mubr.bf16.mxu0 0
        %2550 = vmatmul.mubr.bf16.gmra.mxu0 %v2512
        %v2551 = vpop.f32.mrf.mxu0
        %v2552 = vadd.f32 0.0, %v2551
        %v2553 = vpop.f32.mrf.mxu0
        %v2554 = vpop.f32.mrf.mxu0
        %v2555 = vpop.f32.mrf.mxu0
        %2556 = vdwg.mxu0
        %v2557 = vpack.c.bf16 %v2460, %v2414
        %v2558 = vpack.c.bf16 %v2552, %v2506
        %v2559 = vld [vmem:[%s1868 + $0xc] sm:$0xf]
        %v2560 = vld [vmem:[%s1868 + $0x20] sm:$0xf]
        %v2561 = vld [vmem:[%s1868 + $0x34] sm:$0xf]
        %v2562 = vld [vmem:[%s1868 + $0x48] sm:$0xf]
        %v2563 = vld [vmem:[%s1868 + $0x5c] sm:$0xf]
        %v2564 = vld [vmem:[%s1868 + $0x70] sm:$0xf]
        %v2565 = vld [vmem:[%s1868 + $0x84] sm:$0xf]
        %v2566 = vld [vmem:[%s1868 + $0x98] sm:$0xf]
        %v2567 = vld [vmem:[%s1868 + $0xac] sm:$0xf]
        %v2568 = vld [vmem:[%s1868 + $0xc0] sm:$0xf]
        %v2569 = vld [vmem:[%s1868 + $0xd4] sm:$0xf]
        %v2570 = vld [vmem:[%s1868 + $0xe8] sm:$0xf]
        %v2571 = vld [vmem:[%s1868 + $0xfc] sm:$0xf]
        %v2572 = vld [vmem:[%s1868 + $0x110] sm:$0xf]
        %v2573 = vld [vmem:[%s1868 + $0x124] sm:$0xf]
        %v2574 = vld [vmem:[%s1868 + $0x138] sm:$0xf]
        %v2575 = vld [vmem:[%s1901 + $0x3] sm:$0x1]
        %v2577 = vlaneseq
        %v2578 = vshrl.u32 %v2577, 7
        %v2579 = vsub.s32 0, %v2578
        %v2580 = vrot.slane %v2575, %v2579
        %v2598 = vunpack.c.l.b16 %v2559
        %v2599 = vunpack.c.l.b16 %v2560
        %v2600 = vunpack.c.l.b16 %v2561
        %v2601 = vunpack.c.l.b16 %v2562
        %v2602 = vunpack.c.l.b16 %v2563
        %v2603 = vunpack.c.l.b16 %v2564
        %v2604 = vunpack.c.l.b16 %v2565
        %v2605 = vunpack.c.l.b16 %v2566
        %v2606 = vunpack.c.l.b16 %v2567
        %v2607 = vunpack.c.l.b16 %v2568
        %v2608 = vunpack.c.l.b16 %v2569
        %v2609 = vunpack.c.l.b16 %v2570
        %v2610 = vunpack.c.l.b16 %v2571
        %v2611 = vunpack.c.l.b16 %v2572
        %v2612 = vunpack.c.l.b16 %v2573
        %v2613 = vunpack.c.l.b16 %v2574
        %v2614 = vpack.c.b16 %v2599, %v2598
        %v2615 = vpack.c.b16 %v2601, %v2600
        %v2616 = vpack.c.b16 %v2603, %v2602
        %v2617 = vpack.c.b16 %v2605, %v2604
        %v2618 = vpack.c.b16 %v2607, %v2606
        %v2619 = vpack.c.b16 %v2609, %v2608
        %v2620 = vpack.c.b16 %v2611, %v2610
        %v2621 = vpack.c.b16 %v2613, %v2612
        %2630 = vmatprep.subr.bf16.mxu0 0
        %2631 = vmatpush1.bf16.msra.mxu0 %v2621
        %2632 = vmatprep.subr.bf16.mxu0 0
        %2633 = vmatpush1.bf16.msra.mxu0 %v2620
        %2634 = vmatprep.subr.bf16.mxu0 0
        %2635 = vmatpush1.bf16.msra.mxu0 %v2619
        %2636 = vmatprep.subr.bf16.mxu0 0
        %2637 = vmatpush1.bf16.msra.mxu0 %v2618
        %2638 = vmatprep.subr.bf16.mxu0 0
        %2639 = vmatpush1.bf16.msra.mxu0 %v2617
        %2640 = vmatprep.subr.bf16.mxu0 0
        %2641 = vmatpush1.bf16.msra.mxu0 %v2616
        %2642 = vmatprep.subr.bf16.mxu0 0
        %2643 = vmatpush1.bf16.msra.mxu0 %v2615
        %2644 = vmatprep.subr.bf16.mxu0 0
        %2645 = vmatpush1.bf16.msra.mxu0 %v2614
        %2646 = vmatprep.subr.bf16.mxu0 0
        %2647 = vmatpush2.bf16.msra.mxu0 0
        %2648 = vmatprep.subr.bf16.mxu0 0
        %2649 = vmatpush2.bf16.msra.mxu0 0
        %2650 = vmatprep.subr.bf16.mxu0 0
        %2651 = vmatpush2.bf16.msra.mxu0 0
        %2652 = vmatprep.subr.bf16.mxu0 0
        %2653 = vmatpush2.bf16.msra.mxu0 0
        %2654 = vmatprep.subr.bf16.mxu0 0
        %2655 = vmatpush2.bf16.msra.mxu0 0
        %2656 = vmatprep.subr.bf16.mxu0 0
        %2657 = vmatpush2.bf16.msra.mxu0 0
        %2658 = vmatprep.subr.bf16.mxu0 0
        %2659 = vmatpush2.bf16.msra.mxu0 0
        %2660 = vmatprep.subr.bf16.mxu0 0
        %2661 = vmatpush2.bf16.msra.mxu0 0
        %2662 = vmatprep.mubr.bf16.mxu0 0
        %2663 = vmatmul.mubr.bf16.gmra.mxu0 %v2557
        %v2664 = vpop.f32.mrf.mxu0
        %v2665 = vadd.f32 %v2580, %v2664
        %v2666 = vpop.f32.mrf.mxu0
        %v2667 = vpop.f32.mrf.mxu0
        %v2668 = vadd.f32 %v2580, %v2667
        %v2669 = vpop.f32.mrf.mxu0
        %2670 = vmatprep.mubr.bf16.mxu0 0
        %2671 = vmatmul.mubr.bf16.gmra.mxu0 %v2558
        %v2672 = vpop.f32.mrf.mxu0
        %v2673 = vadd.f32 %v2580, %v2672
        %v2674 = vpop.f32.mrf.mxu0
        %v2675 = vpop.f32.mrf.mxu0
        %v2676 = vadd.f32 %v2580, %v2675
        %v2677 = vpop.f32.mrf.mxu0
        %2678 = vdwg.mxu0
        %v2679 = vadd.f32 %v1805, %v2665
        %v2680 = vadd.f32 %v1825, %v2668
        %v2681 = vadd.f32 %v1845, %v2673
        %v2682 = vadd.f32 %v1865, %v2676
        %v2683 = vld [vmem:[%s1901 + $0x4] sm:$0x1]
        %v2684 = vld [vmem:[%s1901 + $0x5] sm:$0x1]
        %2685 = vadd.xlane.f32.xlu0 %v2679
        %v2686 = vpop.xlane.xlu0 %2685
        %2687 = vadd.xlane.f32.xlu0 %v2680
        %v2688 = vpop.xlane.xlu0 %2687
        %2689 = vadd.xlane.f32.xlu0 %v2681
        %v2690 = vpop.xlane.xlu0 %2689
        %2691 = vadd.xlane.f32.xlu0 %v2682
        %v2692 = vpop.xlane.xlu0 %2691
        %v2693 = vmul.f32 %v2686, %v514
        %v2694 = vmul.f32 %v2688, %v514
        %v2695 = vmul.f32 %v2690, %v514
        %v2696 = vmul.f32 %v2692, %v514
        %v2697 = vsub.f32 %v2679, %v2693
        %v2698 = vsub.f32 %v2680, %v2694
        %v2699 = vsub.f32 %v2681, %v2695
        %v2700 = vsub.f32 %v2682, %v2696
        %v2701 = vmul.f32 %v2697, %v2697
        %v2702 = vmul.f32 %v2698, %v2698
        %v2703 = vmul.f32 %v2699, %v2699
        %v2704 = vmul.f32 %v2700, %v2700
        %2705 = vadd.xlane.f32.xlu0 %v2701
        %v2706 = vpop.xlane.xlu0 %2705
        %2707 = vadd.xlane.f32.xlu0 %v2702
        %v2708 = vpop.xlane.xlu0 %2707
        %2709 = vadd.xlane.f32.xlu0 %v2703
        %v2710 = vpop.xlane.xlu0 %2709
        %2711 = vadd.xlane.f32.xlu0 %v2704
        %v2712 = vpop.xlane.xlu0 %2711
        %v2713 = vmul.f32 %v2706, %v514
        %v2714 = vmul.f32 %v2708, %v514
        %v2715 = vmul.f32 %v2710, %v514
        %v2716 = vmul.f32 %v2712, %v514
        %v2717 = vadd.f32 %v2713, 1e-05
        %v2718 = vadd.f32 %v2714, 1e-05
        %v2719 = vadd.f32 %v2715, 1e-05
        %v2720 = vadd.f32 %v2716, 1e-05
        %v2721 = vrsqrt.pop %v2717
        %v2722 = vrsqrt.pop %v2718
        %v2723 = vrsqrt.pop %v2719
        %v2724 = vrsqrt.pop %v2720
        %v2725 = vmul.f32 %v2697, %v2721
        %v2726 = vmul.f32 %v2698, %v2722
        %v2727 = vmul.f32 %v2699, %v2723
        %v2728 = vmul.f32 %v2700, %v2724
        %v2730 = vlaneseq
        %v2731 = vshrl.u32 %v2730, 7
        %v2732 = vsub.s32 0, %v2731
        %v2733 = vrot.slane %v2683, %v2732
        %v2735 = vmul.f32 %v2725, %v2733
        %v2736 = vmul.f32 %v2726, %v2733
        %v2737 = vmul.f32 %v2727, %v2733
        %v2738 = vmul.f32 %v2728, %v2733
        %v2740 = vlaneseq
        %v2741 = vshrl.u32 %v2740, 7
        %v2742 = vsub.s32 0, %v2741
        %v2743 = vrot.slane %v2684, %v2742
        %v2745 = vadd.f32 %v2735, %v2743
        %v2746 = vadd.f32 %v2736, %v2743
        %v2747 = vadd.f32 %v2737, %v2743
        %v2748 = vadd.f32 %v2738, %v2743
        %v2749 = vpack.c.bf16 %v2746, %v2745
        %v2750 = vpack.c.bf16 %v2748, %v2747
        %v2751 = vld [vmem:[%s1868 + $0x10] sm:$0xf]
        %v2752 = vld [vmem:[%s1868 + $0x24] sm:$0xf]
        %v2753 = vld [vmem:[%s1868 + $0x38] sm:$0xf]
        %v2754 = vld [vmem:[%s1868 + $0x4c] sm:$0xf]
        %v2755 = vld [vmem:[%s1868 + $0x60] sm:$0xf]
        %v2756 = vld [vmem:[%s1868 + $0x74] sm:$0xf]
        %v2757 = vld [vmem:[%s1868 + $0x88] sm:$0xf]
        %v2758 = vld [vmem:[%s1868 + $0x9c] sm:$0xf]
        %v2759 = vld [vmem:[%s1868 + $0xb0] sm:$0xf]
        %v2760 = vld [vmem:[%s1868 + $0xc4] sm:$0xf]
        %v2761 = vld [vmem:[%s1868 + $0xd8] sm:$0xf]
        %v2762 = vld [vmem:[%s1868 + $0xec] sm:$0xf]
        %v2763 = vld [vmem:[%s1868 + $0x100] sm:$0xf]
        %v2764 = vld [vmem:[%s1868 + $0x114] sm:$0xf]
        %v2765 = vld [vmem:[%s1868 + $0x128] sm:$0xf]
        %v2766 = vld [vmem:[%s1868 + $0x13c] sm:$0xf]
        %v2767 = vld [vmem:[%s1901 + $0x6] sm:$0x1]
        %v2769 = vlaneseq
        %v2770 = vshrl.u32 %v2769, 7
        %v2771 = vsub.s32 0, %v2770
        %v2772 = vrot.slane %v2767, %v2771
        %v2790 = vunpack.c.l.b16 %v2751
        %v2791 = vunpack.c.l.b16 %v2752
        %v2792 = vunpack.c.l.b16 %v2753
        %v2793 = vunpack.c.l.b16 %v2754
        %v2794 = vunpack.c.l.b16 %v2755
        %v2795 = vunpack.c.l.b16 %v2756
        %v2796 = vunpack.c.l.b16 %v2757
        %v2797 = vunpack.c.l.b16 %v2758
        %v2798 = vunpack.c.l.b16 %v2759
        %v2799 = vunpack.c.l.b16 %v2760
        %v2800 = vunpack.c.l.b16 %v2761
        %v2801 = vunpack.c.l.b16 %v2762
        %v2802 = vunpack.c.l.b16 %v2763
        %v2803 = vunpack.c.l.b16 %v2764
        %v2804 = vunpack.c.l.b16 %v2765
        %v2805 = vunpack.c.l.b16 %v2766
        %v2806 = vpack.c.b16 %v2791, %v2790
        %v2807 = vpack.c.b16 %v2793, %v2792
        %v2808 = vpack.c.b16 %v2795, %v2794
        %v2809 = vpack.c.b16 %v2797, %v2796
        %v2810 = vpack.c.b16 %v2799, %v2798
        %v2811 = vpack.c.b16 %v2801, %v2800
        %v2812 = vpack.c.b16 %v2803, %v2802
        %v2813 = vpack.c.b16 %v2805, %v2804
        %2822 = vmatprep.subr.bf16.mxu0 0
        %2823 = vmatpush1.bf16.msra.mxu0 %v2813
        %2824 = vmatprep.subr.bf16.mxu0 0
        %2825 = vmatpush1.bf16.msra.mxu0 %v2812
        %2826 = vmatprep.subr.bf16.mxu0 0
        %2827 = vmatpush1.bf16.msra.mxu0 %v2811
        %2828 = vmatprep.subr.bf16.mxu0 0
        %2829 = vmatpush1.bf16.msra.mxu0 %v2810
        %2830 = vmatprep.subr.bf16.mxu0 0
        %2831 = vmatpush1.bf16.msra.mxu0 %v2809
        %2832 = vmatprep.subr.bf16.mxu0 0
        %2833 = vmatpush1.bf16.msra.mxu0 %v2808
        %2834 = vmatprep.subr.bf16.mxu0 0
        %2835 = vmatpush1.bf16.msra.mxu0 %v2807
        %2836 = vmatprep.subr.bf16.mxu0 0
        %2837 = vmatpush1.bf16.msra.mxu0 %v2806
        %2838 = vmatprep.subr.bf16.mxu0 0
        %2839 = vmatpush2.bf16.msra.mxu0 0
        %2840 = vmatprep.subr.bf16.mxu0 0
        %2841 = vmatpush2.bf16.msra.mxu0 0
        %2842 = vmatprep.subr.bf16.mxu0 0
        %2843 = vmatpush2.bf16.msra.mxu0 0
        %2844 = vmatprep.subr.bf16.mxu0 0
        %2845 = vmatpush2.bf16.msra.mxu0 0
        %2846 = vmatprep.subr.bf16.mxu0 0
        %2847 = vmatpush2.bf16.msra.mxu0 0
        %2848 = vmatprep.subr.bf16.mxu0 0
        %2849 = vmatpush2.bf16.msra.mxu0 0
        %2850 = vmatprep.subr.bf16.mxu0 0
        %2851 = vmatpush2.bf16.msra.mxu0 0
        %2852 = vmatprep.subr.bf16.mxu0 0
        %2853 = vmatpush2.bf16.msra.mxu0 0
        %2854 = vmatprep.mubr.bf16.mxu0 0
        %2855 = vmatmul.mubr.bf16.gmra.mxu0 %v2749
        %v2856 = vpop.f32.mrf.mxu0
        %v2857 = vadd.f32 %v2772, %v2856
        %v2858 = vpop.f32.mrf.mxu0
        %v2859 = vpop.f32.mrf.mxu0
        %v2860 = vadd.f32 %v2772, %v2859
        %v2861 = vpop.f32.mrf.mxu0
        %2862 = vmatprep.mubr.bf16.mxu0 0
        %2863 = vmatmul.mubr.bf16.gmra.mxu0 %v2750
        %v2864 = vpop.f32.mrf.mxu0
        %v2865 = vadd.f32 %v2772, %v2864
        %v2866 = vpop.f32.mrf.mxu0
        %v2867 = vpop.f32.mrf.mxu0
        %v2868 = vadd.f32 %v2772, %v2867
        %v2869 = vpop.f32.mrf.mxu0
        %2870 = vdwg.mxu0
        %v2871 = vmax.f32 %v2857, 0.0
        %v2872 = vmax.f32 %v2860, 0.0
        %v2873 = vmax.f32 %v2865, 0.0
        %v2874 = vmax.f32 %v2868, 0.0
        %v2875 = vpack.c.bf16 %v2872, %v2871
        %v2876 = vpack.c.bf16 %v2874, %v2873
        %s2877 = scalar_lea.vmem %s5, 64
        %v2878 = vld [vmem:[%s2877] sm:$0xf]
        %v2879 = vld [vmem:[%s2877 + $0x4] sm:$0xf]
        %v2880 = vld [vmem:[%s2877 + $0x8] sm:$0xf]
        %v2881 = vld [vmem:[%s2877 + $0xc] sm:$0xf]
        %v2882 = vld [vmem:[%s2877 + $0x10] sm:$0xf]
        %v2883 = vld [vmem:[%s2877 + $0x14] sm:$0xf]
        %v2884 = vld [vmem:[%s2877 + $0x18] sm:$0xf]
        %v2885 = vld [vmem:[%s2877 + $0x1c] sm:$0xf]
        %v2886 = vld [vmem:[%s2877 + $0x20] sm:$0xf]
        %v2887 = vld [vmem:[%s2877 + $0x24] sm:$0xf]
        %v2888 = vld [vmem:[%s2877 + $0x28] sm:$0xf]
        %v2889 = vld [vmem:[%s2877 + $0x2c] sm:$0xf]
        %v2890 = vld [vmem:[%s2877 + $0x30] sm:$0xf]
        %v2891 = vld [vmem:[%s2877 + $0x34] sm:$0xf]
        %v2892 = vld [vmem:[%s2877 + $0x38] sm:$0xf]
        %v2893 = vld [vmem:[%s2877 + $0x3c] sm:$0xf]
        %v2894 = vld [vmem:[%s1901 + $0x7] sm:$0x1]
        %v2896 = vlaneseq
        %v2897 = vshrl.u32 %v2896, 7
        %v2898 = vsub.s32 0, %v2897
        %v2899 = vrot.slane %v2894, %v2898
        %v2917 = vunpack.c.l.b16 %v2878
        %v2918 = vunpack.c.l.b16 %v2879
        %v2919 = vunpack.c.l.b16 %v2880
        %v2920 = vunpack.c.l.b16 %v2881
        %v2921 = vunpack.c.l.b16 %v2882
        %v2922 = vunpack.c.l.b16 %v2883
        %v2923 = vunpack.c.l.b16 %v2884
        %v2924 = vunpack.c.l.b16 %v2885
        %v2925 = vunpack.c.l.b16 %v2886
        %v2926 = vunpack.c.l.b16 %v2887
        %v2927 = vunpack.c.l.b16 %v2888
        %v2928 = vunpack.c.l.b16 %v2889
        %v2929 = vunpack.c.l.b16 %v2890
        %v2930 = vunpack.c.l.b16 %v2891
        %v2931 = vunpack.c.l.b16 %v2892
        %v2932 = vunpack.c.l.b16 %v2893
        %v2933 = vpack.c.b16 %v2918, %v2917
        %v2934 = vpack.c.b16 %v2920, %v2919
        %v2935 = vpack.c.b16 %v2922, %v2921
        %v2936 = vpack.c.b16 %v2924, %v2923
        %v2937 = vpack.c.b16 %v2926, %v2925
        %v2938 = vpack.c.b16 %v2928, %v2927
        %v2939 = vpack.c.b16 %v2930, %v2929
        %v2940 = vpack.c.b16 %v2932, %v2931
        %2949 = vmatprep.subr.bf16.mxu0 0
        %2950 = vmatpush1.bf16.msra.mxu0 %v2940
        %2951 = vmatprep.subr.bf16.mxu0 0
        %2952 = vmatpush1.bf16.msra.mxu0 %v2939
        %2953 = vmatprep.subr.bf16.mxu0 0
        %2954 = vmatpush1.bf16.msra.mxu0 %v2938
        %2955 = vmatprep.subr.bf16.mxu0 0
        %2956 = vmatpush1.bf16.msra.mxu0 %v2937
        %2957 = vmatprep.subr.bf16.mxu0 0
        %2958 = vmatpush1.bf16.msra.mxu0 %v2936
        %2959 = vmatprep.subr.bf16.mxu0 0
        %2960 = vmatpush1.bf16.msra.mxu0 %v2935
        %2961 = vmatprep.subr.bf16.mxu0 0
        %2962 = vmatpush1.bf16.msra.mxu0 %v2934
        %2963 = vmatprep.subr.bf16.mxu0 0
        %2964 = vmatpush1.bf16.msra.mxu0 %v2933
        %2965 = vmatprep.subr.bf16.mxu0 0
        %2966 = vmatpush2.bf16.msra.mxu0 0
        %2967 = vmatprep.subr.bf16.mxu0 0
        %2968 = vmatpush2.bf16.msra.mxu0 0
        %2969 = vmatprep.subr.bf16.mxu0 0
        %2970 = vmatpush2.bf16.msra.mxu0 0
        %2971 = vmatprep.subr.bf16.mxu0 0
        %2972 = vmatpush2.bf16.msra.mxu0 0
        %2973 = vmatprep.subr.bf16.mxu0 0
        %2974 = vmatpush2.bf16.msra.mxu0 0
        %2975 = vmatprep.subr.bf16.mxu0 0
        %2976 = vmatpush2.bf16.msra.mxu0 0
        %2977 = vmatprep.subr.bf16.mxu0 0
        %2978 = vmatpush2.bf16.msra.mxu0 0
        %2979 = vmatprep.subr.bf16.mxu0 0
        %2980 = vmatpush2.bf16.msra.mxu0 0
        %2981 = vmatprep.mubr.bf16.mxu0 0
        %2982 = vmatmul.mubr.bf16.gmra.mxu0 %v2875
        %v2983 = vpop.f32.mrf.mxu0
        %v2984 = vadd.f32 %v2899, %v2983
        %v2985 = vpop.f32.mrf.mxu0
        %v2986 = vpop.f32.mrf.mxu0
        %v2987 = vadd.f32 %v2899, %v2986
        %v2988 = vpop.f32.mrf.mxu0
        %2989 = vmatprep.mubr.bf16.mxu0 0
        %2990 = vmatmul.mubr.bf16.gmra.mxu0 %v2876
        %v2991 = vpop.f32.mrf.mxu0
        %v2992 = vadd.f32 %v2899, %v2991
        %v2993 = vpop.f32.mrf.mxu0
        %v2994 = vpop.f32.mrf.mxu0
        %v2995 = vadd.f32 %v2899, %v2994
        %v2996 = vpop.f32.mrf.mxu0
        %2997 = vdwg.mxu0
        %v2998 = vadd.f32 %v2745, %v2984
        %v2999 = vadd.f32 %v2746, %v2987
        %v3000 = vadd.f32 %v2747, %v2992
        %v3001 = vadd.f32 %v2748, %v2995
        %v3002 = vld [vmem:[%s1901 + $0x8] sm:$0x1]
        %v3003 = vld [vmem:[%s1901 + $0x9] sm:$0x1]
        %3004 = vadd.xlane.f32.xlu0 %v2998
        %v3005 = vpop.xlane.xlu0 %3004
        %3006 = vadd.xlane.f32.xlu0 %v2999
        %v3007 = vpop.xlane.xlu0 %3006
        %3008 = vadd.xlane.f32.xlu0 %v3000
        %v3009 = vpop.xlane.xlu0 %3008
        %3010 = vadd.xlane.f32.xlu0 %v3001
        %v3011 = vpop.xlane.xlu0 %3010
        %v3012 = vmul.f32 %v3005, %v514
        %v3013 = vmul.f32 %v3007, %v514
        %v3014 = vmul.f32 %v3009, %v514
        %v3015 = vmul.f32 %v3011, %v514
        %v3016 = vsub.f32 %v2998, %v3012
        %v3017 = vsub.f32 %v2999, %v3013
        %v3018 = vsub.f32 %v3000, %v3014
        %v3019 = vsub.f32 %v3001, %v3015
        %v3020 = vmul.f32 %v3016, %v3016
        %v3021 = vmul.f32 %v3017, %v3017
        %v3022 = vmul.f32 %v3018, %v3018
        %v3023 = vmul.f32 %v3019, %v3019
        %3024 = vadd.xlane.f32.xlu0 %v3020
        %v3025 = vpop.xlane.xlu0 %3024
        %3026 = vadd.xlane.f32.xlu0 %v3021
        %v3027 = vpop.xlane.xlu0 %3026
        %3028 = vadd.xlane.f32.xlu0 %v3022
        %v3029 = vpop.xlane.xlu0 %3028
        %3030 = vadd.xlane.f32.xlu0 %v3023
        %v3031 = vpop.xlane.xlu0 %3030
        %v3032 = vmul.f32 %v3025, %v514
        %v3033 = vmul.f32 %v3027, %v514
        %v3034 = vmul.f32 %v3029, %v514
        %v3035 = vmul.f32 %v3031, %v514
        %v3036 = vadd.f32 %v3032, 1e-05
        %v3037 = vadd.f32 %v3033, 1e-05
        %v3038 = vadd.f32 %v3034, 1e-05
        %v3039 = vadd.f32 %v3035, 1e-05
        %v3040 = vrsqrt.pop %v3036
        %v3041 = vrsqrt.pop %v3037
        %v3042 = vrsqrt.pop %v3038
        %v3043 = vrsqrt.pop %v3039
        %v3044 = vmul.f32 %v3016, %v3040
        %v3045 = vmul.f32 %v3017, %v3041
        %v3046 = vmul.f32 %v3018, %v3042
        %v3047 = vmul.f32 %v3019, %v3043
        %v3049 = vlaneseq
        %v3050 = vshrl.u32 %v3049, 7
        %v3051 = vsub.s32 0, %v3050
        %v3052 = vrot.slane %v3002, %v3051
        %v3054 = vmul.f32 %v3044, %v3052
        %v3055 = vmul.f32 %v3045, %v3052
        %v3056 = vmul.f32 %v3046, %v3052
        %v3057 = vmul.f32 %v3047, %v3052
        %v3059 = vlaneseq
        %v3060 = vshrl.u32 %v3059, 7
        %v3061 = vsub.s32 0, %v3060
        %v3062 = vrot.slane %v3003, %v3061
        %v3064 = vadd.f32 %v3054, %v3062
        %v3065 = vadd.f32 %v3055, %v3062
        %v3066 = vadd.f32 %v3056, %v3062
        %v3067 = vadd.f32 %v3057, %v3062
        %s3068 = sld [smem:[#allocation9 + $0x14]]
        %v3069 = vstv %s3068
        %v3070 = vmul.f32 %v3069, %v3064
        %s3071 = sld [smem:[#allocation9 + $0x15]]
        %v3072 = vstv %s3071
        %v3073 = vmul.f32 %v3072, %v3065
        %v3074 = vadd.f32 %v3070, %v3073
        %s3075 = sld [smem:[#allocation9 + $0x16]]
        %v3076 = vstv %s3075
        %v3077 = vmul.f32 %v3076, %v3066
        %v3078 = vadd.f32 %v3074, %v3077
        %s3079 = sld [smem:[#allocation9 + $0x17]]
        %v3080 = vstv %s3079
        %v3081 = vmul.f32 %v3080, %v3067
        %v3082 = vadd.f32 %v3078, %v3081
        %s3083 = sld [smem:[#allocation9 + $0x24]]
        %v3084 = vstv %s3083
        %v3085 = vadd.f32 %v3082, %v3084
        %v3086 = vmax.f32 %v3085, 0.0
        %v3087 = vadd.f32 %v3086, %v3064
        %s3088 = sld [smem:[#allocation9 + $0x18]]
        %v3089 = vstv %s3088
        %v3090 = vmul.f32 %v3089, %v3064
        %s3091 = sld [smem:[#allocation9 + $0x19]]
        %v3092 = vstv %s3091
        %v3093 = vmul.f32 %v3092, %v3065
        %v3094 = vadd.f32 %v3090, %v3093
        %s3095 = sld [smem:[#allocation9 + $0x1a]]
        %v3096 = vstv %s3095
        %v3097 = vmul.f32 %v3096, %v3066
        %v3098 = vadd.f32 %v3094, %v3097
        %s3099 = sld [smem:[#allocation9 + $0x1b]]
        %v3100 = vstv %s3099
        %v3101 = vmul.f32 %v3100, %v3067
        %v3102 = vadd.f32 %v3098, %v3101
        %s3103 = sld [smem:[#allocation9 + $0x25]]
        %v3104 = vstv %s3103
        %v3105 = vadd.f32 %v3102, %v3104
        %v3106 = vmax.f32 %v3105, 0.0
        %v3107 = vadd.f32 %v3106, %v3065
        %s3108 = sld [smem:[#allocation9 + $0x1c]]
        %v3109 = vstv %s3108
        %v3110 = vmul.f32 %v3109, %v3064
        %s3111 = sld [smem:[#allocation9 + $0x1d]]
        %v3112 = vstv %s3111
        %v3113 = vmul.f32 %v3112, %v3065
        %v3114 = vadd.f32 %v3110, %v3113
        %s3115 = sld [smem:[#allocation9 + $0x1e]]
        %v3116 = vstv %s3115
        %v3117 = vmul.f32 %v3116, %v3066
        %v3118 = vadd.f32 %v3114, %v3117
        %s3119 = sld [smem:[#allocation9 + $0x1f]]
        %v3120 = vstv %s3119
        %v3121 = vmul.f32 %v3120, %v3067
        %v3122 = vadd.f32 %v3118, %v3121
        %s3123 = sld [smem:[#allocation9 + $0x26]]
        %v3124 = vstv %s3123
        %v3125 = vadd.f32 %v3122, %v3124
        %v3126 = vmax.f32 %v3125, 0.0
        %v3127 = vadd.f32 %v3126, %v3066
        %s3128 = sld [smem:[#allocation9 + $0x20]]
        %v3129 = vstv %s3128
        %v3130 = vmul.f32 %v3129, %v3064
        %s3131 = sld [smem:[#allocation9 + $0x21]]
        %v3132 = vstv %s3131
        %v3133 = vmul.f32 %v3132, %v3065
        %v3134 = vadd.f32 %v3130, %v3133
        %s3135 = sld [smem:[#allocation9 + $0x22]]
        %v3136 = vstv %s3135
        %v3137 = vmul.f32 %v3136, %v3066
        %v3138 = vadd.f32 %v3134, %v3137
        %s3139 = sld [smem:[#allocation9 + $0x23]]
        %v3140 = vstv %s3139
        %v3141 = vmul.f32 %v3140, %v3067
        %v3142 = vadd.f32 %v3138, %v3141
        %s3143 = sld [smem:[#allocation9 + $0x27]]
        %v3144 = vstv %s3143
        %v3145 = vadd.f32 %v3142, %v3144
        %v3146 = vmax.f32 %v3145, 0.0
        %v3147 = vadd.f32 %v3146, %v3067
        %v3149 = vrot.slane %v3107, 7
        %v3152 = vrot.slane %v3127, 6
        %v3155 = vrot.slane %v3147, 5
        %vm3157 = vcmask 1040384
        %v3158 = vsel %vm3157, %v3087, %v3149
        %vm3159 = vcmask 1041408
        %v3160 = vsel %vm3159, %v3158, %v3152
        %vm3161 = vcmask 1042432
        %v3162 = vsel %vm3161, %v3160, %v3155
        %3163 = vst [vmem:[%s411] sm:$0xf] %v3162
        %v3164 = vsel %vm447, %v3162, 0.0
        %v3165 = vrot.slane %v3164, 4
        %v3166 = vadd.f32 %v3164, %v3165
        %v3167 = vrot.slane %v3166, 2
        %v3168 = vadd.f32 %v3166, %v3167
        %v3169 = vrot.slane %v3168, 1
        %v3170 = vadd.f32 %v3168, %v3169
        %v3171 = vrcp.pop 4.0
        %v3172 = vmul.f32 %v3170, %v3171
        %v3173 = vpack.c.bf16 %v3172, %v3172
        %v3174 = vld [vmem:[#allocation8] sm:$0xf]
        %v3175 = vld [vmem:[#allocation8 + $0x8] sm:$0xf]
        %v3176 = vld [vmem:[#allocation8 + $0x10] sm:$0xf]
        %v3177 = vld [vmem:[#allocation8 + $0x18] sm:$0xf]
        %v3178 = vld [vmem:[#allocation8 + $0x20] sm:$0xf]
        %v3179 = vld [vmem:[#allocation8 + $0x28] sm:$0xf]
        %v3180 = vld [vmem:[#allocation8 + $0x30] sm:$0xf]
        %v3181 = vld [vmem:[#allocation8 + $0x38] sm:$0xf]
        %v3182 = vld [vmem:[#allocation8 + $0x40] sm:$0xf]
        %v3183 = vld [vmem:[#allocation8 + $0x48] sm:$0xf]
        %v3184 = vld [vmem:[#allocation8 + $0x50] sm:$0xf]
        %v3185 = vld [vmem:[#allocation8 + $0x58] sm:$0xf]
        %v3186 = vld [vmem:[#allocation8 + $0x60] sm:$0xf]
        %v3187 = vld [vmem:[#allocation8 + $0x68] sm:$0xf]
        %v3188 = vld [vmem:[#allocation8 + $0x70] sm:$0xf]
        %v3189 = vld [vmem:[#allocation8 + $0x78] sm:$0xf]
        %v3190 = vld [vmem:[%s3 + $0x3] sm:$0x1]
        %v3207 = vunpack.c.l.b16 %v3174
        %v3208 = vunpack.c.l.b16 %v3175
        %v3209 = vunpack.c.l.b16 %v3176
        %v3210 = vunpack.c.l.b16 %v3177
        %v3211 = vunpack.c.l.b16 %v3178
        %v3212 = vunpack.c.l.b16 %v3179
        %v3213 = vunpack.c.l.b16 %v3180
        %v3214 = vunpack.c.l.b16 %v3181
        %v3215 = vunpack.c.l.b16 %v3182
        %v3216 = vunpack.c.l.b16 %v3183
        %v3217 = vunpack.c.l.b16 %v3184
        %v3218 = vunpack.c.l.b16 %v3185
        %v3219 = vunpack.c.l.b16 %v3186
        %v3220 = vunpack.c.l.b16 %v3187
        %v3221 = vunpack.c.l.b16 %v3188
        %v3222 = vunpack.c.l.b16 %v3189
        %v3223 = vpack.c.b16 %v3208, %v3207
        %v3224 = vpack.c.b16 %v3210, %v3209
        %v3225 = vpack.c.b16 %v3212, %v3211
        %v3226 = vpack.c.b16 %v3214, %v3213
        %v3227 = vpack.c.b16 %v3216, %v3215
        %v3228 = vpack.c.b16 %v3218, %v3217
        %v3229 = vpack.c.b16 %v3220, %v3219
        %v3230 = vpack.c.b16 %v3222, %v3221
        %3239 = vmatprep.subr.bf16.mxu0 0
        %3240 = vmatpush1.bf16.msra.mxu0 %v3230
        %3241 = vmatprep.subr.bf16.mxu0 0
        %3242 = vmatpush1.bf16.msra.mxu0 %v3229
        %3243 = vmatprep.subr.bf16.mxu0 0
        %3244 = vmatpush1.bf16.msra.mxu0 %v3228
        %3245 = vmatprep.subr.bf16.mxu0 0
        %3246 = vmatpush1.bf16.msra.mxu0 %v3227
        %3247 = vmatprep.subr.bf16.mxu0 0
        %3248 = vmatpush1.bf16.msra.mxu0 %v3226
        %3249 = vmatprep.subr.bf16.mxu0 0
        %3250 = vmatpush1.bf16.msra.mxu0 %v3225
        %3251 = vmatprep.subr.bf16.mxu0 0
        %3252 = vmatpush1.bf16.msra.mxu0 %v3224
        %3253 = vmatprep.subr.bf16.mxu0 0
        %3254 = vmatpush1.bf16.msra.mxu0 %v3223
        %3255 = vmatprep.subr.bf16.mxu0 0
        %3256 = vmatpush2.bf16.msra.mxu0 0
        %3257 = vmatprep.subr.bf16.mxu0 0
        %3258 = vmatpush2.bf16.msra.mxu0 0
        %3259 = vmatprep.subr.bf16.mxu0 0
        %3260 = vmatpush2.bf16.msra.mxu0 0
        %3261 = vmatprep.subr.bf16.mxu0 0
        %3262 = vmatpush2.bf16.msra.mxu0 0
        %3263 = vmatprep.subr.bf16.mxu0 0
        %3264 = vmatpush2.bf16.msra.mxu0 0
        %3265 = vmatprep.subr.bf16.mxu0 0
        %3266 = vmatpush2.bf16.msra.mxu0 0
        %3267 = vmatprep.subr.bf16.mxu0 0
        %3268 = vmatpush2.bf16.msra.mxu0 0
        %3269 = vmatprep.subr.bf16.mxu0 0
        %3270 = vmatpush2.bf16.msra.mxu0 0
        %3271 = vmatprep.mubr.bf16.mxu0 0
        %3272 = vmatmul.mubr.bf16.gmra.mxu0 %v3173
        %v3273 = vpop.f32.mrf.mxu0
        %v3274 = vadd.f32 %v3190, %v3273
        %v3275 = vpop.f32.mrf.mxu0
        %v3276 = vpop.f32.mrf.mxu0
        %v3277 = vpop.f32.mrf.mxu0
        %3278 = vdwg.mxu0
        %v3279 = vmax.f32 %v3274, 0.0
        %v3280 = vpack.c.bf16 %v3279, %v3279
        %v3281 = vld [vmem:[#allocation8 + $0x4] sm:$0xf]
        %v3282 = vld [vmem:[#allocation8 + $0xc] sm:$0xf]
        %v3283 = vld [vmem:[#allocation8 + $0x14] sm:$0xf]
        %v3284 = vld [vmem:[#allocation8 + $0x1c] sm:$0xf]
        %v3285 = vld [vmem:[#allocation8 + $0x24] sm:$0xf]
        %v3286 = vld [vmem:[#allocation8 + $0x2c] sm:$0xf]
        %v3287 = vld [vmem:[#allocation8 + $0x34] sm:$0xf]
        %v3288 = vld [vmem:[#allocation8 + $0x3c] sm:$0xf]
        %v3289 = vld [vmem:[#allocation8 + $0x44] sm:$0xf]
        %v3290 = vld [vmem:[#allocation8 + $0x4c] sm:$0xf]
        %v3291 = vld [vmem:[#allocation8 + $0x54] sm:$0xf]
        %v3292 = vld [vmem:[#allocation8 + $0x5c] sm:$0xf]
        %v3293 = vld [vmem:[#allocation8 + $0x64] sm:$0xf]
        %v3294 = vld [vmem:[#allocation8 + $0x6c] sm:$0xf]
        %v3295 = vld [vmem:[#allocation8 + $0x74] sm:$0xf]
        %v3296 = vld [vmem:[#allocation8 + $0x7c] sm:$0xf]
        %v3297 = vld [vmem:[%s3 + $0x4] sm:$0x1]
        %v3314 = vunpack.c.l.b16 %v3281
        %v3315 = vunpack.c.l.b16 %v3282
        %v3316 = vunpack.c.l.b16 %v3283
        %v3317 = vunpack.c.l.b16 %v3284
        %v3318 = vunpack.c.l.b16 %v3285
        %v3319 = vunpack.c.l.b16 %v3286
        %v3320 = vunpack.c.l.b16 %v3287
        %v3321 = vunpack.c.l.b16 %v3288
        %v3322 = vunpack.c.l.b16 %v3289
        %v3323 = vunpack.c.l.b16 %v3290
        %v3324 = vunpack.c.l.b16 %v3291
        %v3325 = vunpack.c.l.b16 %v3292
        %v3326 = vunpack.c.l.b16 %v3293
        %v3327 = vunpack.c.l.b16 %v3294
        %v3328 = vunpack.c.l.b16 %v3295
        %v3329 = vunpack.c.l.b16 %v3296
        %v3330 = vpack.c.b16 %v3315, %v3314
        %v3331 = vpack.c.b16 %v3317, %v3316
        %v3332 = vpack.c.b16 %v3319, %v3318
        %v3333 = vpack.c.b16 %v3321, %v3320
        %v3334 = vpack.c.b16 %v3323, %v3322
        %v3335 = vpack.c.b16 %v3325, %v3324
        %v3336 = vpack.c.b16 %v3327, %v3326
        %v3337 = vpack.c.b16 %v3329, %v3328
        %3346 = vmatprep.subr.bf16.mxu0 0
        %3347 = vmatpush1.bf16.msra.mxu0 %v3337
        %3348 = vmatprep.subr.bf16.mxu0 0
        %3349 = vmatpush1.bf16.msra.mxu0 %v3336
        %3350 = vmatprep.subr.bf16.mxu0 0
        %3351 = vmatpush1.bf16.msra.mxu0 %v3335
        %3352 = vmatprep.subr.bf16.mxu0 0
        %3353 = vmatpush1.bf16.msra.mxu0 %v3334
        %3354 = vmatprep.subr.bf16.mxu0 0
        %3355 = vmatpush1.bf16.msra.mxu0 %v3333
        %3356 = vmatprep.subr.bf16.mxu0 0
        %3357 = vmatpush1.bf16.msra.mxu0 %v3332
        %3358 = vmatprep.subr.bf16.mxu0 0
        %3359 = vmatpush1.bf16.msra.mxu0 %v3331
        %3360 = vmatprep.subr.bf16.mxu0 0
        %3361 = vmatpush1.bf16.msra.mxu0 %v3330
        %3362 = vmatprep.subr.bf16.mxu0 0
        %3363 = vmatpush2.bf16.msra.mxu0 0
        %3364 = vmatprep.subr.bf16.mxu0 0
        %3365 = vmatpush2.bf16.msra.mxu0 0
        %3366 = vmatprep.subr.bf16.mxu0 0
        %3367 = vmatpush2.bf16.msra.mxu0 0
        %3368 = vmatprep.subr.bf16.mxu0 0
        %3369 = vmatpush2.bf16.msra.mxu0 0
        %3370 = vmatprep.subr.bf16.mxu0 0
        %3371 = vmatpush2.bf16.msra.mxu0 0
        %3372 = vmatprep.subr.bf16.mxu0 0
        %3373 = vmatpush2.bf16.msra.mxu0 0
        %3374 = vmatprep.subr.bf16.mxu0 0
        %3375 = vmatpush2.bf16.msra.mxu0 0
        %3376 = vmatprep.subr.bf16.mxu0 0
        %3377 = vmatpush2.bf16.msra.mxu0 0
        %3378 = vmatprep.mubr.bf16.mxu0 0
        %3379 = vmatmul.mubr.bf16.gmra.mxu0 %v3280
        %v3380 = vpop.f32.mrf.mxu0
        %v3381 = vadd.f32 %v3297, %v3380
        %v3382 = vpop.f32.mrf.mxu0
        %v3383 = vpop.f32.mrf.mxu0
        %v3384 = vpop.f32.mrf.mxu0
        %3385 = vdwg.mxu0
        %3386 = vst [vmem:[%s424] sm:$0x1] %v3381
        %s3387 = sand.u32 %s230, 1
        %s3388 = scalar_lea.sflag [#allocation4], %s3387
        %s3389 = sand.u32 %s230, 1
        %s3390 = smul.addr %s3389, 4
        %s3391 = scalar_lea.vmem [#allocation10], %s3390
        %p3392 = scmp.lt.s32.totalorder %s28, 1
        %s3393 = scalar_select %p3392, %s28, 1
        %s3394 = scalar_lea.vmem %s10, %s3393
        // Predicated region
        $region73: #{forward.1} parent=55 // pred_check
          %p3395 = pneg %p240
        $region74: #{forward.1} parent=55 // pred_check_branch
          %3397 = sbr.rel (%p3395) target = $region76
        $region75: #{forward.1} parent=55 // pred_region
          %s3399 = ssub.s32 64, 64
          %3400 = vsyncadd %s3388, %s3399
          %s3401 = smul.addr %s28, 64
          %s3402 = scalar_lea.hbm %s9, %s3401
          %s3404 = sshll.u32 %s3391, 4
          %s3405 = int_to_ptr.vmem [resolvable:$true] %s3404
          %3407 = dma.vmem_to_hbm [thread:$0]  %s3405, 64, %s3402, %s3388
        $region76: #{forward.1} parent=55 // pred_fallthru
          _
        // Predicated region
        $region77: #{forward.1} parent=55 // pred_check
          %p3408 = pneg %p266
        $region78: #{forward.1} parent=55 // pred_check_branch
          %3410 = sbr.rel (%p3408) target = $region80
        $region79: #{forward.1} parent=55 // pred_region
          _
        $region80: #{forward.1} parent=55 // pred_fallthru
          _
      $region56: #{forward.1} parent=5 // pred_fallthru
        _
      %p3411 = scmp.le.s32.totalorder 2, %s23
      // Predicated region
      $region81: #{forward.1} parent=5 // pred_check
        %p3412 = pneg %p3411
      $region82: #{forward.1} parent=5 // pred_check_branch
        %3414 = sbr.rel (%p3412) target = $region84
      $region83: #{forward.1} parent=5 // pred_region
        %s3415 = ssub.s32 %s23, 2
        // Predicated region
        $region85: #{forward.1} parent=83 // pred_check
          %p3416 = pneg %p246
        $region86: #{forward.1} parent=83 // pred_check_branch
          %3418 = sbr.rel (%p3416) target = $region88
        $region87: #{forward.1} parent=83 // pred_region
          %s3419 = sand.u32 %s231, 1
          %s3420 = scalar_lea.sflag [#allocation4], %s3419
          %s3421 = sand.u32 %s231, 1
          %s3422 = smul.addr %s3421, 4
          %s3423 = scalar_lea.vmem [#allocation10], %s3422
          %3424 = dma.done %s3420, 64
        $region88: #{forward.1} parent=83 // pred_fallthru
          _
        // Predicated region
        $region89: #{forward.1} parent=83 // pred_check
          %p3425 = pneg %p272
        $region90: #{forward.1} parent=83 // pred_check_branch
          %3427 = sbr.rel (%p3425) target = $region92
        $region91: #{forward.1} parent=83 // pred_region
          %p3428 = scmp.lt.s32.totalorder %s29, 1
          %s3429 = scalar_select %p3428, %s29, 1
          %s3430 = scalar_lea.vmem %s10, %s3429
        $region92: #{forward.1} parent=83 // pred_fallthru
          _
      $region84: #{forward.1} parent=5 // pred_fallthru
        _
    $region6: #{forward.1} parent=1 // loop_footer
      %s27 = sadd.s32 1, %s23
    $region7: #{forward.1} parent=1 // loop_footer_branch
      %22 = sbr.rel target = $region3
    $region8: #{forward.1} parent=1 // loop_exit
      _
    %3431 = vsyncpa [#allocation3], 1
    %s3432 = scalar_lea.sflag [#allocation3], 1
    %3433 = vsyncpa %s3432, 1
    %3434 = vsyncpa [#allocation7], 1
    %3435 = vsyncpa [#allocation4], 1
    %s3436 = scalar_lea.sflag [#allocation4], 1
    %3437 = vsyncpa %s3436, 1
    %3438 = vsyncpa [#allocation5], 1
    %s3439 = scalar_lea.sflag [#allocation5], 1
    %3440 = vsyncpa %s3439, 1

</llo_original>
